<compile_context>
chip_gen: v7x
topology: tpu7x:2x2x1
jax: 0.10.0
libtpu: 0.0.40
codegen_flags: <defaults>
</compile_context>

<pallas_src>
import functools

import jax
import jax.numpy as jnp
from jax.experimental import pallas as pl
from jax.experimental.pallas import tpu as pltpu

FEAT = 1000       # backbone output dim == BatchNorm1d(1000)
HID = 100         # fc1: Linear(1000, 100)
N_WAY = 2
BN_EPS = 1e-5

FEAT_PAD = 1024   # 1000 -> 1024 (lane multiple)
HID_PAD = 128     # 100  -> 128  (lane multiple)
OUT_LANES = 128   # class axis padded to a full lane tile (scores in [:, :N_WAY])
MAX_TK = 512      # backbone-weight K tile: 512*1024*2 B = 1 MB per buffer


def _round_up(x, m):
    return ((x + m - 1) // m) * m


def _pick_tk(din_pad, max_tk=MAX_TK):
    """Largest multiple of 128 <= max_tk that divides din_pad."""
    tk = min(max_tk, din_pad)
    while din_pad % tk:
        tk -= 128
    return tk


# --------------------------------------------------------------------------- #
# Kernel
# --------------------------------------------------------------------------- #
def proto_kernel(x_ref, mask_ref, bw_ref, bb_ref, fw_ref, fb_ref, out_ref,
                 z_acc, *, ns_pad, nq_pad):
    """Grid = (episode, K-tile).

    Accumulates z = x @ bw over the K axis into a VMEM scratch, then on the
    last K step runs the head (BN-folded fc1 + ReLU), the prototype matmul and
    the negated cdist, storing a lane-dense (nq_pad, 128) score block.
    """
    k = pl.program_id(1)

    @pl.when(k == 0)
    def _init():
        z_acc[...] = jnp.zeros_like(z_acc)

    # Backbone matmul over one K tile (bf16 inputs, f32 accumulation).
    z_acc[...] += jnp.dot(x_ref[0], bw_ref[...],
                          preferred_element_type=jnp.float32)

    @pl.when(k == pl.num_programs(1) - 1)
    def _finalize():
        z = (z_acc[...] + bb_ref[...]).astype(jnp.bfloat16)        # (R, FEAT_PAD)
        # BatchNorm1d (eval) is already folded into fw/fb at wrapper time.
        h = jnp.dot(z, fw_ref[...],
                    preferred_element_type=jnp.float32) + fb_ref[...]
        h = jnp.maximum(h, 0.0)                                    # ReLU (R, HID_PAD)

        # Class prototypes via the pre-transposed one-hot mask (zeros on
        # query / padding / unused-class rows): one (128,R) x (R,HID) matmul.
        mask = mask_ref[0]                                         # (OUT_LANES, R)
        counts = jnp.maximum(jnp.sum(mask, axis=1, keepdims=True), 1.0)
        proto = jnp.dot(mask, h, preferred_element_type=jnp.float32) / counts

        # torch.cdist (p=2) then negate, via the q2 + p2 - 2*qp expansion.
        h_qry = h[ns_pad:ns_pad + nq_pad, :]                       # static slice
        q2 = jnp.sum(h_qry * h_qry, axis=-1, keepdims=True)        # (NQ_PAD, 1)
        p2 = jnp.sum(proto * proto, axis=-1, keepdims=True)        # (OUT_LANES, 1)
        qp = jnp.dot(h_qry, proto.T, preferred_element_type=jnp.float32)
        d2 = jnp.maximum(q2 + p2.T - 2.0 * qp, 0.0)
        out_ref[0] = -jnp.sqrt(d2)                                 # (NQ_PAD, OUT_LANES)


# --------------------------------------------------------------------------- #
# Wrapper-side preparation
# --------------------------------------------------------------------------- #
def fold_and_pad_params(params):
    """Fold eval-mode BN into fc1, pad to lane-aligned shapes, cast weights bf16."""
    inv_std = jax.lax.rsqrt(params["rvar"] + BN_EPS)          # (1, FEAT)
    scale = params["gamma"] * inv_std                          # (1, FEAT)
    shift = params["beta"] - params["rmean"] * scale           # (1, FEAT)
    fw_fold = params["fw"] * scale.reshape(-1, 1)              # diag(scale) @ fw
    fb_fold = params["fb"] + shift @ params["fw"]              # (1, HID)

    din = params["bw"].shape[0]
    din_pad = _round_up(din, 128)
    bw = jnp.pad(params["bw"], ((0, din_pad - din), (0, FEAT_PAD - FEAT)))
    bb = jnp.pad(params["bb"], ((0, 0), (0, FEAT_PAD - FEAT)))
    fw = jnp.pad(fw_fold, ((0, FEAT_PAD - FEAT), (0, HID_PAD - HID)))
    fb = jnp.pad(fb_fold, ((0, 0), (0, HID_PAD - HID)))
    return {
        "bw": bw.astype(jnp.bfloat16),   # (Din_pad, 1024) bf16, K-tiled in kernel
        "bb": bb.astype(jnp.float32),
        "fw": fw.astype(jnp.bfloat16),   # (1024, 128) bf16, BN folded in
        "fb": fb.astype(jnp.float32),
        "din_pad": din_pad,
    }


def _prepare_episodes(support_images, support_labels, query_images, din_pad):
    """Fixed per-episode row layout: [0, NS_PAD) support, [NS_PAD, NS_PAD+NQ_PAD)
    query; builds the pre-transposed one-hot class mask (OUT_LANES, rows)."""
    num_eps, ns = support_images.shape[:2]
    nq = query_images.shape[1]
    ns_pad = _round_up(ns, 8)
    nq_pad = _round_up(nq, 8)
    nr_pad = ns_pad + nq_pad

    sup = support_images.reshape(num_eps, ns, -1)
    qry = query_images.reshape(num_eps, nq, -1)
    din = sup.shape[-1]
    sup = jnp.pad(sup, ((0, 0), (0, ns_pad - ns), (0, din_pad - din)))
    qry = jnp.pad(qry, ((0, 0), (0, nq_pad - nq), (0, din_pad - din)))
    x = jnp.concatenate([sup, qry], axis=1).astype(jnp.bfloat16)   # (E, nr_pad, din_pad)

    labels = jnp.pad(support_labels.astype(jnp.int32),
                     ((0, 0), (0, nr_pad - ns)), constant_values=-1)  # (E, nr_pad)
    mask_t = (labels[:, None, :] ==
              jnp.arange(OUT_LANES, dtype=jnp.int32)[None, :, None]
              ).astype(jnp.float32)                                   # (E, 128, nr_pad)
    return x, mask_t, ns_pad, nq_pad


def prototypical_forward(support_images, support_labels, query_images, prep):
    nq = query_images.shape[1]
    x, mask_t, ns_pad, nq_pad = _prepare_episodes(
        support_images, support_labels, query_images, prep["din_pad"])
    num_eps, nr_pad, din_pad = x.shape
    tk = _pick_tk(din_pad)
    kt = din_pad // tk

    out = pl.pallas_call(
        functools.partial(proto_kernel, ns_pad=ns_pad, nq_pad=nq_pad),
        out_shape=jax.ShapeDtypeStruct((num_eps, nq_pad, OUT_LANES), jnp.float32),
        grid_spec=pltpu.PrefetchScalarGridSpec(
            num_scalar_prefetch=0,
            grid=(num_eps, kt),
            in_specs=[
                pl.BlockSpec((1, nr_pad, tk), lambda e, k: (e, 0, k)),         # x
                pl.BlockSpec((1, OUT_LANES, nr_pad), lambda e, k: (e, 0, 0)),  # mask
                pl.BlockSpec((tk, FEAT_PAD), lambda e, k: (k, 0)),             # bw (K-tiled)
                pl.BlockSpec((1, FEAT_PAD), lambda e, k: (0, 0)),              # bb (resident)
                pl.BlockSpec((FEAT_PAD, HID_PAD), lambda e, k: (0, 0)),        # fw (resident)
                pl.BlockSpec((1, HID_PAD), lambda e, k: (0, 0)),               # fb (resident)
            ],
            out_specs=pl.BlockSpec((1, nq_pad, OUT_LANES), lambda e, k: (e, 0, 0)),
            scratch_shapes=[pltpu.VMEM((nr_pad, FEAT_PAD), jnp.float32)],
        ),
        compiler_params=pltpu.CompilerParams(
            dimension_semantics=("parallel", "arbitrary")),
    )(x, mask_t, prep["bw"], prep["bb"], prep["fw"], prep["fb"])

    return out[:, :nq, :N_WAY]     # (E, nq, N_WAY)


# --------------------------------------------------------------------------- #
# References
# --------------------------------------------------------------------------- #
def _episode_math_ref(x_e, mask_e, prep, ns_pad, nq_pad):
    """Pure-JAX reference with the same padded math/dtypes as the kernel
    (single un-tiled backbone matmul)."""
    z = jnp.dot(x_e, prep["bw"], preferred_element_type=jnp.float32) + prep["bb"]
    h = jnp.dot(z.astype(jnp.bfloat16), prep["fw"],
                preferred_element_type=jnp.float32) + prep["fb"]
    h = jnp.maximum(h, 0.0)
    counts = jnp.maximum(jnp.sum(mask_e, axis=1, keepdims=True), 1.0)
    proto = jnp.dot(mask_e, h, preferred_element_type=jnp.float32) / counts
    h_qry = h[ns_pad:ns_pad + nq_pad, :]
    q2 = jnp.sum(h_qry * h_qry, axis=-1, keepdims=True)
    p2 = jnp.sum(proto * proto, axis=-1, keepdims=True)
    qp = jnp.dot(h_qry, proto.T, preferred_element_type=jnp.float32)
    return -jnp.sqrt(jnp.maximum(q2 + p2.T - 2.0 * qp, 0.0))


def _reference_matched(support_images, support_labels, query_images, prep):
    nq = query_images.shape[1]
    x, mask_t, ns_pad, nq_pad = _prepare_episodes(
        support_images, support_labels, query_images, prep["din_pad"])
    outs = [_episode_math_ref(x[e], mask_t[e], prep, ns_pad, nq_pad)
            for e in range(x.shape[0])]
    return jnp.stack(outs, axis=0)[:, :nq, :N_WAY]


def _reference_torch_style(support_images, support_labels, query_images, params):
    """f32, un-fused reference mirroring the PyTorch forward (eval-mode BN)."""
    outs = []
    for i in range(support_images.shape[0]):
        ns = support_images.shape[1]
        nq = query_images.shape[1]
        sup = support_images[i].reshape(ns, -1).astype(jnp.float32)
        qry = query_images[i].reshape(nq, -1).astype(jnp.float32)
        z_sup = sup @ params["bw"] + params["bb"]
        z_qry = qry @ params["bw"] + params["bb"]

        def head(z):
            zn = (z - params["rmean"]) * jax.lax.rsqrt(params["rvar"] + BN_EPS) \
                 * params["gamma"] + params["beta"]
            return jnp.maximum(zn @ params["fw"] + params["fb"], 0.0)

        h_sup, h_qry = head(z_sup), head(z_qry)
        protos = []
        for c in range(N_WAY):
            m = (support_labels[i] == c)
            protos.append(jnp.sum(h_sup * m[:, None], axis=0)
                          / jnp.maximum(jnp.sum(m), 1))
        proto = jnp.stack(protos, axis=0)
        d = jnp.sqrt(jnp.maximum(
            jnp.sum((h_qry[:, None, :] - proto[None, :, :]) ** 2, axis=-1), 0.0))
        outs.append(-d)
    return jnp.stack(outs, axis=0)


# --------------------------------------------------------------------------- #
if __name__ == "__main__":
    key = jax.random.PRNGKey(0)
    ks = jax.random.split(key, 10)

    # small, module-consistent shapes: 2 episodes, 4 support / 3 query images
    E, Ns, Nq, C, H, W = 2, 4, 3, 4, 16, 16
    Din = C * H * W  # 1024 -> two K-tiles of 512 (exercises the accumulator path)

    support_images = jax.random.normal(ks[0], (E, Ns, C, H, W), jnp.float32)
    query_images = jax.random.normal(ks[1], (E, Nq, C, H, W), jnp.float32)
    support_labels = jnp.array([[0, 1, 0, 1], [1, 1, 0, 0]], jnp.int32)

    params = {
        # synthetic backbone: Linear(Din, 1000)
        "bw": 0.02 * jax.random.normal(ks[2], (Din, FEAT), jnp.float32),
        "bb": 0.01 * jax.random.normal(ks[3], (1, FEAT), jnp.float32),
        # BatchNorm1d(1000) params + running stats (deterministic, non-trivial)
        "gamma": 1.0 + 0.1 * jax.random.uniform(ks[4], (1, FEAT), jnp.float32),
        "beta": 0.05 * jax.random.normal(ks[5], (1, FEAT), jnp.float32),
        "rmean": 0.1 * jax.random.normal(ks[6], (1, FEAT), jnp.float32),
        "rvar": 1.0 + 0.1 * jax.random.uniform(ks[7], (1, FEAT), jnp.float32),
        # fc1: Linear(1000, 100)
        "fw": 0.05 * jax.random.normal(ks[8], (FEAT, HID), jnp.float32),
        "fb": 0.01 * jax.random.normal(ks[9], (1, HID), jnp.float32),
    }

    prep = fold_and_pad_params(params)

    scores = prototypical_forward(support_images, support_labels, query_images, prep)
    scores = jax.block_until_ready(scores)

    ref_matched = _reference_matched(support_images, support_labels, query_images, prep)
    ref_torch = _reference_torch_style(support_images, support_labels, query_images, params)

    assert scores.shape == (E, Nq, N_WAY), scores.shape
    assert scores.dtype == jnp.float32
    assert bool(jnp.all(jnp.isfinite(scores)))
    # tight: same numerics (bf16 weights, folded BN, padded rows) outside Pallas
    assert bool(jnp.allclose(scores, ref_matched, rtol=1e-3, atol=1e-3)), (scores, ref_matched)
    # loose: against the f32 un-fused torch-style math (bf16 weight rounding)
    assert bool(jnp.allclose(scores, ref_torch, rtol=5e-2, atol=5e-2)), (scores, ref_torch)

    print("KERNEL_OK")
</pallas_src>

<mosaic_0001>
module attributes {stable_mosaic.version = 11 : i64} {
  func.func @proto_kernel(%arg0: i32, %arg1: i32, %arg2: memref<1x16x512xbf16, #tpu.memory_space<vmem>>, %arg3: memref<1x128x16xf32, #tpu.memory_space<vmem>>, %arg4: memref<512x1024xbf16, #tpu.memory_space<vmem>>, %arg5: memref<1x1024xf32, #tpu.memory_space<vmem>>, %arg6: memref<1024x128xbf16, #tpu.memory_space<vmem>>, %arg7: memref<1x128xf32, #tpu.memory_space<vmem>>, %arg8: memref<1x8x128xf32, #tpu.memory_space<vmem>>, %arg9: memref<16x1024xf32, #tpu.memory_space<vmem>>) attributes {dimension_semantics = [#tpu.dimension_semantics<parallel>, #tpu.dimension_semantics<arbitrary>], iteration_bounds = array<i64: 2, 2>, scalar_prefetch = 0 : i64, scratch_operands = 1 : i64, tpu.core_type = #tpu.core_type<tc>, window_params = [{transform_indices = @transform_0, window_bounds = array<i64: 1, 16, 512>}, {transform_indices = @transform_1, window_bounds = array<i64: 1, 128, 16>}, {transform_indices = @transform_2, window_bounds = array<i64: 512, 1024>}, {pipeline_mode = #tpu.pipeline_mode<synchronous>, transform_indices = @transform_3, window_bounds = array<i64: 1, 1024>}, {pipeline_mode = #tpu.pipeline_mode<synchronous>, transform_indices = @transform_4, window_bounds = array<i64: 1024, 128>}, {pipeline_mode = #tpu.pipeline_mode<synchronous>, transform_indices = @transform_5, window_bounds = array<i64: 1, 128>}, {transform_indices = @transform_6, window_bounds = array<i64: 1, 8, 128>}]} {
    %c0_i32 = arith.constant 0 : i32
    %0 = arith.cmpi eq, %arg1, %c0_i32 : i32
    %1 = arith.extui %0 : i1 to i32
    %c0_i32_0 = arith.constant 0 : i32
    %2 = arith.cmpi ne, %1, %c0_i32_0 : i32
    scf.if %2 {
      %cst_10 = arith.constant 0.000000e+00 : f32
      %13 = vector.broadcast %cst_10 : f32 to vector<16x1024xf32>
      %c0_11 = arith.constant 0 : index
      %c0_12 = arith.constant 0 : index
      %14 = vector.load %arg9[%c0_11, %c0_12] : memref<16x1024xf32, #tpu.memory_space<vmem>>, vector<16x1024xf32>
      tpu.vector_store %arg9[%c0_11, %c0_12], %13 {strides = array<i32>} : memref<16x1024xf32, #tpu.memory_space<vmem>>, vector<16x1024xf32>,
    } else {
    }
    %c0 = arith.constant 0 : index
    %c0_1 = arith.constant 0 : index
    %3 = vector.load %arg9[%c0, %c0_1] : memref<16x1024xf32, #tpu.memory_space<vmem>>, vector<16x1024xf32>
    %c0_2 = arith.constant 0 : index
    %c0_3 = arith.constant 0 : index
    %c0_4 = arith.constant 0 : index
    %4 = vector.load %arg2[%c0_2, %c0_3, %c0_4] : memref<1x16x512xbf16, #tpu.memory_space<vmem>>, vector<1x16x512xbf16>
    %5 = vector.shape_cast %4 : vector<1x16x512xbf16> to vector<16x512xbf16>
    %c0_5 = arith.constant 0 : index
    %c0_6 = arith.constant 0 : index
    %6 = vector.load %arg4[%c0_5, %c0_6] : memref<512x1024xbf16, #tpu.memory_space<vmem>>, vector<512x1024xbf16>
    %cst = arith.constant dense<0.000000e+00> : vector<16x1024xf32>
    %7 = tpu.matmul %5, %6, %cst {dimension_numbers = #tpu.dot_dimension_numbers<[1], [0], [0], [1], [0, 0, 1, 1], [], []>} : vector<16x512xbf16>, vector<512x1024xbf16>, vector<16x1024xf32> -> vector<16x1024xf32>
    %8 = arith.addf %3, %7 : vector<16x1024xf32>
    %c0_7 = arith.constant 0 : index
    %c0_8 = arith.constant 0 : index
    %9 = vector.load %arg9[%c0_7, %c0_8] : memref<16x1024xf32, #tpu.memory_space<vmem>>, vector<16x1024xf32>
    tpu.vector_store %arg9[%c0_7, %c0_8], %8 {strides = array<i32>} : memref<16x1024xf32, #tpu.memory_space<vmem>>, vector<16x1024xf32>,
    %c1_i32 = arith.constant 1 : i32
    %10 = arith.cmpi eq, %arg1, %c1_i32 : i32
    %11 = arith.extui %10 : i1 to i32
    %c0_i32_9 = arith.constant 0 : i32
    %12 = arith.cmpi ne, %11, %c0_i32_9 : i32
    scf.if %12 {
      %c0_10 = arith.constant 0 : index
      %c0_11 = arith.constant 0 : index
      %13 = vector.load %arg9[%c0_10, %c0_11] : memref<16x1024xf32, #tpu.memory_space<vmem>>, vector<16x1024xf32>
      %c0_12 = arith.constant 0 : index
      %c0_13 = arith.constant 0 : index
      %14 = vector.load %arg5[%c0_12, %c0_13] : memref<1x1024xf32, #tpu.memory_space<vmem>>, vector<1x1024xf32>
      %15 = vector.broadcast %14 : vector<1x1024xf32> to vector<16x1024xf32>
      %16 = arith.addf %13, %15 : vector<16x1024xf32>
      %17 = arith.truncf %16 : vector<16x1024xf32> to vector<16x1024xbf16>
      %c0_14 = arith.constant 0 : index
      %c0_15 = arith.constant 0 : index
      %18 = vector.load %arg6[%c0_14, %c0_15] : memref<1024x128xbf16, #tpu.memory_space<vmem>>, vector<1024x128xbf16>
      %cst_16 = arith.constant dense<0.000000e+00> : vector<16x128xf32>
      %19 = tpu.matmul %17, %18, %cst_16 {dimension_numbers = #tpu.dot_dimension_numbers<[1], [0], [0], [1], [0, 0, 1, 1], [], []>} : vector<16x1024xbf16>, vector<1024x128xbf16>, vector<16x128xf32> -> vector<16x128xf32>
      %c0_17 = arith.constant 0 : index
      %c0_18 = arith.constant 0 : index
      %20 = vector.load %arg7[%c0_17, %c0_18] : memref<1x128xf32, #tpu.memory_space<vmem>>, vector<1x128xf32>
      %21 = vector.broadcast %20 : vector<1x128xf32> to vector<16x128xf32>
      %22 = arith.addf %19, %21 : vector<16x128xf32>
      %cst_19 = arith.constant 0.000000e+00 : f32
      %23 = vector.broadcast %cst_19 : f32 to vector<16x128xf32>
      %24 = arith.maximumf %22, %23 : vector<16x128xf32>
      %c0_20 = arith.constant 0 : index
      %c0_21 = arith.constant 0 : index
      %c0_22 = arith.constant 0 : index
      %25 = vector.load %arg3[%c0_20, %c0_21, %c0_22] : memref<1x128x16xf32, #tpu.memory_space<vmem>>, vector<1x128x16xf32>
      %26 = vector.shape_cast %25 : vector<1x128x16xf32> to vector<128x16xf32>
      %cst_23 = arith.constant dense<0.000000e+00> : vector<128xf32>
      %27 = vector.multi_reduction <add>, %26, %cst_23 [1] : vector<128x16xf32> to vector<128xf32>
      %28 = vector.shape_cast %27 : vector<128xf32> to vector<128x1xf32>
      %cst_24 = arith.constant 1.000000e+00 : f32
      %29 = vector.broadcast %cst_24 : f32 to vector<128x1xf32>
      %30 = arith.maximumf %28, %29 : vector<128x1xf32>
      %cst_25 = arith.constant dense<0.000000e+00> : vector<128x128xf32>
      %31 = tpu.matmul %26, %24, %cst_25 {dimension_numbers = #tpu.dot_dimension_numbers<[1], [0], [0], [1], [0, 0, 1, 1], [], []>} : vector<128x16xf32>, vector<16x128xf32>, vector<128x128xf32> -> vector<128x128xf32>
      %32 = vector.broadcast %30 : vector<128x1xf32> to vector<128x128xf32>
      %33 = arith.divf %31, %32 : vector<128x128xf32>
      %34 = vector.extract_strided_slice %24 {offsets = [8, 0], sizes = [8, 128], strides = [1, 1]} : vector<16x128xf32> to vector<8x128xf32>
      %35 = arith.mulf %34, %34 : vector<8x128xf32>
      %cst_26 = arith.constant dense<0.000000e+00> : vector<8xf32>
      %36 = vector.multi_reduction <add>, %35, %cst_26 [1] : vector<8x128xf32> to vector<8xf32>
      %37 = vector.shape_cast %36 : vector<8xf32> to vector<8x1xf32>
      %38 = arith.mulf %33, %33 : vector<128x128xf32>
      %cst_27 = arith.constant dense<0.000000e+00> : vector<128xf32>
      %39 = vector.multi_reduction <add>, %38, %cst_27 [1] : vector<128x128xf32> to vector<128xf32>
      %40 = vector.shape_cast %39 : vector<128xf32> to vector<128x1xf32>
      %41 = tpu.transpose %33, [1, 0] : vector<128x128xf32> -> vector<128x128xf32>
      %cst_28 = arith.constant dense<0.000000e+00> : vector<8x128xf32>
      %42 = tpu.matmul %34, %41, %cst_28 {dimension_numbers = #tpu.dot_dimension_numbers<[1], [0], [0], [1], [0, 0, 1, 1], [], []>} : vector<8x128xf32>, vector<128x128xf32>, vector<8x128xf32> -> vector<8x128xf32>
      %43 = tpu.transpose %40, [1, 0] : vector<128x1xf32> -> vector<1x128xf32>
      %44 = vector.broadcast %37 : vector<8x1xf32> to vector<8x128xf32>
      %45 = vector.broadcast %43 : vector<1x128xf32> to vector<8x128xf32>
      %46 = arith.addf %44, %45 : vector<8x128xf32>
      %cst_29 = arith.constant 2.000000e+00 : f32
      %47 = vector.broadcast %cst_29 : f32 to vector<8x128xf32>
      %48 = arith.mulf %47, %42 : vector<8x128xf32>
      %49 = arith.subf %46, %48 : vector<8x128xf32>
      %cst_30 = arith.constant 0.000000e+00 : f32
      %50 = vector.broadcast %cst_30 : f32 to vector<8x128xf32>
      %51 = arith.maximumf %49, %50 : vector<8x128xf32>
      %52 = math.sqrt %51 : vector<8x128xf32>
      %cst_31 = arith.constant 0.000000e+00 : f32
      %53 = vector.broadcast %cst_31 : f32 to vector<8x128xf32>
      %54 = arith.subf %53, %52 : vector<8x128xf32>
      %c0_32 = arith.constant 0 : index
      %c0_33 = arith.constant 0 : index
      %c0_34 = arith.constant 0 : index
      %55 = vector.load %arg8[%c0_32, %c0_33, %c0_34] : memref<1x8x128xf32, #tpu.memory_space<vmem>>, vector<1x8x128xf32>
      %56 = vector.shape_cast %55 : vector<1x8x128xf32> to vector<8x128xf32>
      %57 = vector.shape_cast %54 : vector<8x128xf32> to vector<1x8x128xf32>
      tpu.vector_store %arg8[%c0_32, %c0_33, %c0_34], %57 {strides = array<i32>} : memref<1x8x128xf32, #tpu.memory_space<vmem>>, vector<1x8x128xf32>,
    } else {
    }
    return
  }
  func.func @transform_0(%arg0: i32, %arg1: i32) -> (i32, i32, i32) {
    %c0_i32 = arith.constant 0 : i32
    %c0_i32_0 = arith.constant 0 : i32
    return %arg0, %c0_i32, %arg1 : i32, i32, i32
  }
  func.func @transform_1(%arg0: i32, %arg1: i32) -> (i32, i32, i32) {
    %c0_i32 = arith.constant 0 : i32
    %c0_i32_0 = arith.constant 0 : i32
    %c0_i32_1 = arith.constant 0 : i32
    return %arg0, %c0_i32, %c0_i32_0 : i32, i32, i32
  }
  func.func @transform_2(%arg0: i32, %arg1: i32) -> (i32, i32) {
    %c0_i32 = arith.constant 0 : i32
    %c0_i32_0 = arith.constant 0 : i32
    return %arg1, %c0_i32 : i32, i32
  }
  func.func @transform_3(%arg0: i32, %arg1: i32) -> (i32, i32) {
    %c0_i32 = arith.constant 0 : i32
    %c0_i32_0 = arith.constant 0 : i32
    %c0_i32_1 = arith.constant 0 : i32
    return %c0_i32, %c0_i32_0 : i32, i32
  }
  func.func @transform_4(%arg0: i32, %arg1: i32) -> (i32, i32) {
    %c0_i32 = arith.constant 0 : i32
    %c0_i32_0 = arith.constant 0 : i32
    %c0_i32_1 = arith.constant 0 : i32
    return %c0_i32, %c0_i32_0 : i32, i32
  }
  func.func @transform_5(%arg0: i32, %arg1: i32) -> (i32, i32) {
    %c0_i32 = arith.constant 0 : i32
    %c0_i32_0 = arith.constant 0 : i32
    %c0_i32_1 = arith.constant 0 : i32
    return %c0_i32, %c0_i32_0 : i32, i32
  }
  func.func @transform_6(%arg0: i32, %arg1: i32) -> (i32, i32, i32) {
    %c0_i32 = arith.constant 0 : i32
    %c0_i32_0 = arith.constant 0 : i32
    %c0_i32_1 = arith.constant 0 : i32
    return %arg0, %c0_i32, %c0_i32_0 : i32, i32, i32
  }
}

</mosaic_0001>

<llo_original>
// kernel: tpu_custom_call.1
$region0: #{tpu_custom_call.1}
  #allocation0 [shape = 'u32[]', space=smem, size = 0x4, offset = 0x4, fixed_abs, tag = 'smem constant byte address 0x4 - core index']
  #allocation1 [shape = 'u32[144,128]{1,0:T(1,128)}', space=vmem, size = 0x12000, scoped, tag = 'internal scratch']
  #allocation2 [shape = 'f32[16,1024]{1,0:T(8,128)}', space=vmem, size = 0x10000, scoped, tag = 'scratch operand']
  %s0 = inlined_call_operand.hbm [shape: bf16[2,16,1024], index: 0, kind: input, shape index: {}]
  %s1 = inlined_call_operand.vmem [shape: f32[2,128,16], index: 1, kind: input, shape index: {}]
  %s2 = inlined_call_operand.hbm [shape: bf16[1024,1024], index: 2, kind: input, shape index: {}]
  %s3 = inlined_call_operand.hbm [shape: f32[1,1024], index: 3, kind: input, shape index: {}]
  %s4 = inlined_call_operand.hbm [shape: bf16[1024,128], index: 4, kind: input, shape index: {}]
  %s5 = inlined_call_operand.hbm [shape: f32[1,128], index: 5, kind: input, shape index: {}]
  %s6 = inlined_call_operand.hbm [shape: f32[2,8,128], index: 6, kind: output, shape index: {}]
  %s7 = sld [smem:[#allocation0]]
  $region85: #{tpu_custom_call.1} parent=0
    _
  %s9 = ssub.s32 1, %s7
  %s10 = scalar_select 0, %s9, %s7
  $region1: #{tpu_custom_call.1} parent=0
    #allocation3 [shape = 'u8[32768]{0}', space=vmem, size = 0x8000, scoped, tag = 'input window, operand 0']
    #allocation4 [shape = 's32[2]{0}', space=sflag, size = 0x8, scoped, tag = 'scoped memory for tpu_custom_call.1']
    #allocation5 [shape = 's32[2]{0}', space=sflag, size = 0x8, scoped, tag = 'scoped memory for tpu_custom_call.1']
    #allocation6 [shape = 'u8[2097152]{0}', space=vmem, size = 0x200000, scoped, tag = 'input window, operand 2']
    #allocation7 [shape = 's32[2]{0}', space=sflag, size = 0x8, scoped, tag = 'scoped memory for tpu_custom_call.1']
    #allocation8 [shape = 'u8[4096]{0}', space=vmem, size = 0x1000, scoped, tag = 'input window, operand 3, single buffered']
    #allocation9 [shape = 'u8[262144]{0}', space=vmem, size = 0x40000, scoped, tag = 'input window, operand 4, single buffered']
    #allocation10 [shape = 's32[1]{0}', space=sflag, size = 0x4, scoped, tag = 'scoped memory for tpu_custom_call.1']
    #allocation11 [shape = 'u8[512]{0}', space=vmem, size = 0x400, scoped, tag = 'input window, operand 5, single buffered']
    #allocation12 [shape = 'u8[8192]{0}', space=vmem, size = 0x2000, scoped, tag = 'output window, operand 0']
    %11 = vsyncpa [#allocation4], 0
    %s12 = scalar_lea.sflag [#allocation4], 1
    %13 = vsyncpa %s12, 0
    %14 = vsyncpa [#allocation7], 0
    %s15 = scalar_lea.sflag [#allocation7], 1
    %16 = vsyncpa %s15, 0
    %17 = vsyncpa [#allocation10], 0
    %18 = vsyncpa [#allocation5], 0
    %s19 = scalar_lea.sflag [#allocation5], 1
    %20 = vsyncpa %s19, 0
    loop: start=0, step=1, limit=6
    $region2: #{tpu_custom_call.1} parent=1 // loop_pre_header
      _
    $region3: #{tpu_custom_call.1} parent=1 // loop_header
      %s22 = sphi 0, %s26
      %p23 = scmp.ge.s32.totalorder %s22, 6
      %s29 = sphi 0, %s41
      %s30 = sphi 0, %s37
      %s31 = sphi 0, %s29
      %s32 = sphi 0, %s30
      %s33 = sphi 0, %s31
      %s34 = sphi 0, %s32
      %s46 = sphi 0, %s48
      %s49 = sphi 0, %s46
      %s50 = sphi 0, %s49
      %s66 = sphi 0, %s50
      %s72 = sphi 0, %s74
      %s75 = sphi 0, %s72
      %s76 = sphi 0, %s75
      %s92 = sphi 0, %s76
      %s98 = sphi 0, %s100
      %s101 = sphi 0, %s98
      %s102 = sphi 0, %s101
      %s118 = sphi 0, %s102
      %s122 = sphi 0, %s122
      %s124 = sphi 0, %s122
      %s125 = sphi 0, %s124
      %s139 = sphi 0, %s125
      %s143 = sphi 0, %s143
      %s145 = sphi 0, %s143
      %s146 = sphi 0, %s145
      %s160 = sphi 0, %s146
      %s164 = sphi 0, %s164
      %s166 = sphi 0, %s164
      %s167 = sphi 0, %s166
      %s181 = sphi 0, %s167
      %s187 = sphi 0, %s189
      %s190 = sphi 0, %s187
      %s191 = sphi 0, %s190
      %s207 = sphi 0, %s191
    $region4: #{tpu_custom_call.1} parent=1 // loop_header_branch
      %25 = sbr.rel (%p23) target = $region8
    $region5: #{tpu_custom_call.1} parent=1 // loop_body
      %s27 = ssub.s32 %s22, 1
      %s28 = ssub.s32 %s22, 2
      %s35 = sadd.s32 1, %s30
      %p36 = scmp.ge.s32.totalorder %s35, 2
      %s37 = scalar_select %p36, 0, %s35
      %s38 = sadd.s32 1, %s29
      %s39 = scalar_select %p36, %s38, %s29
      %p40 = scmp.ge.s32.totalorder %s39, 2
      %s41 = scalar_select %p40, 0, %s39
      %s42 = ssub.s32 %s29, %s41
      %s43 = ssub.s32 %s30, %s37
      %s44 = sor.u32 %s42, %s43
      %p45 = scmp.eq.s32.totalorder %s44, 0
      %s47 = sadd.s32 %s46, 1
      %s48 = scalar_select %p45, %s46, %s47
      %p51 = pneg %p45
      %p52 = scmp.eq.s32.totalorder %s22, 3
      %p53 = por %p51, %p52
      %p54 = scmp.ne.s32.totalorder %s46, %s49
      %p55 = scmp.eq.s32.totalorder %s22, 0
      %p56 = por %p54, %p55
      %p57 = scmp.ne.s32.totalorder %s46, %s49
      %p58 = scmp.eq.s32.totalorder %s27, 3
      %p59 = por %p57, %p58
      %p60 = scmp.ne.s32.totalorder %s49, %s50
      %p61 = scmp.eq.s32.totalorder %s27, 0
      %p62 = por %p60, %p61
      %p63 = scmp.ne.s32.totalorder %s49, %s50
      %p64 = scmp.eq.s32.totalorder %s28, 3
      %p65 = por %p63, %p64
      %p67 = scmp.ne.s32.totalorder %s50, %s66
      %p68 = scmp.eq.s32.totalorder %s28, 0
      %p69 = por %p67, %p68
      %s70 = ssub.s32 %s29, %s41
      %p71 = scmp.eq.s32.totalorder %s70, 0
      %s73 = sadd.s32 %s72, 1
      %s74 = scalar_select %p71, %s72, %s73
      %p77 = pneg %p71
      %p78 = scmp.eq.s32.totalorder %s22, 3
      %p79 = por %p77, %p78
      %p80 = scmp.ne.s32.totalorder %s72, %s75
      %p81 = scmp.eq.s32.totalorder %s22, 0
      %p82 = por %p80, %p81
      %p83 = scmp.ne.s32.totalorder %s72, %s75
      %p84 = scmp.eq.s32.totalorder %s27, 3
      %p85 = por %p83, %p84
      %p86 = scmp.ne.s32.totalorder %s75, %s76
      %p87 = scmp.eq.s32.totalorder %s27, 0
      %p88 = por %p86, %p87
      %p89 = scmp.ne.s32.totalorder %s75, %s76
      %p90 = scmp.eq.s32.totalorder %s28, 3
      %p91 = por %p89, %p90
      %p93 = scmp.ne.s32.totalorder %s76, %s92
      %p94 = scmp.eq.s32.totalorder %s28, 0
      %p95 = por %p93, %p94
      %s96 = ssub.s32 %s30, %s37
      %p97 = scmp.eq.s32.totalorder %s96, 0
      %s99 = sadd.s32 %s98, 1
      %s100 = scalar_select %p97, %s98, %s99
      %p103 = pneg %p97
      %p104 = scmp.eq.s32.totalorder %s22, 3
      %p105 = por %p103, %p104
      %p106 = scmp.ne.s32.totalorder %s98, %s101
      %p107 = scmp.eq.s32.totalorder %s22, 0
      %p108 = por %p106, %p107
      %p109 = scmp.ne.s32.totalorder %s98, %s101
      %p110 = scmp.eq.s32.totalorder %s27, 3
      %p111 = por %p109, %p110
      %p112 = scmp.ne.s32.totalorder %s101, %s102
      %p113 = scmp.eq.s32.totalorder %s27, 0
      %p114 = por %p112, %p113
      %p115 = scmp.ne.s32.totalorder %s101, %s102
      %p116 = scmp.eq.s32.totalorder %s28, 3
      %p117 = por %p115, %p116
      %p119 = scmp.ne.s32.totalorder %s102, %s118
      %p120 = scmp.eq.s32.totalorder %s28, 0
      %p121 = por %p119, %p120
      %s123 = sadd.s32 %s122, 1
      %p126 = scmp.eq.s32.totalorder %s22, 3
      %p127 = scmp.ne.s32.totalorder %s122, %s124
      %p128 = scmp.eq.s32.totalorder %s22, 0
      %p129 = por %p127, %p128
      %p130 = scmp.ne.s32.totalorder %s122, %s124
      %p131 = scmp.eq.s32.totalorder %s27, 3
      %p132 = por %p130, %p131
      %p133 = scmp.ne.s32.totalorder %s124, %s125
      %p134 = scmp.eq.s32.totalorder %s27, 0
      %p135 = por %p133, %p134
      %p136 = scmp.ne.s32.totalorder %s124, %s125
      %p137 = scmp.eq.s32.totalorder %s28, 3
      %p138 = por %p136, %p137
      %p140 = scmp.ne.s32.totalorder %s125, %s139
      %p141 = scmp.eq.s32.totalorder %s28, 0
      %p142 = por %p140, %p141
      %s144 = sadd.s32 %s143, 1
      %p147 = scmp.eq.s32.totalorder %s22, 3
      %p148 = scmp.ne.s32.totalorder %s143, %s145
      %p149 = scmp.eq.s32.totalorder %s22, 0
      %p150 = por %p148, %p149
      %p151 = scmp.ne.s32.totalorder %s143, %s145
      %p152 = scmp.eq.s32.totalorder %s27, 3
      %p153 = por %p151, %p152
      %p154 = scmp.ne.s32.totalorder %s145, %s146
      %p155 = scmp.eq.s32.totalorder %s27, 0
      %p156 = por %p154, %p155
      %p157 = scmp.ne.s32.totalorder %s145, %s146
      %p158 = scmp.eq.s32.totalorder %s28, 3
      %p159 = por %p157, %p158
      %p161 = scmp.ne.s32.totalorder %s146, %s160
      %p162 = scmp.eq.s32.totalorder %s28, 0
      %p163 = por %p161, %p162
      %s165 = sadd.s32 %s164, 1
      %p168 = scmp.eq.s32.totalorder %s22, 3
      %p169 = scmp.ne.s32.totalorder %s164, %s166
      %p170 = scmp.eq.s32.totalorder %s22, 0
      %p171 = por %p169, %p170
      %p172 = scmp.ne.s32.totalorder %s164, %s166
      %p173 = scmp.eq.s32.totalorder %s27, 3
      %p174 = por %p172, %p173
      %p175 = scmp.ne.s32.totalorder %s166, %s167
      %p176 = scmp.eq.s32.totalorder %s27, 0
      %p177 = por %p175, %p176
      %p178 = scmp.ne.s32.totalorder %s166, %s167
      %p179 = scmp.eq.s32.totalorder %s28, 3
      %p180 = por %p178, %p179
      %p182 = scmp.ne.s32.totalorder %s167, %s181
      %p183 = scmp.eq.s32.totalorder %s28, 0
      %p184 = por %p182, %p183
      %s185 = ssub.s32 %s29, %s41
      %p186 = scmp.eq.s32.totalorder %s185, 0
      %s188 = sadd.s32 %s187, 1
      %s189 = scalar_select %p186, %s187, %s188
      %p192 = pneg %p186
      %p193 = scmp.eq.s32.totalorder %s22, 3
      %p194 = por %p192, %p193
      %p195 = scmp.ne.s32.totalorder %s187, %s190
      %p196 = scmp.eq.s32.totalorder %s22, 0
      %p197 = por %p195, %p196
      %p198 = scmp.ne.s32.totalorder %s187, %s190
      %p199 = scmp.eq.s32.totalorder %s27, 3
      %p200 = por %p198, %p199
      %p201 = scmp.ne.s32.totalorder %s190, %s191
      %p202 = scmp.eq.s32.totalorder %s27, 0
      %p203 = por %p201, %p202
      %p204 = scmp.ne.s32.totalorder %s190, %s191
      %p205 = scmp.eq.s32.totalorder %s28, 3
      %p206 = por %p204, %p205
      %p208 = scmp.ne.s32.totalorder %s191, %s207
      %p209 = scmp.eq.s32.totalorder %s28, 0
      %p210 = por %p208, %p209
      %p211 = scmp.le.s32.totalorder 1, %s22
      %p212 = scmp.lt.s32.totalorder %s22, 5
      %p213 = pnand %p211, %p212
      %p214 = pneg %p213
      // Predicated region
      $region9: #{tpu_custom_call.1} parent=5 // pred_check
        _
      $region10: #{tpu_custom_call.1} parent=5 // pred_check_branch
        %216 = sbr.rel (%p213) target = $region12
      $region11: #{tpu_custom_call.1} parent=5 // pred_region
        %s217 = ssub.s32 %s22, 1
        // Predicated region
        $region13: #{tpu_custom_call.1} parent=11 // pred_check
          %p218 = pneg %p135
        $region14: #{tpu_custom_call.1} parent=11 // pred_check_branch
          %220 = sbr.rel (%p218) target = $region16
        $region15: #{tpu_custom_call.1} parent=11 // pred_region
          %s222 = ssub.s32 128, 128
          %223 = vsyncadd [#allocation7], %s222
          %s225 = sshll.u32 [#allocation8], 4
          %s226 = int_to_ptr.vmem [resolvable:$true] %s225
          %228 = dma.hbm_to_vmem [thread:$0]  %s3, 128, %s226, [#allocation7]
        $region16: #{tpu_custom_call.1} parent=11 // pred_fallthru
          _
        // Predicated region
        $region17: #{tpu_custom_call.1} parent=11 // pred_check
          %p229 = pneg %p156
        $region18: #{tpu_custom_call.1} parent=11 // pred_check_branch
          %231 = sbr.rel (%p229) target = $region20
        $region19: #{tpu_custom_call.1} parent=11 // pred_region
          %s233 = ssub.s32 8192, 8192
          %234 = vsyncadd [#allocation10], %s233
          %s235 = sshll.u32 [#allocation9], 4
          %s236 = int_to_ptr.vmem [resolvable:$true] %s235
          %241 = dma.hbm_to_vmem [thread:$0]  %s4, 8192, %s236, [#allocation10], 64, 64, 4
        $region20: #{tpu_custom_call.1} parent=11 // pred_fallthru
          _
        // Predicated region
        $region21: #{tpu_custom_call.1} parent=11 // pred_check
          %p242 = pneg %p177
        $region22: #{tpu_custom_call.1} parent=11 // pred_check_branch
          %244 = sbr.rel (%p242) target = $region24
        $region23: #{tpu_custom_call.1} parent=11 // pred_region
          %s246 = ssub.s32 16, 16
          %247 = vsyncadd [#allocation10], %s246
          %s249 = sshll.u32 [#allocation11], 4
          %s250 = int_to_ptr.vmem [resolvable:$true] %s249
          %252 = dma.hbm_to_vmem [thread:$0]  %s5, 16, %s250, [#allocation10]
        $region24: #{tpu_custom_call.1} parent=11 // pred_fallthru
          _
      $region12: #{tpu_custom_call.1} parent=5 // pred_fallthru
        _
      %p253 = scmp.lt.s32.totalorder %s22, 4
      // Predicated region
      $region25: #{tpu_custom_call.1} parent=5 // pred_check
        %p254 = pneg %p253
      $region26: #{tpu_custom_call.1} parent=5 // pred_check_branch
        %256 = sbr.rel (%p254) target = $region28
      $region27: #{tpu_custom_call.1} parent=5 // pred_region
        // Predicated region
        $region29: #{tpu_custom_call.1} parent=27 // pred_check
          %p257 = pneg %p56
        $region30: #{tpu_custom_call.1} parent=27 // pred_check_branch
          %259 = sbr.rel (%p257) target = $region32
        $region31: #{tpu_custom_call.1} parent=27 // pred_region
          %s260 = sand.u32 %s46, 1
          %s261 = scalar_lea.sflag [#allocation4], %s260
          %s262 = sand.u32 %s46, 1
          %s263 = smul.addr %s262, 32
          %s264 = scalar_lea.vmem [#allocation3], %s263
          %s265 = smul.u32 4, %s30
          %s267 = ssub.s32 512, 512
          %268 = vsyncadd %s261, %s267
          %s269 = smul.addr %s29, 16
          %s270 = sadd.s32 %s265, %s269
          %s271 = smul.addr %s270, 64
          %s272 = scalar_lea.hbm %s0, %s271
          %s273 = sshll.u32 %s264, 4
          %s274 = int_to_ptr.vmem [resolvable:$true] %s273
          %279 = dma.hbm_to_vmem [thread:$0]  %s272, 512, %s274, %s261, 512, 256, 16
        $region32: #{tpu_custom_call.1} parent=27 // pred_fallthru
          _
        // Predicated region
        $region33: #{tpu_custom_call.1} parent=27 // pred_check
          %p280 = pneg %p82
        $region34: #{tpu_custom_call.1} parent=27 // pred_check_branch
          %282 = sbr.rel (%p280) target = $region36
        $region35: #{tpu_custom_call.1} parent=27 // pred_region
          %p283 = scmp.lt.s32.totalorder %s29, 1
          %s284 = scalar_select %p283, %s29, 1
          %s285 = smul.addr %s284, 16
          %s286 = smul.addr %s285, 8
          %s287 = scalar_lea.vmem %s1, %s286
        $region36: #{tpu_custom_call.1} parent=27 // pred_fallthru
          _
        // Predicated region
        $region37: #{tpu_custom_call.1} parent=27 // pred_check
          %p288 = pneg %p108
        $region38: #{tpu_custom_call.1} parent=27 // pred_check_branch
          %290 = sbr.rel (%p288) target = $region40
        $region39: #{tpu_custom_call.1} parent=27 // pred_region
          %s291 = sand.u32 %s22, 1
          %s292 = scalar_lea.sflag [#allocation7], %s291
          %s293 = sand.u32 %s98, 1
          %s294 = smul.addr %s293, 2048
          %s295 = scalar_lea.vmem [#allocation6], %s294
          %s296 = smul.u32 64, %s30
          %s298 = ssub.s32 32768, 32768
          %299 = vsyncadd %s292, %s298
          %s300 = smul.addr %s296, 8
          %s301 = smul.addr %s300, 64
          %s302 = scalar_lea.hbm %s2, %s301
          %s303 = sshll.u32 %s295, 4
          %s304 = int_to_ptr.vmem [resolvable:$true] %s303
          %309 = dma.hbm_to_vmem [thread:$0]  %s302, 32768, %s304, %s292, 512, 512, 32
        $region40: #{tpu_custom_call.1} parent=27 // pred_fallthru
          _
      $region28: #{tpu_custom_call.1} parent=5 // pred_fallthru
        _
      %p310 = scmp.le.s32.totalorder 1, %s22
      %p311 = scmp.lt.s32.totalorder %s22, 5
      %p312 = pnand %p310, %p311
      %p313 = pneg %p312
      // Predicated region
      $region41: #{tpu_custom_call.1} parent=5 // pred_check
        _
      $region42: #{tpu_custom_call.1} parent=5 // pred_check_branch
        %315 = sbr.rel (%p312) target = $region44
      $region43: #{tpu_custom_call.1} parent=5 // pred_region
        %s316 = ssub.s32 %s22, 1
        %s317 = sand.u32 %s49, 1
        %s318 = scalar_lea.sflag [#allocation4], %s317
        %s319 = sand.u32 %s49, 1
        %s320 = smul.addr %s319, 32
        %s321 = scalar_lea.vmem [#allocation3], %s320
        // Predicated region
        $region45: #{tpu_custom_call.1} parent=43 // pred_check
          %p322 = pneg %p62
        $region46: #{tpu_custom_call.1} parent=43 // pred_check_branch
          %324 = sbr.rel (%p322) target = $region48
        $region47: #{tpu_custom_call.1} parent=43 // pred_region
          %325 = dma.done %s318, 512
        $region48: #{tpu_custom_call.1} parent=43 // pred_fallthru
          _
        %s326 = sand.u32 %s27, 1
        %s327 = scalar_lea.sflag [#allocation7], %s326
        %s328 = sand.u32 %s101, 1
        %s329 = smul.addr %s328, 2048
        %s330 = scalar_lea.vmem [#allocation6], %s329
        // Predicated region
        $region49: #{tpu_custom_call.1} parent=43 // pred_check
          %p331 = pneg %p114
        $region50: #{tpu_custom_call.1} parent=43 // pred_check_branch
          %333 = sbr.rel (%p331) target = $region52
        $region51: #{tpu_custom_call.1} parent=43 // pred_region
          %334 = dma.done %s327, 32768
        $region52: #{tpu_custom_call.1} parent=43 // pred_fallthru
          _
        // Predicated region
        $region53: #{tpu_custom_call.1} parent=43 // pred_check
          %p335 = pneg %p135
        $region54: #{tpu_custom_call.1} parent=43 // pred_check_branch
          %337 = sbr.rel (%p335) target = $region56
        $region55: #{tpu_custom_call.1} parent=43 // pred_region
          %338 = dma.done [#allocation7], 128
        $region56: #{tpu_custom_call.1} parent=43 // pred_fallthru
          _
        // Predicated region
        $region57: #{tpu_custom_call.1} parent=43 // pred_check
          %p339 = pneg %p156
        $region58: #{tpu_custom_call.1} parent=43 // pred_check_branch
          %341 = sbr.rel (%p339) target = $region60
        $region59: #{tpu_custom_call.1} parent=43 // pred_region
          %342 = dma.done [#allocation10], 8192
        $region60: #{tpu_custom_call.1} parent=43 // pred_fallthru
          _
        // Predicated region
        $region61: #{tpu_custom_call.1} parent=43 // pred_check
          %p343 = pneg %p177
        $region62: #{tpu_custom_call.1} parent=43 // pred_check_branch
          %345 = sbr.rel (%p343) target = $region64
        $region63: #{tpu_custom_call.1} parent=43 // pred_region
          %346 = dma.done [#allocation10], 16
        $region64: #{tpu_custom_call.1} parent=43 // pred_fallthru
          _
        %s347 = sand.u32 %s49, 1
        %s348 = scalar_lea.sflag [#allocation4], %s347
        %s349 = sand.u32 %s49, 1
        %s350 = smul.addr %s349, 32
        %s351 = scalar_lea.vmem [#allocation3], %s350
        %p352 = pneg %p62
        %p353 = pneg %p59
        %p354 = scmp.lt.s32.totalorder %s31, 1
        %s355 = scalar_select %p354, %s31, 1
        %s356 = smul.addr %s355, 16
        %s357 = smul.addr %s356, 8
        %s358 = scalar_lea.vmem %s1, %s357
        %p359 = pneg %p88
        %p360 = pneg %p85
        %s361 = sand.u32 %s27, 1
        %s362 = scalar_lea.sflag [#allocation7], %s361
        %s363 = sand.u32 %s101, 1
        %s364 = smul.addr %s363, 2048
        %s365 = scalar_lea.vmem [#allocation6], %s364
        %p366 = pneg %p114
        %p367 = pneg %p111
        %p368 = pneg %p135
        %p369 = pneg %p132
        %p370 = pneg %p156
        %p371 = pneg %p153
        %p372 = pneg %p177
        %p373 = pneg %p174
        %p374 = pneg %p203
        %p375 = pneg %p200
        %s376 = sand.u32 %s190, 1
        %s377 = scalar_lea.sflag [#allocation5], %s376
        %s378 = sand.u32 %s190, 1
        %s379 = smul.addr %s378, 8
        %s380 = scalar_lea.vmem [#allocation12], %s379
        %s381 = smul.u32 4, %s32
        %p382 = scmp.lt.s32.totalorder %s31, 1
        %s383 = scalar_select %p382, %s31, 1
        %s384 = smul.addr %s383, 16
        %s385 = smul.addr %s384, 8
        %s386 = scalar_lea.vmem %s1, %s385
        %s387 = smul.u32 64, %s32
        %p389 = scmp.eq.s32.totalorder %s32, 0
        // Predicated region
        $region65: #{tpu_custom_call.1} parent=43 // pred_check
          %p390 = pneg %p389
        $region66: #{tpu_custom_call.1} parent=43 // pred_check_branch
          %392 = sbr.rel (%p390) target = $region68
        $region67: #{tpu_custom_call.1} parent=43 // pred_region
          %393 = vst [vmem:[#allocation2] sm:$0xff] 0.0
          %394 = vst [vmem:[#allocation2 + $0x8] sm:$0xff] 0.0
          %395 = vst [vmem:[#allocation2 + $0x10] sm:$0xff] 0.0
          %396 = vst [vmem:[#allocation2 + $0x18] sm:$0xff] 0.0
          %397 = vst [vmem:[#allocation2 + $0x20] sm:$0xff] 0.0
          %398 = vst [vmem:[#allocation2 + $0x28] sm:$0xff] 0.0
          %399 = vst [vmem:[#allocation2 + $0x30] sm:$0xff] 0.0
          %400 = vst [vmem:[#allocation2 + $0x38] sm:$0xff] 0.0
          %401 = vst [vmem:[#allocation2 + $0x40] sm:$0xff] 0.0
          %402 = vst [vmem:[#allocation2 + $0x48] sm:$0xff] 0.0
          %403 = vst [vmem:[#allocation2 + $0x50] sm:$0xff] 0.0
          %404 = vst [vmem:[#allocation2 + $0x58] sm:$0xff] 0.0
          %405 = vst [vmem:[#allocation2 + $0x60] sm:$0xff] 0.0
          %406 = vst [vmem:[#allocation2 + $0x68] sm:$0xff] 0.0
          %407 = vst [vmem:[#allocation2 + $0x70] sm:$0xff] 0.0
          %408 = vst [vmem:[#allocation2 + $0x78] sm:$0xff] 0.0
        $region68: #{tpu_custom_call.1} parent=43 // pred_fallthru
          _
        %v409 = vld [vmem:[#allocation2] sm:$0xff]
        %v410 = vld [vmem:[#allocation2 + $0x8] sm:$0xff]
        %v411 = vld [vmem:[#allocation2 + $0x10] sm:$0xff]
        %v412 = vld [vmem:[#allocation2 + $0x18] sm:$0xff]
        %v413 = vld [vmem:[#allocation2 + $0x20] sm:$0xff]
        %v414 = vld [vmem:[#allocation2 + $0x28] sm:$0xff]
        %v415 = vld [vmem:[#allocation2 + $0x30] sm:$0xff]
        %v416 = vld [vmem:[#allocation2 + $0x38] sm:$0xff]
        %v417 = vld [vmem:[#allocation2 + $0x40] sm:$0xff]
        %v418 = vld [vmem:[#allocation2 + $0x48] sm:$0xff]
        %v419 = vld [vmem:[#allocation2 + $0x50] sm:$0xff]
        %v420 = vld [vmem:[#allocation2 + $0x58] sm:$0xff]
        %v421 = vld [vmem:[#allocation2 + $0x60] sm:$0xff]
        %v422 = vld [vmem:[#allocation2 + $0x68] sm:$0xff]
        %v423 = vld [vmem:[#allocation2 + $0x70] sm:$0xff]
        %v424 = vld [vmem:[#allocation2 + $0x78] sm:$0xff]
        %v425 = vld [vmem:[%s321] sm:$0xff]
        %v426 = vld [vmem:[%s321 + $0x8] sm:$0xff]
        %v427 = vld [vmem:[%s321 + $0x10] sm:$0xff]
        %v428 = vld [vmem:[%s321 + $0x18] sm:$0xff]
        %v429 = vld [vmem:[%s330] sm:$0xff]
        %v430 = vld [vmem:[%s330 + $0x8] sm:$0xff]
        %v431 = vld [vmem:[%s330 + $0x10] sm:$0xff]
        %v432 = vld [vmem:[%s330 + $0x18] sm:$0xff]
        %v433 = vld [vmem:[%s330 + $0x20] sm:$0xff]
        %v434 = vld [vmem:[%s330 + $0x28] sm:$0xff]
        %v435 = vld [vmem:[%s330 + $0x30] sm:$0xff]
        %v436 = vld [vmem:[%s330 + $0x38] sm:$0xff]
        %v437 = vld [vmem:[%s330 + $0x40] sm:$0xff]
        %v438 = vld [vmem:[%s330 + $0x48] sm:$0xff]
        %v439 = vld [vmem:[%s330 + $0x50] sm:$0xff]
        %v440 = vld [vmem:[%s330 + $0x58] sm:$0xff]
        %v441 = vld [vmem:[%s330 + $0x60] sm:$0xff]
        %v442 = vld [vmem:[%s330 + $0x68] sm:$0xff]
        %v443 = vld [vmem:[%s330 + $0x70] sm:$0xff]
        %v444 = vld [vmem:[%s330 + $0x78] sm:$0xff]
        %v445 = vld [vmem:[%s330 + $0x80] sm:$0xff]
        %v446 = vld [vmem:[%s330 + $0x88] sm:$0xff]
        %v447 = vld [vmem:[%s330 + $0x90] sm:$0xff]
        %v448 = vld [vmem:[%s330 + $0x98] sm:$0xff]
        %v449 = vld [vmem:[%s330 + $0xa0] sm:$0xff]
        %v450 = vld [vmem:[%s330 + $0xa8] sm:$0xff]
        %v451 = vld [vmem:[%s330 + $0xb0] sm:$0xff]
        %v452 = vld [vmem:[%s330 + $0xb8] sm:$0xff]
        %v453 = vld [vmem:[%s330 + $0xc0] sm:$0xff]
        %v454 = vld [vmem:[%s330 + $0xc8] sm:$0xff]
        %v455 = vld [vmem:[%s330 + $0xd0] sm:$0xff]
        %v456 = vld [vmem:[%s330 + $0xd8] sm:$0xff]
        %v457 = vld [vmem:[%s330 + $0xe0] sm:$0xff]
        %v458 = vld [vmem:[%s330 + $0xe8] sm:$0xff]
        %v459 = vld [vmem:[%s330 + $0xf0] sm:$0xff]
        %v460 = vld [vmem:[%s330 + $0xf8] sm:$0xff]
        %v461 = vld [vmem:[%s330 + $0x100] sm:$0xff]
        %v462 = vld [vmem:[%s330 + $0x108] sm:$0xff]
        %v463 = vld [vmem:[%s330 + $0x110] sm:$0xff]
        %v464 = vld [vmem:[%s330 + $0x118] sm:$0xff]
        %v465 = vld [vmem:[%s330 + $0x120] sm:$0xff]
        %v466 = vld [vmem:[%s330 + $0x128] sm:$0xff]
        %v467 = vld [vmem:[%s330 + $0x130] sm:$0xff]
        %v468 = vld [vmem:[%s330 + $0x138] sm:$0xff]
        %v469 = vld [vmem:[%s330 + $0x140] sm:$0xff]
        %v470 = vld [vmem:[%s330 + $0x148] sm:$0xff]
        %v471 = vld [vmem:[%s330 + $0x150] sm:$0xff]
        %v472 = vld [vmem:[%s330 + $0x158] sm:$0xff]
        %v473 = vld [vmem:[%s330 + $0x160] sm:$0xff]
        %v474 = vld [vmem:[%s330 + $0x168] sm:$0xff]
        %v475 = vld [vmem:[%s330 + $0x170] sm:$0xff]
        %v476 = vld [vmem:[%s330 + $0x178] sm:$0xff]
        %v477 = vld [vmem:[%s330 + $0x180] sm:$0xff]
        %v478 = vld [vmem:[%s330 + $0x188] sm:$0xff]
        %v479 = vld [vmem:[%s330 + $0x190] sm:$0xff]
        %v480 = vld [vmem:[%s330 + $0x198] sm:$0xff]
        %v481 = vld [vmem:[%s330 + $0x1a0] sm:$0xff]
        %v482 = vld [vmem:[%s330 + $0x1a8] sm:$0xff]
        %v483 = vld [vmem:[%s330 + $0x1b0] sm:$0xff]
        %v484 = vld [vmem:[%s330 + $0x1b8] sm:$0xff]
        %v485 = vld [vmem:[%s330 + $0x1c0] sm:$0xff]
        %v486 = vld [vmem:[%s330 + $0x1c8] sm:$0xff]
        %v487 = vld [vmem:[%s330 + $0x1d0] sm:$0xff]
        %v488 = vld [vmem:[%s330 + $0x1d8] sm:$0xff]
        %v489 = vld [vmem:[%s330 + $0x1e0] sm:$0xff]
        %v490 = vld [vmem:[%s330 + $0x1e8] sm:$0xff]
        %v491 = vld [vmem:[%s330 + $0x1f0] sm:$0xff]
        %v492 = vld [vmem:[%s330 + $0x1f8] sm:$0xff]
        %v493 = vld [vmem:[%s330 + $0x200] sm:$0xff]
        %v494 = vld [vmem:[%s330 + $0x208] sm:$0xff]
        %v495 = vld [vmem:[%s330 + $0x210] sm:$0xff]
        %v496 = vld [vmem:[%s330 + $0x218] sm:$0xff]
        %v497 = vld [vmem:[%s330 + $0x220] sm:$0xff]
        %v498 = vld [vmem:[%s330 + $0x228] sm:$0xff]
        %v499 = vld [vmem:[%s330 + $0x230] sm:$0xff]
        %v500 = vld [vmem:[%s330 + $0x238] sm:$0xff]
        %v501 = vld [vmem:[%s330 + $0x240] sm:$0xff]
        %v502 = vld [vmem:[%s330 + $0x248] sm:$0xff]
        %v503 = vld [vmem:[%s330 + $0x250] sm:$0xff]
        %v504 = vld [vmem:[%s330 + $0x258] sm:$0xff]
        %v505 = vld [vmem:[%s330 + $0x260] sm:$0xff]
        %v506 = vld [vmem:[%s330 + $0x268] sm:$0xff]
        %v507 = vld [vmem:[%s330 + $0x270] sm:$0xff]
        %v508 = vld [vmem:[%s330 + $0x278] sm:$0xff]
        %v509 = vld [vmem:[%s330 + $0x280] sm:$0xff]
        %v510 = vld [vmem:[%s330 + $0x288] sm:$0xff]
        %v511 = vld [vmem:[%s330 + $0x290] sm:$0xff]
        %v512 = vld [vmem:[%s330 + $0x298] sm:$0xff]
        %v513 = vld [vmem:[%s330 + $0x2a0] sm:$0xff]
        %v514 = vld [vmem:[%s330 + $0x2a8] sm:$0xff]
        %v515 = vld [vmem:[%s330 + $0x2b0] sm:$0xff]
        %v516 = vld [vmem:[%s330 + $0x2b8] sm:$0xff]
        %v517 = vld [vmem:[%s330 + $0x2c0] sm:$0xff]
        %v518 = vld [vmem:[%s330 + $0x2c8] sm:$0xff]
        %v519 = vld [vmem:[%s330 + $0x2d0] sm:$0xff]
        %v520 = vld [vmem:[%s330 + $0x2d8] sm:$0xff]
        %v521 = vld [vmem:[%s330 + $0x2e0] sm:$0xff]
        %v522 = vld [vmem:[%s330 + $0x2e8] sm:$0xff]
        %v523 = vld [vmem:[%s330 + $0x2f0] sm:$0xff]
        %v524 = vld [vmem:[%s330 + $0x2f8] sm:$0xff]
        %v525 = vld [vmem:[%s330 + $0x300] sm:$0xff]
        %v526 = vld [vmem:[%s330 + $0x308] sm:$0xff]
        %v527 = vld [vmem:[%s330 + $0x310] sm:$0xff]
        %v528 = vld [vmem:[%s330 + $0x318] sm:$0xff]
        %v529 = vld [vmem:[%s330 + $0x320] sm:$0xff]
        %v530 = vld [vmem:[%s330 + $0x328] sm:$0xff]
        %v531 = vld [vmem:[%s330 + $0x330] sm:$0xff]
        %v532 = vld [vmem:[%s330 + $0x338] sm:$0xff]
        %v533 = vld [vmem:[%s330 + $0x340] sm:$0xff]
        %v534 = vld [vmem:[%s330 + $0x348] sm:$0xff]
        %v535 = vld [vmem:[%s330 + $0x350] sm:$0xff]
        %v536 = vld [vmem:[%s330 + $0x358] sm:$0xff]
        %v537 = vld [vmem:[%s330 + $0x360] sm:$0xff]
        %v538 = vld [vmem:[%s330 + $0x368] sm:$0xff]
        %v539 = vld [vmem:[%s330 + $0x370] sm:$0xff]
        %v540 = vld [vmem:[%s330 + $0x378] sm:$0xff]
        %v541 = vld [vmem:[%s330 + $0x380] sm:$0xff]
        %v542 = vld [vmem:[%s330 + $0x388] sm:$0xff]
        %v543 = vld [vmem:[%s330 + $0x390] sm:$0xff]
        %v544 = vld [vmem:[%s330 + $0x398] sm:$0xff]
        %v545 = vld [vmem:[%s330 + $0x3a0] sm:$0xff]
        %v546 = vld [vmem:[%s330 + $0x3a8] sm:$0xff]
        %v547 = vld [vmem:[%s330 + $0x3b0] sm:$0xff]
        %v548 = vld [vmem:[%s330 + $0x3b8] sm:$0xff]
        %v549 = vld [vmem:[%s330 + $0x3c0] sm:$0xff]
        %v550 = vld [vmem:[%s330 + $0x3c8] sm:$0xff]
        %v551 = vld [vmem:[%s330 + $0x3d0] sm:$0xff]
        %v552 = vld [vmem:[%s330 + $0x3d8] sm:$0xff]
        %v553 = vld [vmem:[%s330 + $0x3e0] sm:$0xff]
        %v554 = vld [vmem:[%s330 + $0x3e8] sm:$0xff]
        %v555 = vld [vmem:[%s330 + $0x3f0] sm:$0xff]
        %v556 = vld [vmem:[%s330 + $0x3f8] sm:$0xff]
        %v557 = vld [vmem:[%s330 + $0x400] sm:$0xff]
        %v558 = vld [vmem:[%s330 + $0x408] sm:$0xff]
        %v559 = vld [vmem:[%s330 + $0x410] sm:$0xff]
        %v560 = vld [vmem:[%s330 + $0x418] sm:$0xff]
        %v561 = vld [vmem:[%s330 + $0x420] sm:$0xff]
        %v562 = vld [vmem:[%s330 + $0x428] sm:$0xff]
        %v563 = vld [vmem:[%s330 + $0x430] sm:$0xff]
        %v564 = vld [vmem:[%s330 + $0x438] sm:$0xff]
        %v565 = vld [vmem:[%s330 + $0x440] sm:$0xff]
        %v566 = vld [vmem:[%s330 + $0x448] sm:$0xff]
        %v567 = vld [vmem:[%s330 + $0x450] sm:$0xff]
        %v568 = vld [vmem:[%s330 + $0x458] sm:$0xff]
        %v569 = vld [vmem:[%s330 + $0x460] sm:$0xff]
        %v570 = vld [vmem:[%s330 + $0x468] sm:$0xff]
        %v571 = vld [vmem:[%s330 + $0x470] sm:$0xff]
        %v572 = vld [vmem:[%s330 + $0x478] sm:$0xff]
        %v573 = vld [vmem:[%s330 + $0x480] sm:$0xff]
        %v574 = vld [vmem:[%s330 + $0x488] sm:$0xff]
        %v575 = vld [vmem:[%s330 + $0x490] sm:$0xff]
        %v576 = vld [vmem:[%s330 + $0x498] sm:$0xff]
        %v577 = vld [vmem:[%s330 + $0x4a0] sm:$0xff]
        %v578 = vld [vmem:[%s330 + $0x4a8] sm:$0xff]
        %v579 = vld [vmem:[%s330 + $0x4b0] sm:$0xff]
        %v580 = vld [vmem:[%s330 + $0x4b8] sm:$0xff]
        %v581 = vld [vmem:[%s330 + $0x4c0] sm:$0xff]
        %v582 = vld [vmem:[%s330 + $0x4c8] sm:$0xff]
        %v583 = vld [vmem:[%s330 + $0x4d0] sm:$0xff]
        %v584 = vld [vmem:[%s330 + $0x4d8] sm:$0xff]
        %v585 = vld [vmem:[%s330 + $0x4e0] sm:$0xff]
        %v586 = vld [vmem:[%s330 + $0x4e8] sm:$0xff]
        %v587 = vld [vmem:[%s330 + $0x4f0] sm:$0xff]
        %v588 = vld [vmem:[%s330 + $0x4f8] sm:$0xff]
        %v589 = vld [vmem:[%s330 + $0x500] sm:$0xff]
        %v590 = vld [vmem:[%s330 + $0x508] sm:$0xff]
        %v591 = vld [vmem:[%s330 + $0x510] sm:$0xff]
        %v592 = vld [vmem:[%s330 + $0x518] sm:$0xff]
        %v593 = vld [vmem:[%s330 + $0x520] sm:$0xff]
        %v594 = vld [vmem:[%s330 + $0x528] sm:$0xff]
        %v595 = vld [vmem:[%s330 + $0x530] sm:$0xff]
        %v596 = vld [vmem:[%s330 + $0x538] sm:$0xff]
        %v597 = vld [vmem:[%s330 + $0x540] sm:$0xff]
        %v598 = vld [vmem:[%s330 + $0x548] sm:$0xff]
        %v599 = vld [vmem:[%s330 + $0x550] sm:$0xff]
        %v600 = vld [vmem:[%s330 + $0x558] sm:$0xff]
        %v601 = vld [vmem:[%s330 + $0x560] sm:$0xff]
        %v602 = vld [vmem:[%s330 + $0x568] sm:$0xff]
        %v603 = vld [vmem:[%s330 + $0x570] sm:$0xff]
        %v604 = vld [vmem:[%s330 + $0x578] sm:$0xff]
        %v605 = vld [vmem:[%s330 + $0x580] sm:$0xff]
        %v606 = vld [vmem:[%s330 + $0x588] sm:$0xff]
        %v607 = vld [vmem:[%s330 + $0x590] sm:$0xff]
        %v608 = vld [vmem:[%s330 + $0x598] sm:$0xff]
        %v609 = vld [vmem:[%s330 + $0x5a0] sm:$0xff]
        %v610 = vld [vmem:[%s330 + $0x5a8] sm:$0xff]
        %v611 = vld [vmem:[%s330 + $0x5b0] sm:$0xff]
        %v612 = vld [vmem:[%s330 + $0x5b8] sm:$0xff]
        %v613 = vld [vmem:[%s330 + $0x5c0] sm:$0xff]
        %v614 = vld [vmem:[%s330 + $0x5c8] sm:$0xff]
        %v615 = vld [vmem:[%s330 + $0x5d0] sm:$0xff]
        %v616 = vld [vmem:[%s330 + $0x5d8] sm:$0xff]
        %v617 = vld [vmem:[%s330 + $0x5e0] sm:$0xff]
        %v618 = vld [vmem:[%s330 + $0x5e8] sm:$0xff]
        %v619 = vld [vmem:[%s330 + $0x5f0] sm:$0xff]
        %v620 = vld [vmem:[%s330 + $0x5f8] sm:$0xff]
        %v621 = vld [vmem:[%s330 + $0x600] sm:$0xff]
        %v622 = vld [vmem:[%s330 + $0x608] sm:$0xff]
        %v623 = vld [vmem:[%s330 + $0x610] sm:$0xff]
        %v624 = vld [vmem:[%s330 + $0x618] sm:$0xff]
        %v625 = vld [vmem:[%s330 + $0x620] sm:$0xff]
        %v626 = vld [vmem:[%s330 + $0x628] sm:$0xff]
        %v627 = vld [vmem:[%s330 + $0x630] sm:$0xff]
        %v628 = vld [vmem:[%s330 + $0x638] sm:$0xff]
        %v629 = vld [vmem:[%s330 + $0x640] sm:$0xff]
        %v630 = vld [vmem:[%s330 + $0x648] sm:$0xff]
        %v631 = vld [vmem:[%s330 + $0x650] sm:$0xff]
        %v632 = vld [vmem:[%s330 + $0x658] sm:$0xff]
        %v633 = vld [vmem:[%s330 + $0x660] sm:$0xff]
        %v634 = vld [vmem:[%s330 + $0x668] sm:$0xff]
        %v635 = vld [vmem:[%s330 + $0x670] sm:$0xff]
        %v636 = vld [vmem:[%s330 + $0x678] sm:$0xff]
        %v637 = vld [vmem:[%s330 + $0x680] sm:$0xff]
        %v638 = vld [vmem:[%s330 + $0x688] sm:$0xff]
        %v639 = vld [vmem:[%s330 + $0x690] sm:$0xff]
        %v640 = vld [vmem:[%s330 + $0x698] sm:$0xff]
        %v641 = vld [vmem:[%s330 + $0x6a0] sm:$0xff]
        %v642 = vld [vmem:[%s330 + $0x6a8] sm:$0xff]
        %v643 = vld [vmem:[%s330 + $0x6b0] sm:$0xff]
        %v644 = vld [vmem:[%s330 + $0x6b8] sm:$0xff]
        %v645 = vld [vmem:[%s330 + $0x6c0] sm:$0xff]
        %v646 = vld [vmem:[%s330 + $0x6c8] sm:$0xff]
        %v647 = vld [vmem:[%s330 + $0x6d0] sm:$0xff]
        %v648 = vld [vmem:[%s330 + $0x6d8] sm:$0xff]
        %v649 = vld [vmem:[%s330 + $0x6e0] sm:$0xff]
        %v650 = vld [vmem:[%s330 + $0x6e8] sm:$0xff]
        %v651 = vld [vmem:[%s330 + $0x6f0] sm:$0xff]
        %v652 = vld [vmem:[%s330 + $0x6f8] sm:$0xff]
        %v653 = vld [vmem:[%s330 + $0x700] sm:$0xff]
        %v654 = vld [vmem:[%s330 + $0x708] sm:$0xff]
        %v655 = vld [vmem:[%s330 + $0x710] sm:$0xff]
        %v656 = vld [vmem:[%s330 + $0x718] sm:$0xff]
        %v657 = vld [vmem:[%s330 + $0x720] sm:$0xff]
        %v658 = vld [vmem:[%s330 + $0x728] sm:$0xff]
        %v659 = vld [vmem:[%s330 + $0x730] sm:$0xff]
        %v660 = vld [vmem:[%s330 + $0x738] sm:$0xff]
        %v661 = vld [vmem:[%s330 + $0x740] sm:$0xff]
        %v662 = vld [vmem:[%s330 + $0x748] sm:$0xff]
        %v663 = vld [vmem:[%s330 + $0x750] sm:$0xff]
        %v664 = vld [vmem:[%s330 + $0x758] sm:$0xff]
        %v665 = vld [vmem:[%s330 + $0x760] sm:$0xff]
        %v666 = vld [vmem:[%s330 + $0x768] sm:$0xff]
        %v667 = vld [vmem:[%s330 + $0x770] sm:$0xff]
        %v668 = vld [vmem:[%s330 + $0x778] sm:$0xff]
        %v669 = vld [vmem:[%s330 + $0x780] sm:$0xff]
        %v670 = vld [vmem:[%s330 + $0x788] sm:$0xff]
        %v671 = vld [vmem:[%s330 + $0x790] sm:$0xff]
        %v672 = vld [vmem:[%s330 + $0x798] sm:$0xff]
        %v673 = vld [vmem:[%s330 + $0x7a0] sm:$0xff]
        %v674 = vld [vmem:[%s330 + $0x7a8] sm:$0xff]
        %v675 = vld [vmem:[%s330 + $0x7b0] sm:$0xff]
        %v676 = vld [vmem:[%s330 + $0x7b8] sm:$0xff]
        %v677 = vld [vmem:[%s330 + $0x7c0] sm:$0xff]
        %v678 = vld [vmem:[%s330 + $0x7c8] sm:$0xff]
        %v679 = vld [vmem:[%s330 + $0x7d0] sm:$0xff]
        %v680 = vld [vmem:[%s330 + $0x7d8] sm:$0xff]
        %v681 = vld [vmem:[%s330 + $0x7e0] sm:$0xff]
        %v682 = vld [vmem:[%s330 + $0x7e8] sm:$0xff]
        %v683 = vld [vmem:[%s330 + $0x7f0] sm:$0xff]
        %v684 = vld [vmem:[%s330 + $0x7f8] sm:$0xff]
        %v689 = vunpack.c.l.b16 %v425
        %v690 = vunpack.c.h.b16 %v425
        %v691 = vunpack.c.l.b16 %v426
        %v692 = vunpack.c.h.b16 %v426
        %v693 = vunpack.c.l.b16 %v427
        %v694 = vunpack.c.h.b16 %v427
        %v695 = vunpack.c.l.b16 %v428
        %v696 = vunpack.c.h.b16 %v428
        %v697 = vpack.c.b16 %v693, %v689
        %v698 = vpack.c.b16 %v694, %v690
        %v699 = vpack.c.b16 %v695, %v691
        %v700 = vpack.c.b16 %v696, %v692
        %v961 = vunpack.c.l.b16 %v429
        %v962 = vunpack.c.h.b16 %v429
        %v963 = vunpack.c.l.b16 %v430
        %v964 = vunpack.c.h.b16 %v430
        %v965 = vunpack.c.l.b16 %v431
        %v966 = vunpack.c.h.b16 %v431
        %v967 = vunpack.c.l.b16 %v432
        %v968 = vunpack.c.h.b16 %v432
        %v969 = vunpack.c.l.b16 %v433
        %v970 = vunpack.c.h.b16 %v433
        %v971 = vunpack.c.l.b16 %v434
        %v972 = vunpack.c.h.b16 %v434
        %v973 = vunpack.c.l.b16 %v435
        %v974 = vunpack.c.h.b16 %v435
        %v975 = vunpack.c.l.b16 %v436
        %v976 = vunpack.c.h.b16 %v436
        %v977 = vunpack.c.l.b16 %v437
        %v978 = vunpack.c.h.b16 %v437
        %v979 = vunpack.c.l.b16 %v438
        %v980 = vunpack.c.h.b16 %v438
        %v981 = vunpack.c.l.b16 %v439
        %v982 = vunpack.c.h.b16 %v439
        %v983 = vunpack.c.l.b16 %v440
        %v984 = vunpack.c.h.b16 %v440
        %v985 = vunpack.c.l.b16 %v441
        %v986 = vunpack.c.h.b16 %v441
        %v987 = vunpack.c.l.b16 %v442
        %v988 = vunpack.c.h.b16 %v442
        %v989 = vunpack.c.l.b16 %v443
        %v990 = vunpack.c.h.b16 %v443
        %v991 = vunpack.c.l.b16 %v444
        %v992 = vunpack.c.h.b16 %v444
        %v993 = vunpack.c.l.b16 %v445
        %v994 = vunpack.c.h.b16 %v445
        %v995 = vunpack.c.l.b16 %v446
        %v996 = vunpack.c.h.b16 %v446
        %v997 = vunpack.c.l.b16 %v447
        %v998 = vunpack.c.h.b16 %v447
        %v999 = vunpack.c.l.b16 %v448
        %v1000 = vunpack.c.h.b16 %v448
        %v1001 = vunpack.c.l.b16 %v449
        %v1002 = vunpack.c.h.b16 %v449
        %v1003 = vunpack.c.l.b16 %v450
        %v1004 = vunpack.c.h.b16 %v450
        %v1005 = vunpack.c.l.b16 %v451
        %v1006 = vunpack.c.h.b16 %v451
        %v1007 = vunpack.c.l.b16 %v452
        %v1008 = vunpack.c.h.b16 %v452
        %v1009 = vunpack.c.l.b16 %v453
        %v1010 = vunpack.c.h.b16 %v453
        %v1011 = vunpack.c.l.b16 %v454
        %v1012 = vunpack.c.h.b16 %v454
        %v1013 = vunpack.c.l.b16 %v455
        %v1014 = vunpack.c.h.b16 %v455
        %v1015 = vunpack.c.l.b16 %v456
        %v1016 = vunpack.c.h.b16 %v456
        %v1017 = vunpack.c.l.b16 %v457
        %v1018 = vunpack.c.h.b16 %v457
        %v1019 = vunpack.c.l.b16 %v458
        %v1020 = vunpack.c.h.b16 %v458
        %v1021 = vunpack.c.l.b16 %v459
        %v1022 = vunpack.c.h.b16 %v459
        %v1023 = vunpack.c.l.b16 %v460
        %v1024 = vunpack.c.h.b16 %v460
        %v1025 = vunpack.c.l.b16 %v461
        %v1026 = vunpack.c.h.b16 %v461
        %v1027 = vunpack.c.l.b16 %v462
        %v1028 = vunpack.c.h.b16 %v462
        %v1029 = vunpack.c.l.b16 %v463
        %v1030 = vunpack.c.h.b16 %v463
        %v1031 = vunpack.c.l.b16 %v464
        %v1032 = vunpack.c.h.b16 %v464
        %v1033 = vunpack.c.l.b16 %v465
        %v1034 = vunpack.c.h.b16 %v465
        %v1035 = vunpack.c.l.b16 %v466
        %v1036 = vunpack.c.h.b16 %v466
        %v1037 = vunpack.c.l.b16 %v467
        %v1038 = vunpack.c.h.b16 %v467
        %v1039 = vunpack.c.l.b16 %v468
        %v1040 = vunpack.c.h.b16 %v468
        %v1041 = vunpack.c.l.b16 %v469
        %v1042 = vunpack.c.h.b16 %v469
        %v1043 = vunpack.c.l.b16 %v470
        %v1044 = vunpack.c.h.b16 %v470
        %v1045 = vunpack.c.l.b16 %v471
        %v1046 = vunpack.c.h.b16 %v471
        %v1047 = vunpack.c.l.b16 %v472
        %v1048 = vunpack.c.h.b16 %v472
        %v1049 = vunpack.c.l.b16 %v473
        %v1050 = vunpack.c.h.b16 %v473
        %v1051 = vunpack.c.l.b16 %v474
        %v1052 = vunpack.c.h.b16 %v474
        %v1053 = vunpack.c.l.b16 %v475
        %v1054 = vunpack.c.h.b16 %v475
        %v1055 = vunpack.c.l.b16 %v476
        %v1056 = vunpack.c.h.b16 %v476
        %v1057 = vunpack.c.l.b16 %v477
        %v1058 = vunpack.c.h.b16 %v477
        %v1059 = vunpack.c.l.b16 %v478
        %v1060 = vunpack.c.h.b16 %v478
        %v1061 = vunpack.c.l.b16 %v479
        %v1062 = vunpack.c.h.b16 %v479
        %v1063 = vunpack.c.l.b16 %v480
        %v1064 = vunpack.c.h.b16 %v480
        %v1065 = vunpack.c.l.b16 %v481
        %v1066 = vunpack.c.h.b16 %v481
        %v1067 = vunpack.c.l.b16 %v482
        %v1068 = vunpack.c.h.b16 %v482
        %v1069 = vunpack.c.l.b16 %v483
        %v1070 = vunpack.c.h.b16 %v483
        %v1071 = vunpack.c.l.b16 %v484
        %v1072 = vunpack.c.h.b16 %v484
        %v1073 = vunpack.c.l.b16 %v485
        %v1074 = vunpack.c.h.b16 %v485
        %v1075 = vunpack.c.l.b16 %v486
        %v1076 = vunpack.c.h.b16 %v486
        %v1077 = vunpack.c.l.b16 %v487
        %v1078 = vunpack.c.h.b16 %v487
        %v1079 = vunpack.c.l.b16 %v488
        %v1080 = vunpack.c.h.b16 %v488
        %v1081 = vunpack.c.l.b16 %v489
        %v1082 = vunpack.c.h.b16 %v489
        %v1083 = vunpack.c.l.b16 %v490
        %v1084 = vunpack.c.h.b16 %v490
        %v1085 = vunpack.c.l.b16 %v491
        %v1086 = vunpack.c.h.b16 %v491
        %v1087 = vunpack.c.l.b16 %v492
        %v1088 = vunpack.c.h.b16 %v492
        %v1089 = vunpack.c.l.b16 %v493
        %v1090 = vunpack.c.h.b16 %v493
        %v1091 = vunpack.c.l.b16 %v494
        %v1092 = vunpack.c.h.b16 %v494
        %v1093 = vunpack.c.l.b16 %v495
        %v1094 = vunpack.c.h.b16 %v495
        %v1095 = vunpack.c.l.b16 %v496
        %v1096 = vunpack.c.h.b16 %v496
        %v1097 = vunpack.c.l.b16 %v497
        %v1098 = vunpack.c.h.b16 %v497
        %v1099 = vunpack.c.l.b16 %v498
        %v1100 = vunpack.c.h.b16 %v498
        %v1101 = vunpack.c.l.b16 %v499
        %v1102 = vunpack.c.h.b16 %v499
        %v1103 = vunpack.c.l.b16 %v500
        %v1104 = vunpack.c.h.b16 %v500
        %v1105 = vunpack.c.l.b16 %v501
        %v1106 = vunpack.c.h.b16 %v501
        %v1107 = vunpack.c.l.b16 %v502
        %v1108 = vunpack.c.h.b16 %v502
        %v1109 = vunpack.c.l.b16 %v503
        %v1110 = vunpack.c.h.b16 %v503
        %v1111 = vunpack.c.l.b16 %v504
        %v1112 = vunpack.c.h.b16 %v504
        %v1113 = vunpack.c.l.b16 %v505
        %v1114 = vunpack.c.h.b16 %v505
        %v1115 = vunpack.c.l.b16 %v506
        %v1116 = vunpack.c.h.b16 %v506
        %v1117 = vunpack.c.l.b16 %v507
        %v1118 = vunpack.c.h.b16 %v507
        %v1119 = vunpack.c.l.b16 %v508
        %v1120 = vunpack.c.h.b16 %v508
        %v1121 = vunpack.c.l.b16 %v509
        %v1122 = vunpack.c.h.b16 %v509
        %v1123 = vunpack.c.l.b16 %v510
        %v1124 = vunpack.c.h.b16 %v510
        %v1125 = vunpack.c.l.b16 %v511
        %v1126 = vunpack.c.h.b16 %v511
        %v1127 = vunpack.c.l.b16 %v512
        %v1128 = vunpack.c.h.b16 %v512
        %v1129 = vunpack.c.l.b16 %v513
        %v1130 = vunpack.c.h.b16 %v513
        %v1131 = vunpack.c.l.b16 %v514
        %v1132 = vunpack.c.h.b16 %v514
        %v1133 = vunpack.c.l.b16 %v515
        %v1134 = vunpack.c.h.b16 %v515
        %v1135 = vunpack.c.l.b16 %v516
        %v1136 = vunpack.c.h.b16 %v516
        %v1137 = vunpack.c.l.b16 %v517
        %v1138 = vunpack.c.h.b16 %v517
        %v1139 = vunpack.c.l.b16 %v518
        %v1140 = vunpack.c.h.b16 %v518
        %v1141 = vunpack.c.l.b16 %v519
        %v1142 = vunpack.c.h.b16 %v519
        %v1143 = vunpack.c.l.b16 %v520
        %v1144 = vunpack.c.h.b16 %v520
        %v1145 = vunpack.c.l.b16 %v521
        %v1146 = vunpack.c.h.b16 %v521
        %v1147 = vunpack.c.l.b16 %v522
        %v1148 = vunpack.c.h.b16 %v522
        %v1149 = vunpack.c.l.b16 %v523
        %v1150 = vunpack.c.h.b16 %v523
        %v1151 = vunpack.c.l.b16 %v524
        %v1152 = vunpack.c.h.b16 %v524
        %v1153 = vunpack.c.l.b16 %v525
        %v1154 = vunpack.c.h.b16 %v525
        %v1155 = vunpack.c.l.b16 %v526
        %v1156 = vunpack.c.h.b16 %v526
        %v1157 = vunpack.c.l.b16 %v527
        %v1158 = vunpack.c.h.b16 %v527
        %v1159 = vunpack.c.l.b16 %v528
        %v1160 = vunpack.c.h.b16 %v528
        %v1161 = vunpack.c.l.b16 %v529
        %v1162 = vunpack.c.h.b16 %v529
        %v1163 = vunpack.c.l.b16 %v530
        %v1164 = vunpack.c.h.b16 %v530
        %v1165 = vunpack.c.l.b16 %v531
        %v1166 = vunpack.c.h.b16 %v531
        %v1167 = vunpack.c.l.b16 %v532
        %v1168 = vunpack.c.h.b16 %v532
        %v1169 = vunpack.c.l.b16 %v533
        %v1170 = vunpack.c.h.b16 %v533
        %v1171 = vunpack.c.l.b16 %v534
        %v1172 = vunpack.c.h.b16 %v534
        %v1173 = vunpack.c.l.b16 %v535
        %v1174 = vunpack.c.h.b16 %v535
        %v1175 = vunpack.c.l.b16 %v536
        %v1176 = vunpack.c.h.b16 %v536
        %v1177 = vunpack.c.l.b16 %v537
        %v1178 = vunpack.c.h.b16 %v537
        %v1179 = vunpack.c.l.b16 %v538
        %v1180 = vunpack.c.h.b16 %v538
        %v1181 = vunpack.c.l.b16 %v539
        %v1182 = vunpack.c.h.b16 %v539
        %v1183 = vunpack.c.l.b16 %v540
        %v1184 = vunpack.c.h.b16 %v540
        %v1185 = vunpack.c.l.b16 %v541
        %v1186 = vunpack.c.h.b16 %v541
        %v1187 = vunpack.c.l.b16 %v542
        %v1188 = vunpack.c.h.b16 %v542
        %v1189 = vunpack.c.l.b16 %v543
        %v1190 = vunpack.c.h.b16 %v543
        %v1191 = vunpack.c.l.b16 %v544
        %v1192 = vunpack.c.h.b16 %v544
        %v1193 = vunpack.c.l.b16 %v545
        %v1194 = vunpack.c.h.b16 %v545
        %v1195 = vunpack.c.l.b16 %v546
        %v1196 = vunpack.c.h.b16 %v546
        %v1197 = vunpack.c.l.b16 %v547
        %v1198 = vunpack.c.h.b16 %v547
        %v1199 = vunpack.c.l.b16 %v548
        %v1200 = vunpack.c.h.b16 %v548
        %v1201 = vunpack.c.l.b16 %v549
        %v1202 = vunpack.c.h.b16 %v549
        %v1203 = vunpack.c.l.b16 %v550
        %v1204 = vunpack.c.h.b16 %v550
        %v1205 = vunpack.c.l.b16 %v551
        %v1206 = vunpack.c.h.b16 %v551
        %v1207 = vunpack.c.l.b16 %v552
        %v1208 = vunpack.c.h.b16 %v552
        %v1209 = vunpack.c.l.b16 %v553
        %v1210 = vunpack.c.h.b16 %v553
        %v1211 = vunpack.c.l.b16 %v554
        %v1212 = vunpack.c.h.b16 %v554
        %v1213 = vunpack.c.l.b16 %v555
        %v1214 = vunpack.c.h.b16 %v555
        %v1215 = vunpack.c.l.b16 %v556
        %v1216 = vunpack.c.h.b16 %v556
        %v1217 = vunpack.c.l.b16 %v557
        %v1218 = vunpack.c.h.b16 %v557
        %v1219 = vunpack.c.l.b16 %v558
        %v1220 = vunpack.c.h.b16 %v558
        %v1221 = vunpack.c.l.b16 %v559
        %v1222 = vunpack.c.h.b16 %v559
        %v1223 = vunpack.c.l.b16 %v560
        %v1224 = vunpack.c.h.b16 %v560
        %v1225 = vunpack.c.l.b16 %v561
        %v1226 = vunpack.c.h.b16 %v561
        %v1227 = vunpack.c.l.b16 %v562
        %v1228 = vunpack.c.h.b16 %v562
        %v1229 = vunpack.c.l.b16 %v563
        %v1230 = vunpack.c.h.b16 %v563
        %v1231 = vunpack.c.l.b16 %v564
        %v1232 = vunpack.c.h.b16 %v564
        %v1233 = vunpack.c.l.b16 %v565
        %v1234 = vunpack.c.h.b16 %v565
        %v1235 = vunpack.c.l.b16 %v566
        %v1236 = vunpack.c.h.b16 %v566
        %v1237 = vunpack.c.l.b16 %v567
        %v1238 = vunpack.c.h.b16 %v567
        %v1239 = vunpack.c.l.b16 %v568
        %v1240 = vunpack.c.h.b16 %v568
        %v1241 = vunpack.c.l.b16 %v569
        %v1242 = vunpack.c.h.b16 %v569
        %v1243 = vunpack.c.l.b16 %v570
        %v1244 = vunpack.c.h.b16 %v570
        %v1245 = vunpack.c.l.b16 %v571
        %v1246 = vunpack.c.h.b16 %v571
        %v1247 = vunpack.c.l.b16 %v572
        %v1248 = vunpack.c.h.b16 %v572
        %v1249 = vunpack.c.l.b16 %v573
        %v1250 = vunpack.c.h.b16 %v573
        %v1251 = vunpack.c.l.b16 %v574
        %v1252 = vunpack.c.h.b16 %v574
        %v1253 = vunpack.c.l.b16 %v575
        %v1254 = vunpack.c.h.b16 %v575
        %v1255 = vunpack.c.l.b16 %v576
        %v1256 = vunpack.c.h.b16 %v576
        %v1257 = vunpack.c.l.b16 %v577
        %v1258 = vunpack.c.h.b16 %v577
        %v1259 = vunpack.c.l.b16 %v578
        %v1260 = vunpack.c.h.b16 %v578
        %v1261 = vunpack.c.l.b16 %v579
        %v1262 = vunpack.c.h.b16 %v579
        %v1263 = vunpack.c.l.b16 %v580
        %v1264 = vunpack.c.h.b16 %v580
        %v1265 = vunpack.c.l.b16 %v581
        %v1266 = vunpack.c.h.b16 %v581
        %v1267 = vunpack.c.l.b16 %v582
        %v1268 = vunpack.c.h.b16 %v582
        %v1269 = vunpack.c.l.b16 %v583
        %v1270 = vunpack.c.h.b16 %v583
        %v1271 = vunpack.c.l.b16 %v584
        %v1272 = vunpack.c.h.b16 %v584
        %v1273 = vunpack.c.l.b16 %v585
        %v1274 = vunpack.c.h.b16 %v585
        %v1275 = vunpack.c.l.b16 %v586
        %v1276 = vunpack.c.h.b16 %v586
        %v1277 = vunpack.c.l.b16 %v587
        %v1278 = vunpack.c.h.b16 %v587
        %v1279 = vunpack.c.l.b16 %v588
        %v1280 = vunpack.c.h.b16 %v588
        %v1281 = vunpack.c.l.b16 %v589
        %v1282 = vunpack.c.h.b16 %v589
        %v1283 = vunpack.c.l.b16 %v590
        %v1284 = vunpack.c.h.b16 %v590
        %v1285 = vunpack.c.l.b16 %v591
        %v1286 = vunpack.c.h.b16 %v591
        %v1287 = vunpack.c.l.b16 %v592
        %v1288 = vunpack.c.h.b16 %v592
        %v1289 = vunpack.c.l.b16 %v593
        %v1290 = vunpack.c.h.b16 %v593
        %v1291 = vunpack.c.l.b16 %v594
        %v1292 = vunpack.c.h.b16 %v594
        %v1293 = vunpack.c.l.b16 %v595
        %v1294 = vunpack.c.h.b16 %v595
        %v1295 = vunpack.c.l.b16 %v596
        %v1296 = vunpack.c.h.b16 %v596
        %v1297 = vunpack.c.l.b16 %v597
        %v1298 = vunpack.c.h.b16 %v597
        %v1299 = vunpack.c.l.b16 %v598
        %v1300 = vunpack.c.h.b16 %v598
        %v1301 = vunpack.c.l.b16 %v599
        %v1302 = vunpack.c.h.b16 %v599
        %v1303 = vunpack.c.l.b16 %v600
        %v1304 = vunpack.c.h.b16 %v600
        %v1305 = vunpack.c.l.b16 %v601
        %v1306 = vunpack.c.h.b16 %v601
        %v1307 = vunpack.c.l.b16 %v602
        %v1308 = vunpack.c.h.b16 %v602
        %v1309 = vunpack.c.l.b16 %v603
        %v1310 = vunpack.c.h.b16 %v603
        %v1311 = vunpack.c.l.b16 %v604
        %v1312 = vunpack.c.h.b16 %v604
        %v1313 = vunpack.c.l.b16 %v605
        %v1314 = vunpack.c.h.b16 %v605
        %v1315 = vunpack.c.l.b16 %v606
        %v1316 = vunpack.c.h.b16 %v606
        %v1317 = vunpack.c.l.b16 %v607
        %v1318 = vunpack.c.h.b16 %v607
        %v1319 = vunpack.c.l.b16 %v608
        %v1320 = vunpack.c.h.b16 %v608
        %v1321 = vunpack.c.l.b16 %v609
        %v1322 = vunpack.c.h.b16 %v609
        %v1323 = vunpack.c.l.b16 %v610
        %v1324 = vunpack.c.h.b16 %v610
        %v1325 = vunpack.c.l.b16 %v611
        %v1326 = vunpack.c.h.b16 %v611
        %v1327 = vunpack.c.l.b16 %v612
        %v1328 = vunpack.c.h.b16 %v612
        %v1329 = vunpack.c.l.b16 %v613
        %v1330 = vunpack.c.h.b16 %v613
        %v1331 = vunpack.c.l.b16 %v614
        %v1332 = vunpack.c.h.b16 %v614
        %v1333 = vunpack.c.l.b16 %v615
        %v1334 = vunpack.c.h.b16 %v615
        %v1335 = vunpack.c.l.b16 %v616
        %v1336 = vunpack.c.h.b16 %v616
        %v1337 = vunpack.c.l.b16 %v617
        %v1338 = vunpack.c.h.b16 %v617
        %v1339 = vunpack.c.l.b16 %v618
        %v1340 = vunpack.c.h.b16 %v618
        %v1341 = vunpack.c.l.b16 %v619
        %v1342 = vunpack.c.h.b16 %v619
        %v1343 = vunpack.c.l.b16 %v620
        %v1344 = vunpack.c.h.b16 %v620
        %v1345 = vunpack.c.l.b16 %v621
        %v1346 = vunpack.c.h.b16 %v621
        %v1347 = vunpack.c.l.b16 %v622
        %v1348 = vunpack.c.h.b16 %v622
        %v1349 = vunpack.c.l.b16 %v623
        %v1350 = vunpack.c.h.b16 %v623
        %v1351 = vunpack.c.l.b16 %v624
        %v1352 = vunpack.c.h.b16 %v624
        %v1353 = vunpack.c.l.b16 %v625
        %v1354 = vunpack.c.h.b16 %v625
        %v1355 = vunpack.c.l.b16 %v626
        %v1356 = vunpack.c.h.b16 %v626
        %v1357 = vunpack.c.l.b16 %v627
        %v1358 = vunpack.c.h.b16 %v627
        %v1359 = vunpack.c.l.b16 %v628
        %v1360 = vunpack.c.h.b16 %v628
        %v1361 = vunpack.c.l.b16 %v629
        %v1362 = vunpack.c.h.b16 %v629
        %v1363 = vunpack.c.l.b16 %v630
        %v1364 = vunpack.c.h.b16 %v630
        %v1365 = vunpack.c.l.b16 %v631
        %v1366 = vunpack.c.h.b16 %v631
        %v1367 = vunpack.c.l.b16 %v632
        %v1368 = vunpack.c.h.b16 %v632
        %v1369 = vunpack.c.l.b16 %v633
        %v1370 = vunpack.c.h.b16 %v633
        %v1371 = vunpack.c.l.b16 %v634
        %v1372 = vunpack.c.h.b16 %v634
        %v1373 = vunpack.c.l.b16 %v635
        %v1374 = vunpack.c.h.b16 %v635
        %v1375 = vunpack.c.l.b16 %v636
        %v1376 = vunpack.c.h.b16 %v636
        %v1377 = vunpack.c.l.b16 %v637
        %v1378 = vunpack.c.h.b16 %v637
        %v1379 = vunpack.c.l.b16 %v638
        %v1380 = vunpack.c.h.b16 %v638
        %v1381 = vunpack.c.l.b16 %v639
        %v1382 = vunpack.c.h.b16 %v639
        %v1383 = vunpack.c.l.b16 %v640
        %v1384 = vunpack.c.h.b16 %v640
        %v1385 = vunpack.c.l.b16 %v641
        %v1386 = vunpack.c.h.b16 %v641
        %v1387 = vunpack.c.l.b16 %v642
        %v1388 = vunpack.c.h.b16 %v642
        %v1389 = vunpack.c.l.b16 %v643
        %v1390 = vunpack.c.h.b16 %v643
        %v1391 = vunpack.c.l.b16 %v644
        %v1392 = vunpack.c.h.b16 %v644
        %v1393 = vunpack.c.l.b16 %v645
        %v1394 = vunpack.c.h.b16 %v645
        %v1395 = vunpack.c.l.b16 %v646
        %v1396 = vunpack.c.h.b16 %v646
        %v1397 = vunpack.c.l.b16 %v647
        %v1398 = vunpack.c.h.b16 %v647
        %v1399 = vunpack.c.l.b16 %v648
        %v1400 = vunpack.c.h.b16 %v648
        %v1401 = vunpack.c.l.b16 %v649
        %v1402 = vunpack.c.h.b16 %v649
        %v1403 = vunpack.c.l.b16 %v650
        %v1404 = vunpack.c.h.b16 %v650
        %v1405 = vunpack.c.l.b16 %v651
        %v1406 = vunpack.c.h.b16 %v651
        %v1407 = vunpack.c.l.b16 %v652
        %v1408 = vunpack.c.h.b16 %v652
        %v1409 = vunpack.c.l.b16 %v653
        %v1410 = vunpack.c.h.b16 %v653
        %v1411 = vunpack.c.l.b16 %v654
        %v1412 = vunpack.c.h.b16 %v654
        %v1413 = vunpack.c.l.b16 %v655
        %v1414 = vunpack.c.h.b16 %v655
        %v1415 = vunpack.c.l.b16 %v656
        %v1416 = vunpack.c.h.b16 %v656
        %v1417 = vunpack.c.l.b16 %v657
        %v1418 = vunpack.c.h.b16 %v657
        %v1419 = vunpack.c.l.b16 %v658
        %v1420 = vunpack.c.h.b16 %v658
        %v1421 = vunpack.c.l.b16 %v659
        %v1422 = vunpack.c.h.b16 %v659
        %v1423 = vunpack.c.l.b16 %v660
        %v1424 = vunpack.c.h.b16 %v660
        %v1425 = vunpack.c.l.b16 %v661
        %v1426 = vunpack.c.h.b16 %v661
        %v1427 = vunpack.c.l.b16 %v662
        %v1428 = vunpack.c.h.b16 %v662
        %v1429 = vunpack.c.l.b16 %v663
        %v1430 = vunpack.c.h.b16 %v663
        %v1431 = vunpack.c.l.b16 %v664
        %v1432 = vunpack.c.h.b16 %v664
        %v1433 = vunpack.c.l.b16 %v665
        %v1434 = vunpack.c.h.b16 %v665
        %v1435 = vunpack.c.l.b16 %v666
        %v1436 = vunpack.c.h.b16 %v666
        %v1437 = vunpack.c.l.b16 %v667
        %v1438 = vunpack.c.h.b16 %v667
        %v1439 = vunpack.c.l.b16 %v668
        %v1440 = vunpack.c.h.b16 %v668
        %v1441 = vunpack.c.l.b16 %v669
        %v1442 = vunpack.c.h.b16 %v669
        %v1443 = vunpack.c.l.b16 %v670
        %v1444 = vunpack.c.h.b16 %v670
        %v1445 = vunpack.c.l.b16 %v671
        %v1446 = vunpack.c.h.b16 %v671
        %v1447 = vunpack.c.l.b16 %v672
        %v1448 = vunpack.c.h.b16 %v672
        %v1449 = vunpack.c.l.b16 %v673
        %v1450 = vunpack.c.h.b16 %v673
        %v1451 = vunpack.c.l.b16 %v674
        %v1452 = vunpack.c.h.b16 %v674
        %v1453 = vunpack.c.l.b16 %v675
        %v1454 = vunpack.c.h.b16 %v675
        %v1455 = vunpack.c.l.b16 %v676
        %v1456 = vunpack.c.h.b16 %v676
        %v1457 = vunpack.c.l.b16 %v677
        %v1458 = vunpack.c.h.b16 %v677
        %v1459 = vunpack.c.l.b16 %v678
        %v1460 = vunpack.c.h.b16 %v678
        %v1461 = vunpack.c.l.b16 %v679
        %v1462 = vunpack.c.h.b16 %v679
        %v1463 = vunpack.c.l.b16 %v680
        %v1464 = vunpack.c.h.b16 %v680
        %v1465 = vunpack.c.l.b16 %v681
        %v1466 = vunpack.c.h.b16 %v681
        %v1467 = vunpack.c.l.b16 %v682
        %v1468 = vunpack.c.h.b16 %v682
        %v1469 = vunpack.c.l.b16 %v683
        %v1470 = vunpack.c.h.b16 %v683
        %v1471 = vunpack.c.l.b16 %v684
        %v1472 = vunpack.c.h.b16 %v684
        %v1473 = vpack.c.b16 %v969, %v961
        %v1474 = vpack.c.b16 %v970, %v962
        %v1475 = vpack.c.b16 %v971, %v963
        %v1476 = vpack.c.b16 %v972, %v964
        %v1477 = vpack.c.b16 %v973, %v965
        %v1478 = vpack.c.b16 %v974, %v966
        %v1479 = vpack.c.b16 %v975, %v967
        %v1480 = vpack.c.b16 %v976, %v968
        %v1481 = vpack.c.b16 %v985, %v977
        %v1482 = vpack.c.b16 %v986, %v978
        %v1483 = vpack.c.b16 %v987, %v979
        %v1484 = vpack.c.b16 %v988, %v980
        %v1485 = vpack.c.b16 %v989, %v981
        %v1486 = vpack.c.b16 %v990, %v982
        %v1487 = vpack.c.b16 %v991, %v983
        %v1488 = vpack.c.b16 %v992, %v984
        %v1489 = vpack.c.b16 %v1001, %v993
        %v1490 = vpack.c.b16 %v1002, %v994
        %v1491 = vpack.c.b16 %v1003, %v995
        %v1492 = vpack.c.b16 %v1004, %v996
        %v1493 = vpack.c.b16 %v1005, %v997
        %v1494 = vpack.c.b16 %v1006, %v998
        %v1495 = vpack.c.b16 %v1007, %v999
        %v1496 = vpack.c.b16 %v1008, %v1000
        %v1497 = vpack.c.b16 %v1017, %v1009
        %v1498 = vpack.c.b16 %v1018, %v1010
        %v1499 = vpack.c.b16 %v1019, %v1011
        %v1500 = vpack.c.b16 %v1020, %v1012
        %v1501 = vpack.c.b16 %v1021, %v1013
        %v1502 = vpack.c.b16 %v1022, %v1014
        %v1503 = vpack.c.b16 %v1023, %v1015
        %v1504 = vpack.c.b16 %v1024, %v1016
        %v1505 = vpack.c.b16 %v1033, %v1025
        %v1506 = vpack.c.b16 %v1034, %v1026
        %v1507 = vpack.c.b16 %v1035, %v1027
        %v1508 = vpack.c.b16 %v1036, %v1028
        %v1509 = vpack.c.b16 %v1037, %v1029
        %v1510 = vpack.c.b16 %v1038, %v1030
        %v1511 = vpack.c.b16 %v1039, %v1031
        %v1512 = vpack.c.b16 %v1040, %v1032
        %v1513 = vpack.c.b16 %v1049, %v1041
        %v1514 = vpack.c.b16 %v1050, %v1042
        %v1515 = vpack.c.b16 %v1051, %v1043
        %v1516 = vpack.c.b16 %v1052, %v1044
        %v1517 = vpack.c.b16 %v1053, %v1045
        %v1518 = vpack.c.b16 %v1054, %v1046
        %v1519 = vpack.c.b16 %v1055, %v1047
        %v1520 = vpack.c.b16 %v1056, %v1048
        %v1521 = vpack.c.b16 %v1065, %v1057
        %v1522 = vpack.c.b16 %v1066, %v1058
        %v1523 = vpack.c.b16 %v1067, %v1059
        %v1524 = vpack.c.b16 %v1068, %v1060
        %v1525 = vpack.c.b16 %v1069, %v1061
        %v1526 = vpack.c.b16 %v1070, %v1062
        %v1527 = vpack.c.b16 %v1071, %v1063
        %v1528 = vpack.c.b16 %v1072, %v1064
        %v1529 = vpack.c.b16 %v1081, %v1073
        %v1530 = vpack.c.b16 %v1082, %v1074
        %v1531 = vpack.c.b16 %v1083, %v1075
        %v1532 = vpack.c.b16 %v1084, %v1076
        %v1533 = vpack.c.b16 %v1085, %v1077
        %v1534 = vpack.c.b16 %v1086, %v1078
        %v1535 = vpack.c.b16 %v1087, %v1079
        %v1536 = vpack.c.b16 %v1088, %v1080
        %v1537 = vpack.c.b16 %v1097, %v1089
        %v1538 = vpack.c.b16 %v1098, %v1090
        %v1539 = vpack.c.b16 %v1099, %v1091
        %v1540 = vpack.c.b16 %v1100, %v1092
        %v1541 = vpack.c.b16 %v1101, %v1093
        %v1542 = vpack.c.b16 %v1102, %v1094
        %v1543 = vpack.c.b16 %v1103, %v1095
        %v1544 = vpack.c.b16 %v1104, %v1096
        %v1545 = vpack.c.b16 %v1113, %v1105
        %v1546 = vpack.c.b16 %v1114, %v1106
        %v1547 = vpack.c.b16 %v1115, %v1107
        %v1548 = vpack.c.b16 %v1116, %v1108
        %v1549 = vpack.c.b16 %v1117, %v1109
        %v1550 = vpack.c.b16 %v1118, %v1110
        %v1551 = vpack.c.b16 %v1119, %v1111
        %v1552 = vpack.c.b16 %v1120, %v1112
        %v1553 = vpack.c.b16 %v1129, %v1121
        %v1554 = vpack.c.b16 %v1130, %v1122
        %v1555 = vpack.c.b16 %v1131, %v1123
        %v1556 = vpack.c.b16 %v1132, %v1124
        %v1557 = vpack.c.b16 %v1133, %v1125
        %v1558 = vpack.c.b16 %v1134, %v1126
        %v1559 = vpack.c.b16 %v1135, %v1127
        %v1560 = vpack.c.b16 %v1136, %v1128
        %v1561 = vpack.c.b16 %v1145, %v1137
        %v1562 = vpack.c.b16 %v1146, %v1138
        %v1563 = vpack.c.b16 %v1147, %v1139
        %v1564 = vpack.c.b16 %v1148, %v1140
        %v1565 = vpack.c.b16 %v1149, %v1141
        %v1566 = vpack.c.b16 %v1150, %v1142
        %v1567 = vpack.c.b16 %v1151, %v1143
        %v1568 = vpack.c.b16 %v1152, %v1144
        %v1569 = vpack.c.b16 %v1161, %v1153
        %v1570 = vpack.c.b16 %v1162, %v1154
        %v1571 = vpack.c.b16 %v1163, %v1155
        %v1572 = vpack.c.b16 %v1164, %v1156
        %v1573 = vpack.c.b16 %v1165, %v1157
        %v1574 = vpack.c.b16 %v1166, %v1158
        %v1575 = vpack.c.b16 %v1167, %v1159
        %v1576 = vpack.c.b16 %v1168, %v1160
        %v1577 = vpack.c.b16 %v1177, %v1169
        %v1578 = vpack.c.b16 %v1178, %v1170
        %v1579 = vpack.c.b16 %v1179, %v1171
        %v1580 = vpack.c.b16 %v1180, %v1172
        %v1581 = vpack.c.b16 %v1181, %v1173
        %v1582 = vpack.c.b16 %v1182, %v1174
        %v1583 = vpack.c.b16 %v1183, %v1175
        %v1584 = vpack.c.b16 %v1184, %v1176
        %v1585 = vpack.c.b16 %v1193, %v1185
        %v1586 = vpack.c.b16 %v1194, %v1186
        %v1587 = vpack.c.b16 %v1195, %v1187
        %v1588 = vpack.c.b16 %v1196, %v1188
        %v1589 = vpack.c.b16 %v1197, %v1189
        %v1590 = vpack.c.b16 %v1198, %v1190
        %v1591 = vpack.c.b16 %v1199, %v1191
        %v1592 = vpack.c.b16 %v1200, %v1192
        %v1593 = vpack.c.b16 %v1209, %v1201
        %v1594 = vpack.c.b16 %v1210, %v1202
        %v1595 = vpack.c.b16 %v1211, %v1203
        %v1596 = vpack.c.b16 %v1212, %v1204
        %v1597 = vpack.c.b16 %v1213, %v1205
        %v1598 = vpack.c.b16 %v1214, %v1206
        %v1599 = vpack.c.b16 %v1215, %v1207
        %v1600 = vpack.c.b16 %v1216, %v1208
        %v1601 = vpack.c.b16 %v1225, %v1217
        %v1602 = vpack.c.b16 %v1226, %v1218
        %v1603 = vpack.c.b16 %v1227, %v1219
        %v1604 = vpack.c.b16 %v1228, %v1220
        %v1605 = vpack.c.b16 %v1229, %v1221
        %v1606 = vpack.c.b16 %v1230, %v1222
        %v1607 = vpack.c.b16 %v1231, %v1223
        %v1608 = vpack.c.b16 %v1232, %v1224
        %v1609 = vpack.c.b16 %v1241, %v1233
        %v1610 = vpack.c.b16 %v1242, %v1234
        %v1611 = vpack.c.b16 %v1243, %v1235
        %v1612 = vpack.c.b16 %v1244, %v1236
        %v1613 = vpack.c.b16 %v1245, %v1237
        %v1614 = vpack.c.b16 %v1246, %v1238
        %v1615 = vpack.c.b16 %v1247, %v1239
        %v1616 = vpack.c.b16 %v1248, %v1240
        %v1617 = vpack.c.b16 %v1257, %v1249
        %v1618 = vpack.c.b16 %v1258, %v1250
        %v1619 = vpack.c.b16 %v1259, %v1251
        %v1620 = vpack.c.b16 %v1260, %v1252
        %v1621 = vpack.c.b16 %v1261, %v1253
        %v1622 = vpack.c.b16 %v1262, %v1254
        %v1623 = vpack.c.b16 %v1263, %v1255
        %v1624 = vpack.c.b16 %v1264, %v1256
        %v1625 = vpack.c.b16 %v1273, %v1265
        %v1626 = vpack.c.b16 %v1274, %v1266
        %v1627 = vpack.c.b16 %v1275, %v1267
        %v1628 = vpack.c.b16 %v1276, %v1268
        %v1629 = vpack.c.b16 %v1277, %v1269
        %v1630 = vpack.c.b16 %v1278, %v1270
        %v1631 = vpack.c.b16 %v1279, %v1271
        %v1632 = vpack.c.b16 %v1280, %v1272
        %v1633 = vpack.c.b16 %v1289, %v1281
        %v1634 = vpack.c.b16 %v1290, %v1282
        %v1635 = vpack.c.b16 %v1291, %v1283
        %v1636 = vpack.c.b16 %v1292, %v1284
        %v1637 = vpack.c.b16 %v1293, %v1285
        %v1638 = vpack.c.b16 %v1294, %v1286
        %v1639 = vpack.c.b16 %v1295, %v1287
        %v1640 = vpack.c.b16 %v1296, %v1288
        %v1641 = vpack.c.b16 %v1305, %v1297
        %v1642 = vpack.c.b16 %v1306, %v1298
        %v1643 = vpack.c.b16 %v1307, %v1299
        %v1644 = vpack.c.b16 %v1308, %v1300
        %v1645 = vpack.c.b16 %v1309, %v1301
        %v1646 = vpack.c.b16 %v1310, %v1302
        %v1647 = vpack.c.b16 %v1311, %v1303
        %v1648 = vpack.c.b16 %v1312, %v1304
        %v1649 = vpack.c.b16 %v1321, %v1313
        %v1650 = vpack.c.b16 %v1322, %v1314
        %v1651 = vpack.c.b16 %v1323, %v1315
        %v1652 = vpack.c.b16 %v1324, %v1316
        %v1653 = vpack.c.b16 %v1325, %v1317
        %v1654 = vpack.c.b16 %v1326, %v1318
        %v1655 = vpack.c.b16 %v1327, %v1319
        %v1656 = vpack.c.b16 %v1328, %v1320
        %v1657 = vpack.c.b16 %v1337, %v1329
        %v1658 = vpack.c.b16 %v1338, %v1330
        %v1659 = vpack.c.b16 %v1339, %v1331
        %v1660 = vpack.c.b16 %v1340, %v1332
        %v1661 = vpack.c.b16 %v1341, %v1333
        %v1662 = vpack.c.b16 %v1342, %v1334
        %v1663 = vpack.c.b16 %v1343, %v1335
        %v1664 = vpack.c.b16 %v1344, %v1336
        %v1665 = vpack.c.b16 %v1353, %v1345
        %v1666 = vpack.c.b16 %v1354, %v1346
        %v1667 = vpack.c.b16 %v1355, %v1347
        %v1668 = vpack.c.b16 %v1356, %v1348
        %v1669 = vpack.c.b16 %v1357, %v1349
        %v1670 = vpack.c.b16 %v1358, %v1350
        %v1671 = vpack.c.b16 %v1359, %v1351
        %v1672 = vpack.c.b16 %v1360, %v1352
        %v1673 = vpack.c.b16 %v1369, %v1361
        %v1674 = vpack.c.b16 %v1370, %v1362
        %v1675 = vpack.c.b16 %v1371, %v1363
        %v1676 = vpack.c.b16 %v1372, %v1364
        %v1677 = vpack.c.b16 %v1373, %v1365
        %v1678 = vpack.c.b16 %v1374, %v1366
        %v1679 = vpack.c.b16 %v1375, %v1367
        %v1680 = vpack.c.b16 %v1376, %v1368
        %v1681 = vpack.c.b16 %v1385, %v1377
        %v1682 = vpack.c.b16 %v1386, %v1378
        %v1683 = vpack.c.b16 %v1387, %v1379
        %v1684 = vpack.c.b16 %v1388, %v1380
        %v1685 = vpack.c.b16 %v1389, %v1381
        %v1686 = vpack.c.b16 %v1390, %v1382
        %v1687 = vpack.c.b16 %v1391, %v1383
        %v1688 = vpack.c.b16 %v1392, %v1384
        %v1689 = vpack.c.b16 %v1401, %v1393
        %v1690 = vpack.c.b16 %v1402, %v1394
        %v1691 = vpack.c.b16 %v1403, %v1395
        %v1692 = vpack.c.b16 %v1404, %v1396
        %v1693 = vpack.c.b16 %v1405, %v1397
        %v1694 = vpack.c.b16 %v1406, %v1398
        %v1695 = vpack.c.b16 %v1407, %v1399
        %v1696 = vpack.c.b16 %v1408, %v1400
        %v1697 = vpack.c.b16 %v1417, %v1409
        %v1698 = vpack.c.b16 %v1418, %v1410
        %v1699 = vpack.c.b16 %v1419, %v1411
        %v1700 = vpack.c.b16 %v1420, %v1412
        %v1701 = vpack.c.b16 %v1421, %v1413
        %v1702 = vpack.c.b16 %v1422, %v1414
        %v1703 = vpack.c.b16 %v1423, %v1415
        %v1704 = vpack.c.b16 %v1424, %v1416
        %v1705 = vpack.c.b16 %v1433, %v1425
        %v1706 = vpack.c.b16 %v1434, %v1426
        %v1707 = vpack.c.b16 %v1435, %v1427
        %v1708 = vpack.c.b16 %v1436, %v1428
        %v1709 = vpack.c.b16 %v1437, %v1429
        %v1710 = vpack.c.b16 %v1438, %v1430
        %v1711 = vpack.c.b16 %v1439, %v1431
        %v1712 = vpack.c.b16 %v1440, %v1432
        %v1713 = vpack.c.b16 %v1449, %v1441
        %v1714 = vpack.c.b16 %v1450, %v1442
        %v1715 = vpack.c.b16 %v1451, %v1443
        %v1716 = vpack.c.b16 %v1452, %v1444
        %v1717 = vpack.c.b16 %v1453, %v1445
        %v1718 = vpack.c.b16 %v1454, %v1446
        %v1719 = vpack.c.b16 %v1455, %v1447
        %v1720 = vpack.c.b16 %v1456, %v1448
        %v1721 = vpack.c.b16 %v1465, %v1457
        %v1722 = vpack.c.b16 %v1466, %v1458
        %v1723 = vpack.c.b16 %v1467, %v1459
        %v1724 = vpack.c.b16 %v1468, %v1460
        %v1725 = vpack.c.b16 %v1469, %v1461
        %v1726 = vpack.c.b16 %v1470, %v1462
        %v1727 = vpack.c.b16 %v1471, %v1463
        %v1728 = vpack.c.b16 %v1472, %v1464
        %1985 = vmatprep.subr.bf16.mxu0 %v1474
        %1986 = vmatpush1.bf16.msra.mxu0 %v1473
        %1987 = vmatprep.subr.bf16.mxu0 %v1482
        %1988 = vmatpush1.bf16.msra.mxu0 %v1481
        %1989 = vmatprep.subr.bf16.mxu0 %v1490
        %1990 = vmatpush1.bf16.msra.mxu0 %v1489
        %1991 = vmatprep.subr.bf16.mxu0 %v1498
        %1992 = vmatpush1.bf16.msra.mxu0 %v1497
        %1993 = vmatprep.subr.bf16.mxu0 %v1506
        %1994 = vmatpush1.bf16.msra.mxu0 %v1505
        %1995 = vmatprep.subr.bf16.mxu0 %v1514
        %1996 = vmatpush1.bf16.msra.mxu0 %v1513
        %1997 = vmatprep.subr.bf16.mxu0 %v1522
        %1998 = vmatpush1.bf16.msra.mxu0 %v1521
        %1999 = vmatprep.subr.bf16.mxu0 %v1530
        %2000 = vmatpush1.bf16.msra.mxu0 %v1529
        %2001 = vmatprep.subr.bf16.mxu0 %v1538
        %2002 = vmatpush1.bf16.msra.mxu0 %v1537
        %2003 = vmatprep.subr.bf16.mxu0 %v1546
        %2004 = vmatpush1.bf16.msra.mxu0 %v1545
        %2005 = vmatprep.subr.bf16.mxu0 %v1554
        %2006 = vmatpush1.bf16.msra.mxu0 %v1553
        %2007 = vmatprep.subr.bf16.mxu0 %v1562
        %2008 = vmatpush1.bf16.msra.mxu0 %v1561
        %2009 = vmatprep.subr.bf16.mxu0 %v1570
        %2010 = vmatpush1.bf16.msra.mxu0 %v1569
        %2011 = vmatprep.subr.bf16.mxu0 %v1578
        %2012 = vmatpush1.bf16.msra.mxu0 %v1577
        %2013 = vmatprep.subr.bf16.mxu0 %v1586
        %2014 = vmatpush1.bf16.msra.mxu0 %v1585
        %2015 = vmatprep.subr.bf16.mxu0 %v1594
        %2016 = vmatpush1.bf16.msra.mxu0 %v1593
        %2017 = vmatprep.mubr.bf16.mxu0 %v698
        %2018 = vmatmul.mubr.bf16.gmra.mrb[0].mxu0 %v697
        %v2019 = vpop.f32.mrb[0].mxu0
        %v2020 = vadd.f32 0.0, %v2019
        %v2021 = vpop.f32.mrb[0].mxu0
        %v2022 = vadd.f32 0.0, %v2021
        %v2023 = vpop.f32.mrb[0].mxu0
        %v2024 = vadd.f32 0.0, %v2023
        %v2025 = vpop.f32.mrb[0].mxu0
        %v2026 = vadd.f32 0.0, %v2025
        %2027 = vdwg.mxu0
        %2028 = vmatprep.subr.bf16.mxu0 %v1602
        %2029 = vmatpush1.bf16.msra.mxu0 %v1601
        %2030 = vmatprep.subr.bf16.mxu0 %v1610
        %2031 = vmatpush1.bf16.msra.mxu0 %v1609
        %2032 = vmatprep.subr.bf16.mxu0 %v1618
        %2033 = vmatpush1.bf16.msra.mxu0 %v1617
        %2034 = vmatprep.subr.bf16.mxu0 %v1626
        %2035 = vmatpush1.bf16.msra.mxu0 %v1625
        %2036 = vmatprep.subr.bf16.mxu0 %v1634
        %2037 = vmatpush1.bf16.msra.mxu0 %v1633
        %2038 = vmatprep.subr.bf16.mxu0 %v1642
        %2039 = vmatpush1.bf16.msra.mxu0 %v1641
        %2040 = vmatprep.subr.bf16.mxu0 %v1650
        %2041 = vmatpush1.bf16.msra.mxu0 %v1649
        %2042 = vmatprep.subr.bf16.mxu0 %v1658
        %2043 = vmatpush1.bf16.msra.mxu0 %v1657
        %2044 = vmatprep.subr.bf16.mxu0 %v1666
        %2045 = vmatpush1.bf16.msra.mxu0 %v1665
        %2046 = vmatprep.subr.bf16.mxu0 %v1674
        %2047 = vmatpush1.bf16.msra.mxu0 %v1673
        %2048 = vmatprep.subr.bf16.mxu0 %v1682
        %2049 = vmatpush1.bf16.msra.mxu0 %v1681
        %2050 = vmatprep.subr.bf16.mxu0 %v1690
        %2051 = vmatpush1.bf16.msra.mxu0 %v1689
        %2052 = vmatprep.subr.bf16.mxu0 %v1698
        %2053 = vmatpush1.bf16.msra.mxu0 %v1697
        %2054 = vmatprep.subr.bf16.mxu0 %v1706
        %2055 = vmatpush1.bf16.msra.mxu0 %v1705
        %2056 = vmatprep.subr.bf16.mxu0 %v1714
        %2057 = vmatpush1.bf16.msra.mxu0 %v1713
        %2058 = vmatprep.subr.bf16.mxu0 %v1722
        %2059 = vmatpush1.bf16.msra.mxu0 %v1721
        %2060 = vmatprep.mubr.bf16.mxu0 %v700
        %2061 = vmatmul.mubr.bf16.gmra.mrb[0].mxu0 %v699
        %v2062 = vpop.f32.mrb[0].mxu0
        %v2063 = vadd.f32 %v2020, %v2062
        %v2064 = vpop.f32.mrb[0].mxu0
        %v2065 = vadd.f32 %v2022, %v2064
        %v2066 = vpop.f32.mrb[0].mxu0
        %v2067 = vadd.f32 %v2024, %v2066
        %v2068 = vpop.f32.mrb[0].mxu0
        %v2069 = vadd.f32 %v2026, %v2068
        %2070 = vdwg.mxu0
        %2071 = vmatprep.subr.bf16.mxu0 %v1476
        %2072 = vmatpush1.bf16.msra.mxu0 %v1475
        %2073 = vmatprep.subr.bf16.mxu0 %v1484
        %2074 = vmatpush1.bf16.msra.mxu0 %v1483
        %2075 = vmatprep.subr.bf16.mxu0 %v1492
        %2076 = vmatpush1.bf16.msra.mxu0 %v1491
        %2077 = vmatprep.subr.bf16.mxu0 %v1500
        %2078 = vmatpush1.bf16.msra.mxu0 %v1499
        %2079 = vmatprep.subr.bf16.mxu0 %v1508
        %2080 = vmatpush1.bf16.msra.mxu0 %v1507
        %2081 = vmatprep.subr.bf16.mxu0 %v1516
        %2082 = vmatpush1.bf16.msra.mxu0 %v1515
        %2083 = vmatprep.subr.bf16.mxu0 %v1524
        %2084 = vmatpush1.bf16.msra.mxu0 %v1523
        %2085 = vmatprep.subr.bf16.mxu0 %v1532
        %2086 = vmatpush1.bf16.msra.mxu0 %v1531
        %2087 = vmatprep.subr.bf16.mxu0 %v1540
        %2088 = vmatpush1.bf16.msra.mxu0 %v1539
        %2089 = vmatprep.subr.bf16.mxu0 %v1548
        %2090 = vmatpush1.bf16.msra.mxu0 %v1547
        %2091 = vmatprep.subr.bf16.mxu0 %v1556
        %2092 = vmatpush1.bf16.msra.mxu0 %v1555
        %2093 = vmatprep.subr.bf16.mxu0 %v1564
        %2094 = vmatpush1.bf16.msra.mxu0 %v1563
        %2095 = vmatprep.subr.bf16.mxu0 %v1572
        %2096 = vmatpush1.bf16.msra.mxu0 %v1571
        %2097 = vmatprep.subr.bf16.mxu0 %v1580
        %2098 = vmatpush1.bf16.msra.mxu0 %v1579
        %2099 = vmatprep.subr.bf16.mxu0 %v1588
        %2100 = vmatpush1.bf16.msra.mxu0 %v1587
        %2101 = vmatprep.subr.bf16.mxu0 %v1596
        %2102 = vmatpush1.bf16.msra.mxu0 %v1595
        %2103 = vmatprep.mubr.bf16.mxu0 %v698
        %2104 = vmatmul.mubr.bf16.gmra.mrb[0].mxu0 %v697
        %v2105 = vpop.f32.mrb[0].mxu0
        %v2106 = vadd.f32 0.0, %v2105
        %v2107 = vpop.f32.mrb[0].mxu0
        %v2108 = vadd.f32 0.0, %v2107
        %v2109 = vpop.f32.mrb[0].mxu0
        %v2110 = vadd.f32 0.0, %v2109
        %v2111 = vpop.f32.mrb[0].mxu0
        %v2112 = vadd.f32 0.0, %v2111
        %2113 = vdwg.mxu0
        %2114 = vmatprep.subr.bf16.mxu0 %v1604
        %2115 = vmatpush1.bf16.msra.mxu0 %v1603
        %2116 = vmatprep.subr.bf16.mxu0 %v1612
        %2117 = vmatpush1.bf16.msra.mxu0 %v1611
        %2118 = vmatprep.subr.bf16.mxu0 %v1620
        %2119 = vmatpush1.bf16.msra.mxu0 %v1619
        %2120 = vmatprep.subr.bf16.mxu0 %v1628
        %2121 = vmatpush1.bf16.msra.mxu0 %v1627
        %2122 = vmatprep.subr.bf16.mxu0 %v1636
        %2123 = vmatpush1.bf16.msra.mxu0 %v1635
        %2124 = vmatprep.subr.bf16.mxu0 %v1644
        %2125 = vmatpush1.bf16.msra.mxu0 %v1643
        %2126 = vmatprep.subr.bf16.mxu0 %v1652
        %2127 = vmatpush1.bf16.msra.mxu0 %v1651
        %2128 = vmatprep.subr.bf16.mxu0 %v1660
        %2129 = vmatpush1.bf16.msra.mxu0 %v1659
        %2130 = vmatprep.subr.bf16.mxu0 %v1668
        %2131 = vmatpush1.bf16.msra.mxu0 %v1667
        %2132 = vmatprep.subr.bf16.mxu0 %v1676
        %2133 = vmatpush1.bf16.msra.mxu0 %v1675
        %2134 = vmatprep.subr.bf16.mxu0 %v1684
        %2135 = vmatpush1.bf16.msra.mxu0 %v1683
        %2136 = vmatprep.subr.bf16.mxu0 %v1692
        %2137 = vmatpush1.bf16.msra.mxu0 %v1691
        %2138 = vmatprep.subr.bf16.mxu0 %v1700
        %2139 = vmatpush1.bf16.msra.mxu0 %v1699
        %2140 = vmatprep.subr.bf16.mxu0 %v1708
        %2141 = vmatpush1.bf16.msra.mxu0 %v1707
        %2142 = vmatprep.subr.bf16.mxu0 %v1716
        %2143 = vmatpush1.bf16.msra.mxu0 %v1715
        %2144 = vmatprep.subr.bf16.mxu0 %v1724
        %2145 = vmatpush1.bf16.msra.mxu0 %v1723
        %2146 = vmatprep.mubr.bf16.mxu0 %v700
        %2147 = vmatmul.mubr.bf16.gmra.mrb[0].mxu0 %v699
        %v2148 = vpop.f32.mrb[0].mxu0
        %v2149 = vadd.f32 %v2106, %v2148
        %v2150 = vpop.f32.mrb[0].mxu0
        %v2151 = vadd.f32 %v2108, %v2150
        %v2152 = vpop.f32.mrb[0].mxu0
        %v2153 = vadd.f32 %v2110, %v2152
        %v2154 = vpop.f32.mrb[0].mxu0
        %v2155 = vadd.f32 %v2112, %v2154
        %2156 = vdwg.mxu0
        %2157 = vmatprep.subr.bf16.mxu0 %v1478
        %2158 = vmatpush1.bf16.msra.mxu0 %v1477
        %2159 = vmatprep.subr.bf16.mxu0 %v1486
        %2160 = vmatpush1.bf16.msra.mxu0 %v1485
        %2161 = vmatprep.subr.bf16.mxu0 %v1494
        %2162 = vmatpush1.bf16.msra.mxu0 %v1493
        %2163 = vmatprep.subr.bf16.mxu0 %v1502
        %2164 = vmatpush1.bf16.msra.mxu0 %v1501
        %2165 = vmatprep.subr.bf16.mxu0 %v1510
        %2166 = vmatpush1.bf16.msra.mxu0 %v1509
        %2167 = vmatprep.subr.bf16.mxu0 %v1518
        %2168 = vmatpush1.bf16.msra.mxu0 %v1517
        %2169 = vmatprep.subr.bf16.mxu0 %v1526
        %2170 = vmatpush1.bf16.msra.mxu0 %v1525
        %2171 = vmatprep.subr.bf16.mxu0 %v1534
        %2172 = vmatpush1.bf16.msra.mxu0 %v1533
        %2173 = vmatprep.subr.bf16.mxu0 %v1542
        %2174 = vmatpush1.bf16.msra.mxu0 %v1541
        %2175 = vmatprep.subr.bf16.mxu0 %v1550
        %2176 = vmatpush1.bf16.msra.mxu0 %v1549
        %2177 = vmatprep.subr.bf16.mxu0 %v1558
        %2178 = vmatpush1.bf16.msra.mxu0 %v1557
        %2179 = vmatprep.subr.bf16.mxu0 %v1566
        %2180 = vmatpush1.bf16.msra.mxu0 %v1565
        %2181 = vmatprep.subr.bf16.mxu0 %v1574
        %2182 = vmatpush1.bf16.msra.mxu0 %v1573
        %2183 = vmatprep.subr.bf16.mxu0 %v1582
        %2184 = vmatpush1.bf16.msra.mxu0 %v1581
        %2185 = vmatprep.subr.bf16.mxu0 %v1590
        %2186 = vmatpush1.bf16.msra.mxu0 %v1589
        %2187 = vmatprep.subr.bf16.mxu0 %v1598
        %2188 = vmatpush1.bf16.msra.mxu0 %v1597
        %2189 = vmatprep.mubr.bf16.mxu0 %v698
        %2190 = vmatmul.mubr.bf16.gmra.mrb[0].mxu0 %v697
        %v2191 = vpop.f32.mrb[0].mxu0
        %v2192 = vadd.f32 0.0, %v2191
        %v2193 = vpop.f32.mrb[0].mxu0
        %v2194 = vadd.f32 0.0, %v2193
        %v2195 = vpop.f32.mrb[0].mxu0
        %v2196 = vadd.f32 0.0, %v2195
        %v2197 = vpop.f32.mrb[0].mxu0
        %v2198 = vadd.f32 0.0, %v2197
        %2199 = vdwg.mxu0
        %2200 = vmatprep.subr.bf16.mxu0 %v1606
        %2201 = vmatpush1.bf16.msra.mxu0 %v1605
        %2202 = vmatprep.subr.bf16.mxu0 %v1614
        %2203 = vmatpush1.bf16.msra.mxu0 %v1613
        %2204 = vmatprep.subr.bf16.mxu0 %v1622
        %2205 = vmatpush1.bf16.msra.mxu0 %v1621
        %2206 = vmatprep.subr.bf16.mxu0 %v1630
        %2207 = vmatpush1.bf16.msra.mxu0 %v1629
        %2208 = vmatprep.subr.bf16.mxu0 %v1638
        %2209 = vmatpush1.bf16.msra.mxu0 %v1637
        %2210 = vmatprep.subr.bf16.mxu0 %v1646
        %2211 = vmatpush1.bf16.msra.mxu0 %v1645
        %2212 = vmatprep.subr.bf16.mxu0 %v1654
        %2213 = vmatpush1.bf16.msra.mxu0 %v1653
        %2214 = vmatprep.subr.bf16.mxu0 %v1662
        %2215 = vmatpush1.bf16.msra.mxu0 %v1661
        %2216 = vmatprep.subr.bf16.mxu0 %v1670
        %2217 = vmatpush1.bf16.msra.mxu0 %v1669
        %2218 = vmatprep.subr.bf16.mxu0 %v1678
        %2219 = vmatpush1.bf16.msra.mxu0 %v1677
        %2220 = vmatprep.subr.bf16.mxu0 %v1686
        %2221 = vmatpush1.bf16.msra.mxu0 %v1685
        %2222 = vmatprep.subr.bf16.mxu0 %v1694
        %2223 = vmatpush1.bf16.msra.mxu0 %v1693
        %2224 = vmatprep.subr.bf16.mxu0 %v1702
        %2225 = vmatpush1.bf16.msra.mxu0 %v1701
        %2226 = vmatprep.subr.bf16.mxu0 %v1710
        %2227 = vmatpush1.bf16.msra.mxu0 %v1709
        %2228 = vmatprep.subr.bf16.mxu0 %v1718
        %2229 = vmatpush1.bf16.msra.mxu0 %v1717
        %2230 = vmatprep.subr.bf16.mxu0 %v1726
        %2231 = vmatpush1.bf16.msra.mxu0 %v1725
        %2232 = vmatprep.mubr.bf16.mxu0 %v700
        %2233 = vmatmul.mubr.bf16.gmra.mrb[0].mxu0 %v699
        %v2234 = vpop.f32.mrb[0].mxu0
        %v2235 = vadd.f32 %v2192, %v2234
        %v2236 = vpop.f32.mrb[0].mxu0
        %v2237 = vadd.f32 %v2194, %v2236
        %v2238 = vpop.f32.mrb[0].mxu0
        %v2239 = vadd.f32 %v2196, %v2238
        %v2240 = vpop.f32.mrb[0].mxu0
        %v2241 = vadd.f32 %v2198, %v2240
        %2242 = vdwg.mxu0
        %2243 = vmatprep.subr.bf16.mxu0 %v1480
        %2244 = vmatpush1.bf16.msra.mxu0 %v1479
        %2245 = vmatprep.subr.bf16.mxu0 %v1488
        %2246 = vmatpush1.bf16.msra.mxu0 %v1487
        %2247 = vmatprep.subr.bf16.mxu0 %v1496
        %2248 = vmatpush1.bf16.msra.mxu0 %v1495
        %2249 = vmatprep.subr.bf16.mxu0 %v1504
        %2250 = vmatpush1.bf16.msra.mxu0 %v1503
        %2251 = vmatprep.subr.bf16.mxu0 %v1512
        %2252 = vmatpush1.bf16.msra.mxu0 %v1511
        %2253 = vmatprep.subr.bf16.mxu0 %v1520
        %2254 = vmatpush1.bf16.msra.mxu0 %v1519
        %2255 = vmatprep.subr.bf16.mxu0 %v1528
        %2256 = vmatpush1.bf16.msra.mxu0 %v1527
        %2257 = vmatprep.subr.bf16.mxu0 %v1536
        %2258 = vmatpush1.bf16.msra.mxu0 %v1535
        %2259 = vmatprep.subr.bf16.mxu0 %v1544
        %2260 = vmatpush1.bf16.msra.mxu0 %v1543
        %2261 = vmatprep.subr.bf16.mxu0 %v1552
        %2262 = vmatpush1.bf16.msra.mxu0 %v1551
        %2263 = vmatprep.subr.bf16.mxu0 %v1560
        %2264 = vmatpush1.bf16.msra.mxu0 %v1559
        %2265 = vmatprep.subr.bf16.mxu0 %v1568
        %2266 = vmatpush1.bf16.msra.mxu0 %v1567
        %2267 = vmatprep.subr.bf16.mxu0 %v1576
        %2268 = vmatpush1.bf16.msra.mxu0 %v1575
        %2269 = vmatprep.subr.bf16.mxu0 %v1584
        %2270 = vmatpush1.bf16.msra.mxu0 %v1583
        %2271 = vmatprep.subr.bf16.mxu0 %v1592
        %2272 = vmatpush1.bf16.msra.mxu0 %v1591
        %2273 = vmatprep.subr.bf16.mxu0 %v1600
        %2274 = vmatpush1.bf16.msra.mxu0 %v1599
        %2275 = vmatprep.mubr.bf16.mxu0 %v698
        %2276 = vmatmul.mubr.bf16.gmra.mrb[0].mxu0 %v697
        %v2277 = vpop.f32.mrb[0].mxu0
        %v2278 = vadd.f32 0.0, %v2277
        %v2279 = vpop.f32.mrb[0].mxu0
        %v2280 = vadd.f32 0.0, %v2279
        %v2281 = vpop.f32.mrb[0].mxu0
        %v2282 = vadd.f32 0.0, %v2281
        %v2283 = vpop.f32.mrb[0].mxu0
        %v2284 = vadd.f32 0.0, %v2283
        %2285 = vdwg.mxu0
        %2286 = vmatprep.subr.bf16.mxu0 %v1608
        %2287 = vmatpush1.bf16.msra.mxu0 %v1607
        %2288 = vmatprep.subr.bf16.mxu0 %v1616
        %2289 = vmatpush1.bf16.msra.mxu0 %v1615
        %2290 = vmatprep.subr.bf16.mxu0 %v1624
        %2291 = vmatpush1.bf16.msra.mxu0 %v1623
        %2292 = vmatprep.subr.bf16.mxu0 %v1632
        %2293 = vmatpush1.bf16.msra.mxu0 %v1631
        %2294 = vmatprep.subr.bf16.mxu0 %v1640
        %2295 = vmatpush1.bf16.msra.mxu0 %v1639
        %2296 = vmatprep.subr.bf16.mxu0 %v1648
        %2297 = vmatpush1.bf16.msra.mxu0 %v1647
        %2298 = vmatprep.subr.bf16.mxu0 %v1656
        %2299 = vmatpush1.bf16.msra.mxu0 %v1655
        %2300 = vmatprep.subr.bf16.mxu0 %v1664
        %2301 = vmatpush1.bf16.msra.mxu0 %v1663
        %2302 = vmatprep.subr.bf16.mxu0 %v1672
        %2303 = vmatpush1.bf16.msra.mxu0 %v1671
        %2304 = vmatprep.subr.bf16.mxu0 %v1680
        %2305 = vmatpush1.bf16.msra.mxu0 %v1679
        %2306 = vmatprep.subr.bf16.mxu0 %v1688
        %2307 = vmatpush1.bf16.msra.mxu0 %v1687
        %2308 = vmatprep.subr.bf16.mxu0 %v1696
        %2309 = vmatpush1.bf16.msra.mxu0 %v1695
        %2310 = vmatprep.subr.bf16.mxu0 %v1704
        %2311 = vmatpush1.bf16.msra.mxu0 %v1703
        %2312 = vmatprep.subr.bf16.mxu0 %v1712
        %2313 = vmatpush1.bf16.msra.mxu0 %v1711
        %2314 = vmatprep.subr.bf16.mxu0 %v1720
        %2315 = vmatpush1.bf16.msra.mxu0 %v1719
        %2316 = vmatprep.subr.bf16.mxu0 %v1728
        %2317 = vmatpush1.bf16.msra.mxu0 %v1727
        %2318 = vmatprep.mubr.bf16.mxu0 %v700
        %2319 = vmatmul.mubr.bf16.gmra.mrb[0].mxu0 %v699
        %v2320 = vpop.f32.mrb[0].mxu0
        %v2321 = vadd.f32 %v2278, %v2320
        %v2322 = vpop.f32.mrb[0].mxu0
        %v2323 = vadd.f32 %v2280, %v2322
        %v2324 = vpop.f32.mrb[0].mxu0
        %v2325 = vadd.f32 %v2282, %v2324
        %v2326 = vpop.f32.mrb[0].mxu0
        %v2327 = vadd.f32 %v2284, %v2326
        %2328 = vdwg.mxu0
        %v2329 = vadd.f32 %v409, %v2063
        %v2330 = vadd.f32 %v410, %v2065
        %v2331 = vadd.f32 %v411, %v2149
        %v2332 = vadd.f32 %v412, %v2151
        %v2333 = vadd.f32 %v413, %v2235
        %v2334 = vadd.f32 %v414, %v2237
        %v2335 = vadd.f32 %v415, %v2321
        %v2336 = vadd.f32 %v416, %v2323
        %v2337 = vadd.f32 %v417, %v2067
        %v2338 = vadd.f32 %v418, %v2069
        %v2339 = vadd.f32 %v419, %v2153
        %v2340 = vadd.f32 %v420, %v2155
        %v2341 = vadd.f32 %v421, %v2239
        %v2342 = vadd.f32 %v422, %v2241
        %v2343 = vadd.f32 %v423, %v2325
        %v2344 = vadd.f32 %v424, %v2327
        %2345 = vst [vmem:[#allocation2] sm:$0xff] %v2329
        %2346 = vst [vmem:[#allocation2 + $0x8] sm:$0xff] %v2330
        %2347 = vst [vmem:[#allocation2 + $0x10] sm:$0xff] %v2331
        %2348 = vst [vmem:[#allocation2 + $0x18] sm:$0xff] %v2332
        %2349 = vst [vmem:[#allocation2 + $0x20] sm:$0xff] %v2333
        %2350 = vst [vmem:[#allocation2 + $0x28] sm:$0xff] %v2334
        %2351 = vst [vmem:[#allocation2 + $0x30] sm:$0xff] %v2335
        %2352 = vst [vmem:[#allocation2 + $0x38] sm:$0xff] %v2336
        %2353 = vst [vmem:[#allocation2 + $0x40] sm:$0xff] %v2337
        %2354 = vst [vmem:[#allocation2 + $0x48] sm:$0xff] %v2338
        %2355 = vst [vmem:[#allocation2 + $0x50] sm:$0xff] %v2339
        %2356 = vst [vmem:[#allocation2 + $0x58] sm:$0xff] %v2340
        %2357 = vst [vmem:[#allocation2 + $0x60] sm:$0xff] %v2341
        %2358 = vst [vmem:[#allocation2 + $0x68] sm:$0xff] %v2342
        %2359 = vst [vmem:[#allocation2 + $0x70] sm:$0xff] %v2343
        %2360 = vst [vmem:[#allocation2 + $0x78] sm:$0xff] %v2344
        %p2361 = scmp.eq.s32.totalorder %s32, 1
        // Predicated region
        $region69: #{tpu_custom_call.1} parent=43 // pred_check
          %p2362 = pneg %p2361
        $region70: #{tpu_custom_call.1} parent=43 // pred_check_branch
          %2364 = sbr.rel (%p2362) target = $region72
        $region71: #{tpu_custom_call.1} parent=43 // pred_region
          %v2365 = vld [vmem:[#allocation2] sm:$0xff]
          %v2366 = vld [vmem:[#allocation2 + $0x8] sm:$0xff]
          %v2367 = vld [vmem:[#allocation2 + $0x10] sm:$0xff]
          %v2368 = vld [vmem:[#allocation2 + $0x18] sm:$0xff]
          %v2369 = vld [vmem:[#allocation2 + $0x20] sm:$0xff]
          %v2370 = vld [vmem:[#allocation2 + $0x28] sm:$0xff]
          %v2371 = vld [vmem:[#allocation2 + $0x30] sm:$0xff]
          %v2372 = vld [vmem:[#allocation2 + $0x38] sm:$0xff]
          %v2373 = vld [vmem:[#allocation2 + $0x40] sm:$0xff]
          %v2374 = vld [vmem:[#allocation2 + $0x48] sm:$0xff]
          %v2375 = vld [vmem:[#allocation2 + $0x50] sm:$0xff]
          %v2376 = vld [vmem:[#allocation2 + $0x58] sm:$0xff]
          %v2377 = vld [vmem:[#allocation2 + $0x60] sm:$0xff]
          %v2378 = vld [vmem:[#allocation2 + $0x68] sm:$0xff]
          %v2379 = vld [vmem:[#allocation2 + $0x70] sm:$0xff]
          %v2380 = vld [vmem:[#allocation2 + $0x78] sm:$0xff]
          %v2381 = vld [vmem:[#allocation8] sm:$0xff]
          %v2383 = vlaneseq
          %v2384 = vshrl.u32 %v2383, 7
          %v2385 = vsub.s32 0, %v2384
          %v2386 = vrot.slane %v2381, %v2385
          %v2387 = vlaneseq
          %v2388 = vshrl.u32 %v2387, 7
          %v2389 = vsub.s32 1, %v2388
          %v2390 = vrot.slane %v2381, %v2389
          %v2391 = vlaneseq
          %v2392 = vshrl.u32 %v2391, 7
          %v2393 = vsub.s32 2, %v2392
          %v2394 = vrot.slane %v2381, %v2393
          %v2395 = vlaneseq
          %v2396 = vshrl.u32 %v2395, 7
          %v2397 = vsub.s32 3, %v2396
          %v2398 = vrot.slane %v2381, %v2397
          %v2399 = vlaneseq
          %v2400 = vshrl.u32 %v2399, 7
          %v2401 = vsub.s32 4, %v2400
          %v2402 = vrot.slane %v2381, %v2401
          %v2403 = vlaneseq
          %v2404 = vshrl.u32 %v2403, 7
          %v2405 = vsub.s32 5, %v2404
          %v2406 = vrot.slane %v2381, %v2405
          %v2407 = vlaneseq
          %v2408 = vshrl.u32 %v2407, 7
          %v2409 = vsub.s32 6, %v2408
          %v2410 = vrot.slane %v2381, %v2409
          %v2411 = vlaneseq
          %v2412 = vshrl.u32 %v2411, 7
          %v2413 = vsub.s32 7, %v2412
          %v2414 = vrot.slane %v2381, %v2413
          %v2423 = vadd.f32 %v2365, %v2386
          %v2424 = vadd.f32 %v2366, %v2390
          %v2425 = vadd.f32 %v2367, %v2394
          %v2426 = vadd.f32 %v2368, %v2398
          %v2427 = vadd.f32 %v2369, %v2402
          %v2428 = vadd.f32 %v2370, %v2406
          %v2429 = vadd.f32 %v2371, %v2410
          %v2430 = vadd.f32 %v2372, %v2414
          %v2431 = vadd.f32 %v2373, %v2386
          %v2432 = vadd.f32 %v2374, %v2390
          %v2433 = vadd.f32 %v2375, %v2394
          %v2434 = vadd.f32 %v2376, %v2398
          %v2435 = vadd.f32 %v2377, %v2402
          %v2436 = vadd.f32 %v2378, %v2406
          %v2437 = vadd.f32 %v2379, %v2410
          %v2438 = vadd.f32 %v2380, %v2414
          %v2439 = vpack.c.bf16 %v2431, %v2423
          %v2440 = vpack.c.bf16 %v2432, %v2424
          %v2441 = vpack.c.bf16 %v2433, %v2425
          %v2442 = vpack.c.bf16 %v2434, %v2426
          %v2443 = vpack.c.bf16 %v2435, %v2427
          %v2444 = vpack.c.bf16 %v2436, %v2428
          %v2445 = vpack.c.bf16 %v2437, %v2429
          %v2446 = vpack.c.bf16 %v2438, %v2430
          %v2447 = vld [vmem:[#allocation9] sm:$0xf]
          %v2448 = vld [vmem:[#allocation9 + $0x4] sm:$0xf]
          %v2449 = vld [vmem:[#allocation9 + $0x8] sm:$0xf]
          %v2450 = vld [vmem:[#allocation9 + $0xc] sm:$0xf]
          %v2451 = vld [vmem:[#allocation9 + $0x10] sm:$0xf]
          %v2452 = vld [vmem:[#allocation9 + $0x14] sm:$0xf]
          %v2453 = vld [vmem:[#allocation9 + $0x18] sm:$0xf]
          %v2454 = vld [vmem:[#allocation9 + $0x1c] sm:$0xf]
          %v2455 = vld [vmem:[#allocation9 + $0x20] sm:$0xf]
          %v2456 = vld [vmem:[#allocation9 + $0x24] sm:$0xf]
          %v2457 = vld [vmem:[#allocation9 + $0x28] sm:$0xf]
          %v2458 = vld [vmem:[#allocation9 + $0x2c] sm:$0xf]
          %v2459 = vld [vmem:[#allocation9 + $0x30] sm:$0xf]
          %v2460 = vld [vmem:[#allocation9 + $0x34] sm:$0xf]
          %v2461 = vld [vmem:[#allocation9 + $0x38] sm:$0xf]
          %v2462 = vld [vmem:[#allocation9 + $0x3c] sm:$0xf]
          %v2463 = vld [vmem:[#allocation9 + $0x40] sm:$0xf]
          %v2464 = vld [vmem:[#allocation9 + $0x44] sm:$0xf]
          %v2465 = vld [vmem:[#allocation9 + $0x48] sm:$0xf]
          %v2466 = vld [vmem:[#allocation9 + $0x4c] sm:$0xf]
          %v2467 = vld [vmem:[#allocation9 + $0x50] sm:$0xf]
          %v2468 = vld [vmem:[#allocation9 + $0x54] sm:$0xf]
          %v2469 = vld [vmem:[#allocation9 + $0x58] sm:$0xf]
          %v2470 = vld [vmem:[#allocation9 + $0x5c] sm:$0xf]
          %v2471 = vld [vmem:[#allocation9 + $0x60] sm:$0xf]
          %v2472 = vld [vmem:[#allocation9 + $0x64] sm:$0xf]
          %v2473 = vld [vmem:[#allocation9 + $0x68] sm:$0xf]
          %v2474 = vld [vmem:[#allocation9 + $0x6c] sm:$0xf]
          %v2475 = vld [vmem:[#allocation9 + $0x70] sm:$0xf]
          %v2476 = vld [vmem:[#allocation9 + $0x74] sm:$0xf]
          %v2477 = vld [vmem:[#allocation9 + $0x78] sm:$0xf]
          %v2478 = vld [vmem:[#allocation9 + $0x7c] sm:$0xf]
          %v2479 = vld [vmem:[#allocation9 + $0x80] sm:$0xf]
          %v2480 = vld [vmem:[#allocation9 + $0x84] sm:$0xf]
          %v2481 = vld [vmem:[#allocation9 + $0x88] sm:$0xf]
          %v2482 = vld [vmem:[#allocation9 + $0x8c] sm:$0xf]
          %v2483 = vld [vmem:[#allocation9 + $0x90] sm:$0xf]
          %v2484 = vld [vmem:[#allocation9 + $0x94] sm:$0xf]
          %v2485 = vld [vmem:[#allocation9 + $0x98] sm:$0xf]
          %v2486 = vld [vmem:[#allocation9 + $0x9c] sm:$0xf]
          %v2487 = vld [vmem:[#allocation9 + $0xa0] sm:$0xf]
          %v2488 = vld [vmem:[#allocation9 + $0xa4] sm:$0xf]
          %v2489 = vld [vmem:[#allocation9 + $0xa8] sm:$0xf]
          %v2490 = vld [vmem:[#allocation9 + $0xac] sm:$0xf]
          %v2491 = vld [vmem:[#allocation9 + $0xb0] sm:$0xf]
          %v2492 = vld [vmem:[#allocation9 + $0xb4] sm:$0xf]
          %v2493 = vld [vmem:[#allocation9 + $0xb8] sm:$0xf]
          %v2494 = vld [vmem:[#allocation9 + $0xbc] sm:$0xf]
          %v2495 = vld [vmem:[#allocation9 + $0xc0] sm:$0xf]
          %v2496 = vld [vmem:[#allocation9 + $0xc4] sm:$0xf]
          %v2497 = vld [vmem:[#allocation9 + $0xc8] sm:$0xf]
          %v2498 = vld [vmem:[#allocation9 + $0xcc] sm:$0xf]
          %v2499 = vld [vmem:[#allocation9 + $0xd0] sm:$0xf]
          %v2500 = vld [vmem:[#allocation9 + $0xd4] sm:$0xf]
          %v2501 = vld [vmem:[#allocation9 + $0xd8] sm:$0xf]
          %v2502 = vld [vmem:[#allocation9 + $0xdc] sm:$0xf]
          %v2503 = vld [vmem:[#allocation9 + $0xe0] sm:$0xf]
          %v2504 = vld [vmem:[#allocation9 + $0xe4] sm:$0xf]
          %v2505 = vld [vmem:[#allocation9 + $0xe8] sm:$0xf]
          %v2506 = vld [vmem:[#allocation9 + $0xec] sm:$0xf]
          %v2507 = vld [vmem:[#allocation9 + $0xf0] sm:$0xf]
          %v2508 = vld [vmem:[#allocation9 + $0xf4] sm:$0xf]
          %v2509 = vld [vmem:[#allocation9 + $0xf8] sm:$0xf]
          %v2510 = vld [vmem:[#allocation9 + $0xfc] sm:$0xf]
          %v2511 = vld [vmem:[#allocation9 + $0x100] sm:$0xf]
          %v2512 = vld [vmem:[#allocation9 + $0x104] sm:$0xf]
          %v2513 = vld [vmem:[#allocation9 + $0x108] sm:$0xf]
          %v2514 = vld [vmem:[#allocation9 + $0x10c] sm:$0xf]
          %v2515 = vld [vmem:[#allocation9 + $0x110] sm:$0xf]
          %v2516 = vld [vmem:[#allocation9 + $0x114] sm:$0xf]
          %v2517 = vld [vmem:[#allocation9 + $0x118] sm:$0xf]
          %v2518 = vld [vmem:[#allocation9 + $0x11c] sm:$0xf]
          %v2519 = vld [vmem:[#allocation9 + $0x120] sm:$0xf]
          %v2520 = vld [vmem:[#allocation9 + $0x124] sm:$0xf]
          %v2521 = vld [vmem:[#allocation9 + $0x128] sm:$0xf]
          %v2522 = vld [vmem:[#allocation9 + $0x12c] sm:$0xf]
          %v2523 = vld [vmem:[#allocation9 + $0x130] sm:$0xf]
          %v2524 = vld [vmem:[#allocation9 + $0x134] sm:$0xf]
          %v2525 = vld [vmem:[#allocation9 + $0x138] sm:$0xf]
          %v2526 = vld [vmem:[#allocation9 + $0x13c] sm:$0xf]
          %v2527 = vld [vmem:[#allocation9 + $0x140] sm:$0xf]
          %v2528 = vld [vmem:[#allocation9 + $0x144] sm:$0xf]
          %v2529 = vld [vmem:[#allocation9 + $0x148] sm:$0xf]
          %v2530 = vld [vmem:[#allocation9 + $0x14c] sm:$0xf]
          %v2531 = vld [vmem:[#allocation9 + $0x150] sm:$0xf]
          %v2532 = vld [vmem:[#allocation9 + $0x154] sm:$0xf]
          %v2533 = vld [vmem:[#allocation9 + $0x158] sm:$0xf]
          %v2534 = vld [vmem:[#allocation9 + $0x15c] sm:$0xf]
          %v2535 = vld [vmem:[#allocation9 + $0x160] sm:$0xf]
          %v2536 = vld [vmem:[#allocation9 + $0x164] sm:$0xf]
          %v2537 = vld [vmem:[#allocation9 + $0x168] sm:$0xf]
          %v2538 = vld [vmem:[#allocation9 + $0x16c] sm:$0xf]
          %v2539 = vld [vmem:[#allocation9 + $0x170] sm:$0xf]
          %v2540 = vld [vmem:[#allocation9 + $0x174] sm:$0xf]
          %v2541 = vld [vmem:[#allocation9 + $0x178] sm:$0xf]
          %v2542 = vld [vmem:[#allocation9 + $0x17c] sm:$0xf]
          %v2543 = vld [vmem:[#allocation9 + $0x180] sm:$0xf]
          %v2544 = vld [vmem:[#allocation9 + $0x184] sm:$0xf]
          %v2545 = vld [vmem:[#allocation9 + $0x188] sm:$0xf]
          %v2546 = vld [vmem:[#allocation9 + $0x18c] sm:$0xf]
          %v2547 = vld [vmem:[#allocation9 + $0x190] sm:$0xf]
          %v2548 = vld [vmem:[#allocation9 + $0x194] sm:$0xf]
          %v2549 = vld [vmem:[#allocation9 + $0x198] sm:$0xf]
          %v2550 = vld [vmem:[#allocation9 + $0x19c] sm:$0xf]
          %v2551 = vld [vmem:[#allocation9 + $0x1a0] sm:$0xf]
          %v2552 = vld [vmem:[#allocation9 + $0x1a4] sm:$0xf]
          %v2553 = vld [vmem:[#allocation9 + $0x1a8] sm:$0xf]
          %v2554 = vld [vmem:[#allocation9 + $0x1ac] sm:$0xf]
          %v2555 = vld [vmem:[#allocation9 + $0x1b0] sm:$0xf]
          %v2556 = vld [vmem:[#allocation9 + $0x1b4] sm:$0xf]
          %v2557 = vld [vmem:[#allocation9 + $0x1b8] sm:$0xf]
          %v2558 = vld [vmem:[#allocation9 + $0x1bc] sm:$0xf]
          %v2559 = vld [vmem:[#allocation9 + $0x1c0] sm:$0xf]
          %v2560 = vld [vmem:[#allocation9 + $0x1c4] sm:$0xf]
          %v2561 = vld [vmem:[#allocation9 + $0x1c8] sm:$0xf]
          %v2562 = vld [vmem:[#allocation9 + $0x1cc] sm:$0xf]
          %v2563 = vld [vmem:[#allocation9 + $0x1d0] sm:$0xf]
          %v2564 = vld [vmem:[#allocation9 + $0x1d4] sm:$0xf]
          %v2565 = vld [vmem:[#allocation9 + $0x1d8] sm:$0xf]
          %v2566 = vld [vmem:[#allocation9 + $0x1dc] sm:$0xf]
          %v2567 = vld [vmem:[#allocation9 + $0x1e0] sm:$0xf]
          %v2568 = vld [vmem:[#allocation9 + $0x1e4] sm:$0xf]
          %v2569 = vld [vmem:[#allocation9 + $0x1e8] sm:$0xf]
          %v2570 = vld [vmem:[#allocation9 + $0x1ec] sm:$0xf]
          %v2571 = vld [vmem:[#allocation9 + $0x1f0] sm:$0xf]
          %v2572 = vld [vmem:[#allocation9 + $0x1f4] sm:$0xf]
          %v2573 = vld [vmem:[#allocation9 + $0x1f8] sm:$0xf]
          %v2574 = vld [vmem:[#allocation9 + $0x1fc] sm:$0xf]
          %v2575 = vld [vmem:[#allocation11] sm:$0x1]
          %v2577 = vlaneseq
          %v2578 = vshrl.u32 %v2577, 7
          %v2579 = vsub.s32 0, %v2578
          %v2580 = vrot.slane %v2575, %v2579
          %v2710 = vunpack.c.l.b16 %v2447
          %v2711 = vunpack.c.l.b16 %v2448
          %v2712 = vunpack.c.l.b16 %v2449
          %v2713 = vunpack.c.l.b16 %v2450
          %v2714 = vunpack.c.l.b16 %v2451
          %v2715 = vunpack.c.l.b16 %v2452
          %v2716 = vunpack.c.l.b16 %v2453
          %v2717 = vunpack.c.l.b16 %v2454
          %v2718 = vunpack.c.l.b16 %v2455
          %v2719 = vunpack.c.l.b16 %v2456
          %v2720 = vunpack.c.l.b16 %v2457
          %v2721 = vunpack.c.l.b16 %v2458
          %v2722 = vunpack.c.l.b16 %v2459
          %v2723 = vunpack.c.l.b16 %v2460
          %v2724 = vunpack.c.l.b16 %v2461
          %v2725 = vunpack.c.l.b16 %v2462
          %v2726 = vunpack.c.l.b16 %v2463
          %v2727 = vunpack.c.l.b16 %v2464
          %v2728 = vunpack.c.l.b16 %v2465
          %v2729 = vunpack.c.l.b16 %v2466
          %v2730 = vunpack.c.l.b16 %v2467
          %v2731 = vunpack.c.l.b16 %v2468
          %v2732 = vunpack.c.l.b16 %v2469
          %v2733 = vunpack.c.l.b16 %v2470
          %v2734 = vunpack.c.l.b16 %v2471
          %v2735 = vunpack.c.l.b16 %v2472
          %v2736 = vunpack.c.l.b16 %v2473
          %v2737 = vunpack.c.l.b16 %v2474
          %v2738 = vunpack.c.l.b16 %v2475
          %v2739 = vunpack.c.l.b16 %v2476
          %v2740 = vunpack.c.l.b16 %v2477
          %v2741 = vunpack.c.l.b16 %v2478
          %v2742 = vunpack.c.l.b16 %v2479
          %v2743 = vunpack.c.l.b16 %v2480
          %v2744 = vunpack.c.l.b16 %v2481
          %v2745 = vunpack.c.l.b16 %v2482
          %v2746 = vunpack.c.l.b16 %v2483
          %v2747 = vunpack.c.l.b16 %v2484
          %v2748 = vunpack.c.l.b16 %v2485
          %v2749 = vunpack.c.l.b16 %v2486
          %v2750 = vunpack.c.l.b16 %v2487
          %v2751 = vunpack.c.l.b16 %v2488
          %v2752 = vunpack.c.l.b16 %v2489
          %v2753 = vunpack.c.l.b16 %v2490
          %v2754 = vunpack.c.l.b16 %v2491
          %v2755 = vunpack.c.l.b16 %v2492
          %v2756 = vunpack.c.l.b16 %v2493
          %v2757 = vunpack.c.l.b16 %v2494
          %v2758 = vunpack.c.l.b16 %v2495
          %v2759 = vunpack.c.l.b16 %v2496
          %v2760 = vunpack.c.l.b16 %v2497
          %v2761 = vunpack.c.l.b16 %v2498
          %v2762 = vunpack.c.l.b16 %v2499
          %v2763 = vunpack.c.l.b16 %v2500
          %v2764 = vunpack.c.l.b16 %v2501
          %v2765 = vunpack.c.l.b16 %v2502
          %v2766 = vunpack.c.l.b16 %v2503
          %v2767 = vunpack.c.l.b16 %v2504
          %v2768 = vunpack.c.l.b16 %v2505
          %v2769 = vunpack.c.l.b16 %v2506
          %v2770 = vunpack.c.l.b16 %v2507
          %v2771 = vunpack.c.l.b16 %v2508
          %v2772 = vunpack.c.l.b16 %v2509
          %v2773 = vunpack.c.l.b16 %v2510
          %v2774 = vunpack.c.l.b16 %v2511
          %v2775 = vunpack.c.l.b16 %v2512
          %v2776 = vunpack.c.l.b16 %v2513
          %v2777 = vunpack.c.l.b16 %v2514
          %v2778 = vunpack.c.l.b16 %v2515
          %v2779 = vunpack.c.l.b16 %v2516
          %v2780 = vunpack.c.l.b16 %v2517
          %v2781 = vunpack.c.l.b16 %v2518
          %v2782 = vunpack.c.l.b16 %v2519
          %v2783 = vunpack.c.l.b16 %v2520
          %v2784 = vunpack.c.l.b16 %v2521
          %v2785 = vunpack.c.l.b16 %v2522
          %v2786 = vunpack.c.l.b16 %v2523
          %v2787 = vunpack.c.l.b16 %v2524
          %v2788 = vunpack.c.l.b16 %v2525
          %v2789 = vunpack.c.l.b16 %v2526
          %v2790 = vunpack.c.l.b16 %v2527
          %v2791 = vunpack.c.l.b16 %v2528
          %v2792 = vunpack.c.l.b16 %v2529
          %v2793 = vunpack.c.l.b16 %v2530
          %v2794 = vunpack.c.l.b16 %v2531
          %v2795 = vunpack.c.l.b16 %v2532
          %v2796 = vunpack.c.l.b16 %v2533
          %v2797 = vunpack.c.l.b16 %v2534
          %v2798 = vunpack.c.l.b16 %v2535
          %v2799 = vunpack.c.l.b16 %v2536
          %v2800 = vunpack.c.l.b16 %v2537
          %v2801 = vunpack.c.l.b16 %v2538
          %v2802 = vunpack.c.l.b16 %v2539
          %v2803 = vunpack.c.l.b16 %v2540
          %v2804 = vunpack.c.l.b16 %v2541
          %v2805 = vunpack.c.l.b16 %v2542
          %v2806 = vunpack.c.l.b16 %v2543
          %v2807 = vunpack.c.l.b16 %v2544
          %v2808 = vunpack.c.l.b16 %v2545
          %v2809 = vunpack.c.l.b16 %v2546
          %v2810 = vunpack.c.l.b16 %v2547
          %v2811 = vunpack.c.l.b16 %v2548
          %v2812 = vunpack.c.l.b16 %v2549
          %v2813 = vunpack.c.l.b16 %v2550
          %v2814 = vunpack.c.l.b16 %v2551
          %v2815 = vunpack.c.l.b16 %v2552
          %v2816 = vunpack.c.l.b16 %v2553
          %v2817 = vunpack.c.l.b16 %v2554
          %v2818 = vunpack.c.l.b16 %v2555
          %v2819 = vunpack.c.l.b16 %v2556
          %v2820 = vunpack.c.l.b16 %v2557
          %v2821 = vunpack.c.l.b16 %v2558
          %v2822 = vunpack.c.l.b16 %v2559
          %v2823 = vunpack.c.l.b16 %v2560
          %v2824 = vunpack.c.l.b16 %v2561
          %v2825 = vunpack.c.l.b16 %v2562
          %v2826 = vunpack.c.l.b16 %v2563
          %v2827 = vunpack.c.l.b16 %v2564
          %v2828 = vunpack.c.l.b16 %v2565
          %v2829 = vunpack.c.l.b16 %v2566
          %v2830 = vunpack.c.l.b16 %v2567
          %v2831 = vunpack.c.l.b16 %v2568
          %v2832 = vunpack.c.l.b16 %v2569
          %v2833 = vunpack.c.l.b16 %v2570
          %v2834 = vunpack.c.l.b16 %v2571
          %v2835 = vunpack.c.l.b16 %v2572
          %v2836 = vunpack.c.l.b16 %v2573
          %v2837 = vunpack.c.l.b16 %v2574
          %v2838 = vpack.c.b16 %v2711, %v2710
          %v2839 = vpack.c.b16 %v2713, %v2712
          %v2840 = vpack.c.b16 %v2715, %v2714
          %v2841 = vpack.c.b16 %v2717, %v2716
          %v2842 = vpack.c.b16 %v2719, %v2718
          %v2843 = vpack.c.b16 %v2721, %v2720
          %v2844 = vpack.c.b16 %v2723, %v2722
          %v2845 = vpack.c.b16 %v2725, %v2724
          %v2846 = vpack.c.b16 %v2727, %v2726
          %v2847 = vpack.c.b16 %v2729, %v2728
          %v2848 = vpack.c.b16 %v2731, %v2730
          %v2849 = vpack.c.b16 %v2733, %v2732
          %v2850 = vpack.c.b16 %v2735, %v2734
          %v2851 = vpack.c.b16 %v2737, %v2736
          %v2852 = vpack.c.b16 %v2739, %v2738
          %v2853 = vpack.c.b16 %v2741, %v2740
          %v2854 = vpack.c.b16 %v2743, %v2742
          %v2855 = vpack.c.b16 %v2745, %v2744
          %v2856 = vpack.c.b16 %v2747, %v2746
          %v2857 = vpack.c.b16 %v2749, %v2748
          %v2858 = vpack.c.b16 %v2751, %v2750
          %v2859 = vpack.c.b16 %v2753, %v2752
          %v2860 = vpack.c.b16 %v2755, %v2754
          %v2861 = vpack.c.b16 %v2757, %v2756
          %v2862 = vpack.c.b16 %v2759, %v2758
          %v2863 = vpack.c.b16 %v2761, %v2760
          %v2864 = vpack.c.b16 %v2763, %v2762
          %v2865 = vpack.c.b16 %v2765, %v2764
          %v2866 = vpack.c.b16 %v2767, %v2766
          %v2867 = vpack.c.b16 %v2769, %v2768
          %v2868 = vpack.c.b16 %v2771, %v2770
          %v2869 = vpack.c.b16 %v2773, %v2772
          %v2870 = vpack.c.b16 %v2775, %v2774
          %v2871 = vpack.c.b16 %v2777, %v2776
          %v2872 = vpack.c.b16 %v2779, %v2778
          %v2873 = vpack.c.b16 %v2781, %v2780
          %v2874 = vpack.c.b16 %v2783, %v2782
          %v2875 = vpack.c.b16 %v2785, %v2784
          %v2876 = vpack.c.b16 %v2787, %v2786
          %v2877 = vpack.c.b16 %v2789, %v2788
          %v2878 = vpack.c.b16 %v2791, %v2790
          %v2879 = vpack.c.b16 %v2793, %v2792
          %v2880 = vpack.c.b16 %v2795, %v2794
          %v2881 = vpack.c.b16 %v2797, %v2796
          %v2882 = vpack.c.b16 %v2799, %v2798
          %v2883 = vpack.c.b16 %v2801, %v2800
          %v2884 = vpack.c.b16 %v2803, %v2802
          %v2885 = vpack.c.b16 %v2805, %v2804
          %v2886 = vpack.c.b16 %v2807, %v2806
          %v2887 = vpack.c.b16 %v2809, %v2808
          %v2888 = vpack.c.b16 %v2811, %v2810
          %v2889 = vpack.c.b16 %v2813, %v2812
          %v2890 = vpack.c.b16 %v2815, %v2814
          %v2891 = vpack.c.b16 %v2817, %v2816
          %v2892 = vpack.c.b16 %v2819, %v2818
          %v2893 = vpack.c.b16 %v2821, %v2820
          %v2894 = vpack.c.b16 %v2823, %v2822
          %v2895 = vpack.c.b16 %v2825, %v2824
          %v2896 = vpack.c.b16 %v2827, %v2826
          %v2897 = vpack.c.b16 %v2829, %v2828
          %v2898 = vpack.c.b16 %v2831, %v2830
          %v2899 = vpack.c.b16 %v2833, %v2832
          %v2900 = vpack.c.b16 %v2835, %v2834
          %v2901 = vpack.c.b16 %v2837, %v2836
          %2966 = vmatprep.subr.bf16.mxu0 0
          %2967 = vmatpush1.bf16.msra.mxu0 %v2838
          %2968 = vmatprep.subr.bf16.mxu0 0
          %2969 = vmatpush1.bf16.msra.mxu0 %v2839
          %2970 = vmatprep.subr.bf16.mxu0 0
          %2971 = vmatpush1.bf16.msra.mxu0 %v2840
          %2972 = vmatprep.subr.bf16.mxu0 0
          %2973 = vmatpush1.bf16.msra.mxu0 %v2841
          %2974 = vmatprep.subr.bf16.mxu0 0
          %2975 = vmatpush1.bf16.msra.mxu0 %v2842
          %2976 = vmatprep.subr.bf16.mxu0 0
          %2977 = vmatpush1.bf16.msra.mxu0 %v2843
          %2978 = vmatprep.subr.bf16.mxu0 0
          %2979 = vmatpush1.bf16.msra.mxu0 %v2844
          %2980 = vmatprep.subr.bf16.mxu0 0
          %2981 = vmatpush1.bf16.msra.mxu0 %v2845
          %2982 = vmatprep.subr.bf16.mxu0 0
          %2983 = vmatpush1.bf16.msra.mxu0 %v2846
          %2984 = vmatprep.subr.bf16.mxu0 0
          %2985 = vmatpush1.bf16.msra.mxu0 %v2847
          %2986 = vmatprep.subr.bf16.mxu0 0
          %2987 = vmatpush1.bf16.msra.mxu0 %v2848
          %2988 = vmatprep.subr.bf16.mxu0 0
          %2989 = vmatpush1.bf16.msra.mxu0 %v2849
          %2990 = vmatprep.subr.bf16.mxu0 0
          %2991 = vmatpush1.bf16.msra.mxu0 %v2850
          %2992 = vmatprep.subr.bf16.mxu0 0
          %2993 = vmatpush1.bf16.msra.mxu0 %v2851
          %2994 = vmatprep.subr.bf16.mxu0 0
          %2995 = vmatpush1.bf16.msra.mxu0 %v2852
          %2996 = vmatprep.subr.bf16.mxu0 0
          %2997 = vmatpush1.bf16.msra.mxu0 %v2853
          %2998 = vmatprep.mubr.bf16.mxu0 %v2440
          %2999 = vmatmul.mubr.bf16.gmra.mrb[0].mxu0 %v2439
          %v3000 = vpop.f32.mrb[0].mxu0
          %v3001 = vadd.f32 %v2580, %v3000
          %v3002 = vpop.f32.mrb[0].mxu0
          %v3003 = vpop.f32.mrb[0].mxu0
          %v3004 = vadd.f32 %v2580, %v3003
          %v3005 = vpop.f32.mrb[0].mxu0
          %3006 = vdwg.mxu0
          %3007 = vmatprep.subr.bf16.mxu0 0
          %3008 = vmatpush1.bf16.msra.mxu0 %v2854
          %3009 = vmatprep.subr.bf16.mxu0 0
          %3010 = vmatpush1.bf16.msra.mxu0 %v2855
          %3011 = vmatprep.subr.bf16.mxu0 0
          %3012 = vmatpush1.bf16.msra.mxu0 %v2856
          %3013 = vmatprep.subr.bf16.mxu0 0
          %3014 = vmatpush1.bf16.msra.mxu0 %v2857
          %3015 = vmatprep.subr.bf16.mxu0 0
          %3016 = vmatpush1.bf16.msra.mxu0 %v2858
          %3017 = vmatprep.subr.bf16.mxu0 0
          %3018 = vmatpush1.bf16.msra.mxu0 %v2859
          %3019 = vmatprep.subr.bf16.mxu0 0
          %3020 = vmatpush1.bf16.msra.mxu0 %v2860
          %3021 = vmatprep.subr.bf16.mxu0 0
          %3022 = vmatpush1.bf16.msra.mxu0 %v2861
          %3023 = vmatprep.subr.bf16.mxu0 0
          %3024 = vmatpush1.bf16.msra.mxu0 %v2862
          %3025 = vmatprep.subr.bf16.mxu0 0
          %3026 = vmatpush1.bf16.msra.mxu0 %v2863
          %3027 = vmatprep.subr.bf16.mxu0 0
          %3028 = vmatpush1.bf16.msra.mxu0 %v2864
          %3029 = vmatprep.subr.bf16.mxu0 0
          %3030 = vmatpush1.bf16.msra.mxu0 %v2865
          %3031 = vmatprep.subr.bf16.mxu0 0
          %3032 = vmatpush1.bf16.msra.mxu0 %v2866
          %3033 = vmatprep.subr.bf16.mxu0 0
          %3034 = vmatpush1.bf16.msra.mxu0 %v2867
          %3035 = vmatprep.subr.bf16.mxu0 0
          %3036 = vmatpush1.bf16.msra.mxu0 %v2868
          %3037 = vmatprep.subr.bf16.mxu0 0
          %3038 = vmatpush1.bf16.msra.mxu0 %v2869
          %3039 = vmatprep.mubr.bf16.mxu0 %v2442
          %3040 = vmatmul.mubr.bf16.gmra.mrb[0].mxu0 %v2441
          %v3041 = vpop.f32.mrb[0].mxu0
          %v3042 = vadd.f32 %v3001, %v3041
          %v3043 = vpop.f32.mrb[0].mxu0
          %v3044 = vpop.f32.mrb[0].mxu0
          %v3045 = vadd.f32 %v3004, %v3044
          %v3046 = vpop.f32.mrb[0].mxu0
          %3047 = vdwg.mxu0
          %3048 = vmatprep.subr.bf16.mxu0 0
          %3049 = vmatpush1.bf16.msra.mxu0 %v2870
          %3050 = vmatprep.subr.bf16.mxu0 0
          %3051 = vmatpush1.bf16.msra.mxu0 %v2871
          %3052 = vmatprep.subr.bf16.mxu0 0
          %3053 = vmatpush1.bf16.msra.mxu0 %v2872
          %3054 = vmatprep.subr.bf16.mxu0 0
          %3055 = vmatpush1.bf16.msra.mxu0 %v2873
          %3056 = vmatprep.subr.bf16.mxu0 0
          %3057 = vmatpush1.bf16.msra.mxu0 %v2874
          %3058 = vmatprep.subr.bf16.mxu0 0
          %3059 = vmatpush1.bf16.msra.mxu0 %v2875
          %3060 = vmatprep.subr.bf16.mxu0 0
          %3061 = vmatpush1.bf16.msra.mxu0 %v2876
          %3062 = vmatprep.subr.bf16.mxu0 0
          %3063 = vmatpush1.bf16.msra.mxu0 %v2877
          %3064 = vmatprep.subr.bf16.mxu0 0
          %3065 = vmatpush1.bf16.msra.mxu0 %v2878
          %3066 = vmatprep.subr.bf16.mxu0 0
          %3067 = vmatpush1.bf16.msra.mxu0 %v2879
          %3068 = vmatprep.subr.bf16.mxu0 0
          %3069 = vmatpush1.bf16.msra.mxu0 %v2880
          %3070 = vmatprep.subr.bf16.mxu0 0
          %3071 = vmatpush1.bf16.msra.mxu0 %v2881
          %3072 = vmatprep.subr.bf16.mxu0 0
          %3073 = vmatpush1.bf16.msra.mxu0 %v2882
          %3074 = vmatprep.subr.bf16.mxu0 0
          %3075 = vmatpush1.bf16.msra.mxu0 %v2883
          %3076 = vmatprep.subr.bf16.mxu0 0
          %3077 = vmatpush1.bf16.msra.mxu0 %v2884
          %3078 = vmatprep.subr.bf16.mxu0 0
          %3079 = vmatpush1.bf16.msra.mxu0 %v2885
          %3080 = vmatprep.mubr.bf16.mxu0 %v2444
          %3081 = vmatmul.mubr.bf16.gmra.mrb[0].mxu0 %v2443
          %v3082 = vpop.f32.mrb[0].mxu0
          %v3083 = vadd.f32 %v3042, %v3082
          %v3084 = vpop.f32.mrb[0].mxu0
          %v3085 = vpop.f32.mrb[0].mxu0
          %v3086 = vadd.f32 %v3045, %v3085
          %v3087 = vpop.f32.mrb[0].mxu0
          %3088 = vdwg.mxu0
          %3089 = vmatprep.subr.bf16.mxu0 0
          %3090 = vmatpush1.bf16.msra.mxu0 %v2886
          %3091 = vmatprep.subr.bf16.mxu0 0
          %3092 = vmatpush1.bf16.msra.mxu0 %v2887
          %3093 = vmatprep.subr.bf16.mxu0 0
          %3094 = vmatpush1.bf16.msra.mxu0 %v2888
          %3095 = vmatprep.subr.bf16.mxu0 0
          %3096 = vmatpush1.bf16.msra.mxu0 %v2889
          %3097 = vmatprep.subr.bf16.mxu0 0
          %3098 = vmatpush1.bf16.msra.mxu0 %v2890
          %3099 = vmatprep.subr.bf16.mxu0 0
          %3100 = vmatpush1.bf16.msra.mxu0 %v2891
          %3101 = vmatprep.subr.bf16.mxu0 0
          %3102 = vmatpush1.bf16.msra.mxu0 %v2892
          %3103 = vmatprep.subr.bf16.mxu0 0
          %3104 = vmatpush1.bf16.msra.mxu0 %v2893
          %3105 = vmatprep.subr.bf16.mxu0 0
          %3106 = vmatpush1.bf16.msra.mxu0 %v2894
          %3107 = vmatprep.subr.bf16.mxu0 0
          %3108 = vmatpush1.bf16.msra.mxu0 %v2895
          %3109 = vmatprep.subr.bf16.mxu0 0
          %3110 = vmatpush1.bf16.msra.mxu0 %v2896
          %3111 = vmatprep.subr.bf16.mxu0 0
          %3112 = vmatpush1.bf16.msra.mxu0 %v2897
          %3113 = vmatprep.subr.bf16.mxu0 0
          %3114 = vmatpush1.bf16.msra.mxu0 %v2898
          %3115 = vmatprep.subr.bf16.mxu0 0
          %3116 = vmatpush1.bf16.msra.mxu0 %v2899
          %3117 = vmatprep.subr.bf16.mxu0 0
          %3118 = vmatpush1.bf16.msra.mxu0 %v2900
          %3119 = vmatprep.subr.bf16.mxu0 0
          %3120 = vmatpush1.bf16.msra.mxu0 %v2901
          %3121 = vmatprep.mubr.bf16.mxu0 %v2446
          %3122 = vmatmul.mubr.bf16.gmra.mrb[0].mxu0 %v2445
          %v3123 = vpop.f32.mrb[0].mxu0
          %v3124 = vadd.f32 %v3083, %v3123
          %v3125 = vpop.f32.mrb[0].mxu0
          %v3126 = vpop.f32.mrb[0].mxu0
          %v3127 = vadd.f32 %v3086, %v3126
          %v3128 = vpop.f32.mrb[0].mxu0
          %3129 = vdwg.mxu0
          %v3130 = vmax.f32 %v3124, 0.0
          %v3131 = vmax.f32 %v3127, 0.0
          %v3132 = vld [vmem:[%s386] sm:$0xff]
          %v3133 = vld [vmem:[%s386 + $0x8] sm:$0xff]
          %v3134 = vld [vmem:[%s386 + $0x10] sm:$0xff]
          %v3135 = vld [vmem:[%s386 + $0x18] sm:$0xff]
          %v3136 = vld [vmem:[%s386 + $0x20] sm:$0xff]
          %v3137 = vld [vmem:[%s386 + $0x28] sm:$0xff]
          %v3138 = vld [vmem:[%s386 + $0x30] sm:$0xff]
          %v3139 = vld [vmem:[%s386 + $0x38] sm:$0xff]
          %v3140 = vld [vmem:[%s386 + $0x40] sm:$0xff]
          %v3141 = vld [vmem:[%s386 + $0x48] sm:$0xff]
          %v3142 = vld [vmem:[%s386 + $0x50] sm:$0xff]
          %v3143 = vld [vmem:[%s386 + $0x58] sm:$0xff]
          %v3144 = vld [vmem:[%s386 + $0x60] sm:$0xff]
          %v3145 = vld [vmem:[%s386 + $0x68] sm:$0xff]
          %v3146 = vld [vmem:[%s386 + $0x70] sm:$0xff]
          %v3147 = vld [vmem:[%s386 + $0x78] sm:$0xff]
          %vm3148 = vcmask 130048
          %v3149 = vsel %vm3148, %v3132, 0.0
          %3150 = vadd.xlane.f32.xlu0 %v3149
          %v3151 = vpop.xlane.xlu0 %3150
          %v3152 = vsel %vm3148, %v3133, 0.0
          %3153 = vadd.xlane.f32.xlu0 %v3152
          %v3154 = vpop.xlane.xlu0 %3153
          %v3155 = vsel %vm3148, %v3134, 0.0
          %3156 = vadd.xlane.f32.xlu0 %v3155
          %v3157 = vpop.xlane.xlu0 %3156
          %v3158 = vsel %vm3148, %v3135, 0.0
          %3159 = vadd.xlane.f32.xlu0 %v3158
          %v3160 = vpop.xlane.xlu0 %3159
          %v3161 = vsel %vm3148, %v3136, 0.0
          %3162 = vadd.xlane.f32.xlu0 %v3161
          %v3163 = vpop.xlane.xlu0 %3162
          %v3164 = vsel %vm3148, %v3137, 0.0
          %3165 = vadd.xlane.f32.xlu0 %v3164
          %v3166 = vpop.xlane.xlu0 %3165
          %v3167 = vsel %vm3148, %v3138, 0.0
          %3168 = vadd.xlane.f32.xlu0 %v3167
          %v3169 = vpop.xlane.xlu0 %3168
          %v3170 = vsel %vm3148, %v3139, 0.0
          %3171 = vadd.xlane.f32.xlu0 %v3170
          %v3172 = vpop.xlane.xlu0 %3171
          %v3173 = vsel %vm3148, %v3140, 0.0
          %3174 = vadd.xlane.f32.xlu0 %v3173
          %v3175 = vpop.xlane.xlu0 %3174
          %v3176 = vsel %vm3148, %v3141, 0.0
          %3177 = vadd.xlane.f32.xlu0 %v3176
          %v3178 = vpop.xlane.xlu0 %3177
          %v3179 = vsel %vm3148, %v3142, 0.0
          %3180 = vadd.xlane.f32.xlu0 %v3179
          %v3181 = vpop.xlane.xlu0 %3180
          %v3182 = vsel %vm3148, %v3143, 0.0
          %3183 = vadd.xlane.f32.xlu0 %v3182
          %v3184 = vpop.xlane.xlu0 %3183
          %v3185 = vsel %vm3148, %v3144, 0.0
          %3186 = vadd.xlane.f32.xlu0 %v3185
          %v3187 = vpop.xlane.xlu0 %3186
          %v3188 = vsel %vm3148, %v3145, 0.0
          %3189 = vadd.xlane.f32.xlu0 %v3188
          %v3190 = vpop.xlane.xlu0 %3189
          %v3191 = vsel %vm3148, %v3146, 0.0
          %3192 = vadd.xlane.f32.xlu0 %v3191
          %v3193 = vpop.xlane.xlu0 %3192
          %v3194 = vsel %vm3148, %v3147, 0.0
          %3195 = vadd.xlane.f32.xlu0 %v3194
          %v3196 = vpop.xlane.xlu0 %3195
          %v3197 = vmax.f32 %v3151, 1.0
          %v3198 = vmax.f32 %v3154, 1.0
          %v3199 = vmax.f32 %v3157, 1.0
          %v3200 = vmax.f32 %v3160, 1.0
          %v3201 = vmax.f32 %v3163, 1.0
          %v3202 = vmax.f32 %v3166, 1.0
          %v3203 = vmax.f32 %v3169, 1.0
          %v3204 = vmax.f32 %v3172, 1.0
          %v3205 = vmax.f32 %v3175, 1.0
          %v3206 = vmax.f32 %v3178, 1.0
          %v3207 = vmax.f32 %v3181, 1.0
          %v3208 = vmax.f32 %v3184, 1.0
          %v3209 = vmax.f32 %v3187, 1.0
          %v3210 = vmax.f32 %v3190, 1.0
          %v3211 = vmax.f32 %v3193, 1.0
          %v3212 = vmax.f32 %v3196, 1.0
          %v3214 = vsel %vm3148, %v3132, 0
          %v3217 = vsel %vm3148, %v3133, 0
          %v3220 = vsel %vm3148, %v3134, 0
          %v3223 = vsel %vm3148, %v3135, 0
          %v3226 = vsel %vm3148, %v3136, 0
          %v3229 = vsel %vm3148, %v3137, 0
          %v3232 = vsel %vm3148, %v3138, 0
          %v3235 = vsel %vm3148, %v3139, 0
          %v3238 = vsel %vm3148, %v3140, 0
          %v3241 = vsel %vm3148, %v3141, 0
          %v3244 = vsel %vm3148, %v3142, 0
          %v3247 = vsel %vm3148, %v3143, 0
          %v3250 = vsel %vm3148, %v3144, 0
          %v3253 = vsel %vm3148, %v3145, 0
          %v3256 = vsel %vm3148, %v3146, 0
          %v3259 = vsel %vm3148, %v3147, 0
          %3261 = vmatprep.subr.mxu0 0.0
          %3262 = vmatpush1.msra.mxu0 %v3130
          %3263 = vmatprep.subr.mxu0 0.0
          %3264 = vmatpush1.msra.mxu0 %v3131
          %3265 = vmatprep.subr.mxu0 0.0
          %3266 = vmatpush1.msra.mxu0 0.0
          %3267 = vmatprep.subr.mxu0 0.0
          %3268 = vmatpush1.msra.mxu0 0.0
          %3269 = vmatprep.subr.mxu0 0.0
          %3270 = vmatpush1.msra.mxu0 0.0
          %3271 = vmatprep.subr.mxu0 0.0
          %3272 = vmatpush1.msra.mxu0 0.0
          %3273 = vmatprep.subr.mxu0 0.0
          %3274 = vmatpush1.msra.mxu0 0.0
          %3275 = vmatprep.subr.mxu0 0.0
          %3276 = vmatpush1.msra.mxu0 0.0
          %3277 = vmatprep.subr.mxu0 0.0
          %3278 = vmatpush1.msra.mxu0 0.0
          %3279 = vmatprep.subr.mxu0 0.0
          %3280 = vmatpush1.msra.mxu0 0.0
          %3281 = vmatprep.subr.mxu0 0.0
          %3282 = vmatpush1.msra.mxu0 0.0
          %3283 = vmatprep.subr.mxu0 0.0
          %3284 = vmatpush1.msra.mxu0 0.0
          %3285 = vmatprep.subr.mxu0 0.0
          %3286 = vmatpush1.msra.mxu0 0.0
          %3287 = vmatprep.subr.mxu0 0.0
          %3288 = vmatpush1.msra.mxu0 0.0
          %3289 = vmatprep.subr.mxu0 0.0
          %3290 = vmatpush1.msra.mxu0 0.0
          %3291 = vmatprep.subr.mxu0 0.0
          %3292 = vmatpush1.msra.mxu0 0.0
          %3293 = vmatprep.subr.mxu0 0.0
          %3294 = vmatpush1.msra.mxu0 0.0
          %3295 = vmatprep.subr.mxu0 0.0
          %3296 = vmatpush1.msra.mxu0 0.0
          %3297 = vmatprep.subr.mxu0 0.0
          %3298 = vmatpush1.msra.mxu0 0.0
          %3299 = vmatprep.subr.mxu0 0.0
          %3300 = vmatpush1.msra.mxu0 0.0
          %3301 = vmatprep.subr.mxu0 0.0
          %3302 = vmatpush1.msra.mxu0 0.0
          %3303 = vmatprep.subr.mxu0 0.0
          %3304 = vmatpush1.msra.mxu0 0.0
          %3305 = vmatprep.subr.mxu0 0.0
          %3306 = vmatpush1.msra.mxu0 0.0
          %3307 = vmatprep.subr.mxu0 0.0
          %3308 = vmatpush1.msra.mxu0 0.0
          %3309 = vmatprep.subr.mxu0 0.0
          %3310 = vmatpush1.msra.mxu0 0.0
          %3311 = vmatprep.subr.mxu0 0.0
          %3312 = vmatpush1.msra.mxu0 0.0
          %3313 = vmatprep.subr.mxu0 0.0
          %3314 = vmatpush1.msra.mxu0 0.0
          %3315 = vmatprep.subr.mxu0 0.0
          %3316 = vmatpush1.msra.mxu0 0.0
          %3317 = vmatprep.subr.mxu0 0.0
          %3318 = vmatpush1.msra.mxu0 0.0
          %3319 = vmatprep.subr.mxu0 0.0
          %3320 = vmatpush1.msra.mxu0 0.0
          %3321 = vmatprep.subr.mxu0 0.0
          %3322 = vmatpush1.msra.mxu0 0.0
          %3323 = vmatprep.subr.mxu0 0.0
          %3324 = vmatpush1.msra.mxu0 0.0
          %3325 = vmatprep.mubr.f32.mxu0 0.0
          %3326 = vmatmul.mubr.f32.gmra.mrb[0].mxu0 %v3214
          %v3327 = vpop.f32.mrb[0].mxu0
          %v3328 = vadd.f32 0.0, %v3327
          %v3329 = vpop.f32.mrb[0].mxu0
          %3330 = vmatprep.mubr.f32.mxu0 0.0
          %3331 = vmatmul.mubr.f32.gmra.mrb[0].mxu0 %v3217
          %v3332 = vpop.f32.mrb[0].mxu0
          %v3333 = vadd.f32 0.0, %v3332
          %v3334 = vpop.f32.mrb[0].mxu0
          %3335 = vmatprep.mubr.f32.mxu0 0.0
          %3336 = vmatmul.mubr.f32.gmra.mrb[0].mxu0 %v3220
          %v3337 = vpop.f32.mrb[0].mxu0
          %v3338 = vadd.f32 0.0, %v3337
          %v3339 = vpop.f32.mrb[0].mxu0
          %3340 = vmatprep.mubr.f32.mxu0 0.0
          %3341 = vmatmul.mubr.f32.gmra.mrb[0].mxu0 %v3223
          %v3342 = vpop.f32.mrb[0].mxu0
          %v3343 = vadd.f32 0.0, %v3342
          %v3344 = vpop.f32.mrb[0].mxu0
          %3345 = vmatprep.mubr.f32.mxu0 0.0
          %3346 = vmatmul.mubr.f32.gmra.mrb[0].mxu0 %v3226
          %v3347 = vpop.f32.mrb[0].mxu0
          %v3348 = vadd.f32 0.0, %v3347
          %v3349 = vpop.f32.mrb[0].mxu0
          %3350 = vmatprep.mubr.f32.mxu0 0.0
          %3351 = vmatmul.mubr.f32.gmra.mrb[0].mxu0 %v3229
          %v3352 = vpop.f32.mrb[0].mxu0
          %v3353 = vadd.f32 0.0, %v3352
          %v3354 = vpop.f32.mrb[0].mxu0
          %3355 = vmatprep.mubr.f32.mxu0 0.0
          %3356 = vmatmul.mubr.f32.gmra.mrb[0].mxu0 %v3232
          %v3357 = vpop.f32.mrb[0].mxu0
          %v3358 = vadd.f32 0.0, %v3357
          %v3359 = vpop.f32.mrb[0].mxu0
          %3360 = vmatprep.mubr.f32.mxu0 0.0
          %3361 = vmatmul.mubr.f32.gmra.mrb[0].mxu0 %v3235
          %v3362 = vpop.f32.mrb[0].mxu0
          %v3363 = vadd.f32 0.0, %v3362
          %v3364 = vpop.f32.mrb[0].mxu0
          %3365 = vmatprep.mubr.f32.mxu0 0.0
          %3366 = vmatmul.mubr.f32.gmra.mrb[0].mxu0 %v3238
          %v3367 = vpop.f32.mrb[0].mxu0
          %v3368 = vadd.f32 0.0, %v3367
          %v3369 = vpop.f32.mrb[0].mxu0
          %3370 = vmatprep.mubr.f32.mxu0 0.0
          %3371 = vmatmul.mubr.f32.gmra.mrb[0].mxu0 %v3241
          %v3372 = vpop.f32.mrb[0].mxu0
          %v3373 = vadd.f32 0.0, %v3372
          %v3374 = vpop.f32.mrb[0].mxu0
          %3375 = vmatprep.mubr.f32.mxu0 0.0
          %3376 = vmatmul.mubr.f32.gmra.mrb[0].mxu0 %v3244
          %v3377 = vpop.f32.mrb[0].mxu0
          %v3378 = vadd.f32 0.0, %v3377
          %v3379 = vpop.f32.mrb[0].mxu0
          %3380 = vmatprep.mubr.f32.mxu0 0.0
          %3381 = vmatmul.mubr.f32.gmra.mrb[0].mxu0 %v3247
          %v3382 = vpop.f32.mrb[0].mxu0
          %v3383 = vadd.f32 0.0, %v3382
          %v3384 = vpop.f32.mrb[0].mxu0
          %3385 = vmatprep.mubr.f32.mxu0 0.0
          %3386 = vmatmul.mubr.f32.gmra.mrb[0].mxu0 %v3250
          %v3387 = vpop.f32.mrb[0].mxu0
          %v3388 = vadd.f32 0.0, %v3387
          %v3389 = vpop.f32.mrb[0].mxu0
          %3390 = vmatprep.mubr.f32.mxu0 0.0
          %3391 = vmatmul.mubr.f32.gmra.mrb[0].mxu0 %v3253
          %v3392 = vpop.f32.mrb[0].mxu0
          %v3393 = vadd.f32 0.0, %v3392
          %v3394 = vpop.f32.mrb[0].mxu0
          %3395 = vmatprep.mubr.f32.mxu0 0.0
          %3396 = vmatmul.mubr.f32.gmra.mrb[0].mxu0 %v3256
          %v3397 = vpop.f32.mrb[0].mxu0
          %v3398 = vadd.f32 0.0, %v3397
          %v3399 = vpop.f32.mrb[0].mxu0
          %3400 = vmatprep.mubr.f32.mxu0 0.0
          %3401 = vmatmul.mubr.f32.gmra.mrb[0].mxu0 %v3259
          %v3402 = vpop.f32.mrb[0].mxu0
          %v3403 = vadd.f32 0.0, %v3402
          %v3404 = vpop.f32.mrb[0].mxu0
          %3405 = vdwg.mxu0
          %v3406 = vrcp.pop %v3197
          %v3407 = vmul.f32 %v3328, %v3406
          %v3408 = vrcp.pop %v3198
          %v3409 = vmul.f32 %v3333, %v3408
          %v3410 = vrcp.pop %v3199
          %v3411 = vmul.f32 %v3338, %v3410
          %v3412 = vrcp.pop %v3200
          %v3413 = vmul.f32 %v3343, %v3412
          %v3414 = vrcp.pop %v3201
          %v3415 = vmul.f32 %v3348, %v3414
          %v3416 = vrcp.pop %v3202
          %v3417 = vmul.f32 %v3353, %v3416
          %v3418 = vrcp.pop %v3203
          %v3419 = vmul.f32 %v3358, %v3418
          %v3420 = vrcp.pop %v3204
          %v3421 = vmul.f32 %v3363, %v3420
          %v3422 = vrcp.pop %v3205
          %v3423 = vmul.f32 %v3368, %v3422
          %v3424 = vrcp.pop %v3206
          %v3425 = vmul.f32 %v3373, %v3424
          %v3426 = vrcp.pop %v3207
          %v3427 = vmul.f32 %v3378, %v3426
          %v3428 = vrcp.pop %v3208
          %v3429 = vmul.f32 %v3383, %v3428
          %v3430 = vrcp.pop %v3209
          %v3431 = vmul.f32 %v3388, %v3430
          %v3432 = vrcp.pop %v3210
          %v3433 = vmul.f32 %v3393, %v3432
          %v3434 = vrcp.pop %v3211
          %v3435 = vmul.f32 %v3398, %v3434
          %v3436 = vrcp.pop %v3212
          %v3437 = vmul.f32 %v3403, %v3436
          %v3438 = vmul.f32 %v3131, %v3131
          %3439 = vadd.xlane.f32.xlu0 %v3438
          %v3440 = vpop.xlane.xlu0 %3439
          %v3441 = vmul.f32 %v3407, %v3407
          %v3442 = vmul.f32 %v3409, %v3409
          %v3443 = vmul.f32 %v3411, %v3411
          %v3444 = vmul.f32 %v3413, %v3413
          %v3445 = vmul.f32 %v3415, %v3415
          %v3446 = vmul.f32 %v3417, %v3417
          %v3447 = vmul.f32 %v3419, %v3419
          %v3448 = vmul.f32 %v3421, %v3421
          %v3449 = vmul.f32 %v3423, %v3423
          %v3450 = vmul.f32 %v3425, %v3425
          %v3451 = vmul.f32 %v3427, %v3427
          %v3452 = vmul.f32 %v3429, %v3429
          %v3453 = vmul.f32 %v3431, %v3431
          %v3454 = vmul.f32 %v3433, %v3433
          %v3455 = vmul.f32 %v3435, %v3435
          %v3456 = vmul.f32 %v3437, %v3437
          %3457 = vadd.xlane.f32.xlu0 %v3441
          %v3458 = vpop.xlane.xlu0 %3457
          %3459 = vadd.xlane.f32.xlu0 %v3442
          %v3460 = vpop.xlane.xlu0 %3459
          %3461 = vadd.xlane.f32.xlu0 %v3443
          %v3462 = vpop.xlane.xlu0 %3461
          %3463 = vadd.xlane.f32.xlu0 %v3444
          %v3464 = vpop.xlane.xlu0 %3463
          %3465 = vadd.xlane.f32.xlu0 %v3445
          %v3466 = vpop.xlane.xlu0 %3465
          %3467 = vadd.xlane.f32.xlu0 %v3446
          %v3468 = vpop.xlane.xlu0 %3467
          %3469 = vadd.xlane.f32.xlu0 %v3447
          %v3470 = vpop.xlane.xlu0 %3469
          %3471 = vadd.xlane.f32.xlu0 %v3448
          %v3472 = vpop.xlane.xlu0 %3471
          %3473 = vadd.xlane.f32.xlu0 %v3449
          %v3474 = vpop.xlane.xlu0 %3473
          %3475 = vadd.xlane.f32.xlu0 %v3450
          %v3476 = vpop.xlane.xlu0 %3475
          %3477 = vadd.xlane.f32.xlu0 %v3451
          %v3478 = vpop.xlane.xlu0 %3477
          %3479 = vadd.xlane.f32.xlu0 %v3452
          %v3480 = vpop.xlane.xlu0 %3479
          %3481 = vadd.xlane.f32.xlu0 %v3453
          %v3482 = vpop.xlane.xlu0 %3481
          %3483 = vadd.xlane.f32.xlu0 %v3454
          %v3484 = vpop.xlane.xlu0 %3483
          %3485 = vadd.xlane.f32.xlu0 %v3455
          %v3486 = vpop.xlane.xlu0 %3485
          %3487 = vadd.xlane.f32.xlu0 %v3456
          %v3488 = vpop.xlane.xlu0 %3487
          %3489 = vmatprep.subr.mxu0 0.0
          %3490 = vmatpush1.xpose.msra.mxu0 %v3407
          %3491 = vmatprep.subr.mxu0 0.0
          %3492 = vmatpush1.xpose.msra.mxu0 %v3409
          %3493 = vmatprep.subr.mxu0 0.0
          %3494 = vmatpush1.xpose.msra.mxu0 %v3411
          %3495 = vmatprep.subr.mxu0 0.0
          %3496 = vmatpush1.xpose.msra.mxu0 %v3413
          %3497 = vmatprep.subr.mxu0 0.0
          %3498 = vmatpush1.xpose.msra.mxu0 %v3415
          %3499 = vmatprep.subr.mxu0 0.0
          %3500 = vmatpush1.xpose.msra.mxu0 %v3417
          %3501 = vmatprep.subr.mxu0 0.0
          %3502 = vmatpush1.xpose.msra.mxu0 %v3419
          %3503 = vmatprep.subr.mxu0 0.0
          %3504 = vmatpush1.xpose.msra.mxu0 %v3421
          %3505 = vmatprep.subr.mxu0 0.0
          %3506 = vmatpush1.xpose.msra.mxu0 %v3423
          %3507 = vmatprep.subr.mxu0 0.0
          %3508 = vmatpush1.xpose.msra.mxu0 %v3425
          %3509 = vmatprep.subr.mxu0 0.0
          %3510 = vmatpush1.xpose.msra.mxu0 %v3427
          %3511 = vmatprep.subr.mxu0 0.0
          %3512 = vmatpush1.xpose.msra.mxu0 %v3429
          %3513 = vmatprep.subr.mxu0 0.0
          %3514 = vmatpush1.xpose.msra.mxu0 %v3431
          %3515 = vmatprep.subr.mxu0 0.0
          %3516 = vmatpush1.xpose.msra.mxu0 %v3433
          %3517 = vmatprep.subr.mxu0 0.0
          %3518 = vmatpush1.xpose.msra.mxu0 %v3435
          %3519 = vmatprep.subr.mxu0 0.0
          %3520 = vmatpush1.xpose.msra.mxu0 %v3437
          %3521 = vmatprep.subr.mxu0 0.0
          %3522 = vmatpush1.xpose.msra.mxu0 0.0
          %3523 = vmatprep.subr.mxu0 0.0
          %3524 = vmatpush1.xpose.msra.mxu0 0.0
          %3525 = vmatprep.subr.mxu0 0.0
          %3526 = vmatpush1.xpose.msra.mxu0 0.0
          %3527 = vmatprep.subr.mxu0 0.0
          %3528 = vmatpush1.xpose.msra.mxu0 0.0
          %3529 = vmatprep.subr.mxu0 0.0
          %3530 = vmatpush1.xpose.msra.mxu0 0.0
          %3531 = vmatprep.subr.mxu0 0.0
          %3532 = vmatpush1.xpose.msra.mxu0 0.0
          %3533 = vmatprep.subr.mxu0 0.0
          %3534 = vmatpush1.xpose.msra.mxu0 0.0
          %3535 = vmatprep.subr.mxu0 0.0
          %3536 = vmatpush1.xpose.msra.mxu0 0.0
          %3537 = vmatprep.subr.mxu0 0.0
          %3538 = vmatpush1.xpose.msra.mxu0 0.0
          %3539 = vmatprep.subr.mxu0 0.0
          %3540 = vmatpush1.xpose.msra.mxu0 0.0
          %3541 = vmatprep.subr.mxu0 0.0
          %3542 = vmatpush1.xpose.msra.mxu0 0.0
          %3543 = vmatprep.subr.mxu0 0.0
          %3544 = vmatpush1.xpose.msra.mxu0 0.0
          %3545 = vmatprep.subr.mxu0 0.0
          %3546 = vmatpush1.xpose.msra.mxu0 0.0
          %3547 = vmatprep.subr.mxu0 0.0
          %3548 = vmatpush1.xpose.msra.mxu0 0.0
          %3549 = vmatprep.subr.mxu0 0.0
          %3550 = vmatpush1.xpose.msra.mxu0 0.0
          %3551 = vmatprep.subr.mxu0 0.0
          %3552 = vmatpush1.xpose.msra.mxu0 0.0
          %3553 = vmatprep.mubr.f32.mxu0 0.0
          %3554 = vmatmul.mubr.f32.gmra.mrb[0].mxu0 %v3131
          %v3555 = vpop.f32.mrb[0].mxu0
          %v3556 = vadd.f32 0.0, %v3555
          %v3557 = vpop.f32.mrb[0].mxu0
          %3558 = vdwg.mxu0
          %3559 = vxpose.xlu0.b32.start [1/16] %v3458, 128
          %3560 = vxpose.xlu0.b32.cont [2/16] %v3460, 128
          %3561 = vxpose.xlu0.b32.cont [3/16] %v3462, 128
          %3562 = vxpose.xlu0.b32.cont [4/16] %v3464, 128
          %3563 = vxpose.xlu0.b32.cont [5/16] %v3466, 128
          %3564 = vxpose.xlu0.b32.cont [6/16] %v3468, 128
          %3565 = vxpose.xlu0.b32.cont [7/16] %v3470, 128
          %3566 = vxpose.xlu0.b32.cont [8/16] %v3472, 128
          %3567 = vxpose.xlu0.b32.cont [9/16] %v3474, 128
          %3568 = vxpose.xlu0.b32.cont [10/16] %v3476, 128
          %3569 = vxpose.xlu0.b32.cont [11/16] %v3478, 128
          %3570 = vxpose.xlu0.b32.cont [12/16] %v3480, 128
          %3571 = vxpose.xlu0.b32.cont [13/16] %v3482, 128
          %3572 = vxpose.xlu0.b32.cont [14/16] %v3484, 128
          %3573 = vxpose.xlu0.b32.cont [15/16] %v3486, 128
          %3574 = vxpose.xlu0.b32.end [16/16] %v3488, 128
          %v3575 = vpop.trf.xlu0
          %v3576 = vpop.trf.xlu0
          %v3577 = vpop.trf.xlu0
          %v3578 = vpop.trf.xlu0
          %v3579 = vpop.trf.xlu0
          %v3580 = vpop.trf.xlu0
          %v3581 = vpop.trf.xlu0
          %v3582 = vpop.trf.xlu0
          %v3583 = vpop.trf.xlu0
          %v3584 = vpop.trf.xlu0
          %v3585 = vpop.trf.xlu0
          %v3586 = vpop.trf.xlu0
          %v3587 = vpop.trf.xlu0
          %v3588 = vpop.trf.xlu0
          %v3589 = vpop.trf.xlu0
          %v3590 = vpop.trf.xlu0
          %v3591 = vlaneseq
          %v3592 = vshrl.u32 %v3591, 7
          %v3593 = vsub.s32 0, %v3592
          %v3594 = vrot.slane %v3575, %v3593
          %v3595 = vadd.f32 %v3440, %v3594
          %v3596 = vmul.f32 %v3556, 2.0
          %v3597 = vsub.f32 %v3595, %v3596
          %v3598 = vmax.f32 %v3597, 0.0
          %v3599 = vrsqrt.pop %v3598
          %v3600 = vmul.f32 %v3598, %v3599
          %vm3601 = vcmp.eq.f32.partialorder %v3598, inf
          %v3602 = vsel %vm3601, %v3598, %v3600
          %vm3603 = vcmp.eq.f32.partialorder %v3598, 0.0
          %v3604 = vand.u32 %v3598, 2147483648
          %v3605 = vsel %vm3603, %v3604, %v3602
          %v3606 = vsub.f32 0.0, %v3605
          %3607 = vst [vmem:[%s380] sm:$0xff] %v3606
        $region72: #{tpu_custom_call.1} parent=43 // pred_fallthru
          _
        %s3608 = sand.u32 %s190, 1
        %s3609 = scalar_lea.sflag [#allocation5], %s3608
        %s3610 = sand.u32 %s190, 1
        %s3611 = smul.addr %s3610, 8
        %s3612 = scalar_lea.vmem [#allocation12], %s3611
        // Predicated region
        $region73: #{tpu_custom_call.1} parent=43 // pred_check
          %p3613 = pneg %p200
        $region74: #{tpu_custom_call.1} parent=43 // pred_check_branch
          %3615 = sbr.rel (%p3613) target = $region76
        $region75: #{tpu_custom_call.1} parent=43 // pred_region
          %s3617 = ssub.s32 128, 128
          %3618 = vsyncadd %s3609, %s3617
          %s3619 = smul.addr %s31, 128
          %s3620 = scalar_lea.hbm %s6, %s3619
          %s3622 = sshll.u32 %s3612, 4
          %s3623 = int_to_ptr.vmem [resolvable:$true] %s3622
          %3625 = dma.vmem_to_hbm [thread:$0]  %s3623, 128, %s3620, %s3609
        $region76: #{tpu_custom_call.1} parent=43 // pred_fallthru
          _
      $region44: #{tpu_custom_call.1} parent=5 // pred_fallthru
        _
      %p3626 = scmp.le.s32.totalorder 2, %s22
      // Predicated region
      $region77: #{tpu_custom_call.1} parent=5 // pred_check
        %p3627 = pneg %p3626
      $region78: #{tpu_custom_call.1} parent=5 // pred_check_branch
        %3629 = sbr.rel (%p3627) target = $region80
      $region79: #{tpu_custom_call.1} parent=5 // pred_region
        %s3630 = ssub.s32 %s22, 2
        // Predicated region
        $region81: #{tpu_custom_call.1} parent=79 // pred_check
          %p3631 = pneg %p206
        $region82: #{tpu_custom_call.1} parent=79 // pred_check_branch
          %3633 = sbr.rel (%p3631) target = $region84
        $region83: #{tpu_custom_call.1} parent=79 // pred_region
          %s3634 = sand.u32 %s191, 1
          %s3635 = scalar_lea.sflag [#allocation5], %s3634
          %s3636 = sand.u32 %s191, 1
          %s3637 = smul.addr %s3636, 8
          %s3638 = scalar_lea.vmem [#allocation12], %s3637
          %3639 = dma.done %s3635, 128
        $region84: #{tpu_custom_call.1} parent=79 // pred_fallthru
          _
      $region80: #{tpu_custom_call.1} parent=5 // pred_fallthru
        _
    $region6: #{tpu_custom_call.1} parent=1 // loop_footer
      %s26 = sadd.s32 1, %s22
    $region7: #{tpu_custom_call.1} parent=1 // loop_footer_branch
      %21 = sbr.rel target = $region3
    $region8: #{tpu_custom_call.1} parent=1 // loop_exit
      _
    %3640 = vsyncpa [#allocation4], 1
    %s3641 = scalar_lea.sflag [#allocation4], 1
    %3642 = vsyncpa %s3641, 1
    %3643 = vsyncpa [#allocation7], 1
    %s3644 = scalar_lea.sflag [#allocation7], 1
    %3645 = vsyncpa %s3644, 1
    %3646 = vsyncpa [#allocation10], 1
    %3647 = vsyncpa [#allocation5], 1
    %s3648 = scalar_lea.sflag [#allocation5], 1
    %3649 = vsyncpa %s3648, 1

</llo_original>
